<compile_context>
chip_gen: v7x
topology: tpu7x:2x2x1
jax: 0.10.0
libtpu: 0.0.40
codegen_flags: <defaults>
</compile_context>

<pallas_src>
import functools

import jax
import jax.numpy as jnp
import numpy as np
from jax.experimental import pallas as pl
from jax.experimental.pallas import tpu as pltpu

MAX_TYPE_NUM = 3
MAX_DEC_GROUP = 5
MAX_DEC_LENGTH = MAX_TYPE_NUM * MAX_DEC_GROUP  # 15


def _prev_pred_emb_kernel(idx_ref,     # VMEM (tile_rows, 1) i32
                          cls_ref,     # VMEM (2, H)   cls_embeddings (resident)
                          tw_ref,      # VMEM (V, H)   type_weight    (resident)
                          emb_ref,     # VMEM (tile_rows, H) pre-tiled LN(pos+tok)
                          pair_g_ref,  # VMEM (1, H)
                          pair_b_ref,  # VMEM (1, H)
                          out_ref,     # VMEM (tile_rows, H)
                          *, eps, tile_rows, vocab):
    idx = idx_ref[...]                                             # (tile_rows, 1) i32

    # Column pattern: row within a sequence is (row % 15); since 15 % 3 == 0,
    # (row % 3 == 0) <=> (column % 3 == 0), i.e. a "cls" column.
    row = jax.lax.broadcasted_iota(jnp.int32, (tile_rows, 1), 0)
    is_cls = (row % 3) == 0                                        # (tile_rows, 1)

    # --- type_weight gather via one-hot matmul on the MXU -------------------
    onehot = (jax.lax.broadcasted_iota(jnp.int32, (tile_rows, vocab), 1)
              == idx).astype(jnp.float32)                          # (tile_rows, V)
    type_rows = jnp.dot(onehot, tw_ref[...],
                        preferred_element_type=jnp.float32)        # (tile_rows, H)

    # --- cls columns: 2-way select between the two cls embedding rows -------
    cls_rows = jnp.where(idx == 1, cls_ref[1:2, :], cls_ref[0:1, :])  # (tile_rows, H)

    x = jnp.where(is_cls, cls_rows, type_rows)                     # (tile_rows, H)

    # --- pair_layer_norm (lane-dim reduction, f32) ---------------------------
    mu = jnp.mean(x, axis=-1, keepdims=True)
    d = x - mu
    var = jnp.mean(d * d, axis=-1, keepdims=True)
    pair = d * jax.lax.rsqrt(var + eps) * pair_g_ref[...] + pair_b_ref[...]

    # --- add pre-tiled batch-invariant embeddings term -----------------------
    out_ref[...] = pair + emb_ref[...]


def prev_pred_embeddings(cls_reason_results, type_weight, params, *,
                         eps=1e-12, batches_per_tile=32):
    """JAX wrapper reproducing PrevPredEmbeddings.forward (eval mode)."""
    B, S = cls_reason_results.shape
    assert S == MAX_DEC_LENGTH, "expand_as in the reference requires seq == 15"
    V, H = type_weight.shape
    tile_rows = batches_per_tile * S
    assert tile_rows % 8 == 0  # sublane alignment of the output tile

    cls_tab = params["cls_embeddings"].astype(jnp.float32)         # (2, H)
    tw = type_weight.astype(jnp.float32)                           # (V, H)

    # Pad batch to a multiple of batches_per_tile; padded indices point at row 0.
    B_pad = ((B + batches_per_tile - 1) // batches_per_tile) * batches_per_tile
    idx = cls_reason_results.astype(jnp.int32)
    if B_pad != B:
        idx = jnp.concatenate([idx, jnp.zeros((B_pad - B, S), jnp.int32)], 0)
    idx_flat = idx.reshape(B_pad * S, 1)                           # (n_rows, 1)

    # Batch-invariant embeddings term = LN(pos + tiled token_type); computed
    # once here, then pre-tiled to a full (tile_rows, H) slab so the kernel's
    # epilogue is a single add (no per-step broadcast/tile).
    pos = params["position_embeddings"][0].astype(jnp.float32)     # (15, H)
    tok = jnp.tile(params["token_type_embeddings"][0].astype(jnp.float32),
                   (MAX_DEC_GROUP, 1))                             # (15, H)
    pe = pos + tok
    mu = jnp.mean(pe, axis=-1, keepdims=True)
    var = jnp.mean((pe - mu) ** 2, axis=-1, keepdims=True)
    emb = ((pe - mu) * jax.lax.rsqrt(var + eps)
           * params["emb_ln_gamma"].astype(jnp.float32)
           + params["emb_ln_beta"].astype(jnp.float32))            # (15, H)
    emb_tile = jnp.tile(emb, (batches_per_tile, 1))                # (tile_rows, H)
    # TODO(synk): train-mode emb_dropout not implemented (eval identity).

    pair_g = params["pair_ln_gamma"].reshape(1, H).astype(jnp.float32)
    pair_b = params["pair_ln_beta"].reshape(1, H).astype(jnp.float32)

    n_tiles = B_pad // batches_per_tile
    n_rows = B_pad * S

    kernel = functools.partial(_prev_pred_emb_kernel, eps=eps,
                               tile_rows=tile_rows, vocab=V)

    # Explicit VMEM budget from actual operand sizes (resident table + emb +
    # LN params + double-buffered idx/out tiles + one-hot / LN temporaries),
    # with 2x headroom, floored at the 32 MiB default and capped at 64 MiB so
    # the scoped limit is valid on v7x as well as v5e/v6e.
    resident = ((2 + V) * H + tile_rows * H + 2 * H) * 4
    streamed = 2 * (tile_rows * H + tile_rows) * 4
    working = tile_rows * (V + 4 * H) * 4
    vmem_limit = int(min(max(32 << 20, 2 * (resident + streamed + working)),
                         64 << 20))

    out = pl.pallas_call(
        kernel,
        out_shape=jax.ShapeDtypeStruct((n_rows, H), jnp.float32),
        grid=(n_tiles,),
        in_specs=[
            pl.BlockSpec((tile_rows, 1), lambda t: (t, 0)),   # indices (streamed)
            pl.BlockSpec((2, H), lambda t: (0, 0)),           # cls table (resident)
            pl.BlockSpec((V, H), lambda t: (0, 0)),           # type_weight (resident)
            pl.BlockSpec((tile_rows, H), lambda t: (0, 0)),   # pre-tiled emb term
            pl.BlockSpec((1, H), lambda t: (0, 0)),           # pair LN gamma
            pl.BlockSpec((1, H), lambda t: (0, 0)),           # pair LN beta
        ],
        out_specs=pl.BlockSpec((tile_rows, H), lambda t: (t, 0)),
        compiler_params=pltpu.CompilerParams(
            dimension_semantics=("parallel",),
            vmem_limit_bytes=vmem_limit,
        ),
    )(idx_flat, cls_tab, tw, emb_tile, pair_g, pair_b)

    return out.reshape(B_pad, S, H)[:B]


def _reference(cls_reason_results, type_weight, params, *, eps=1e-12):
    """Pure-JAX reference mirroring the PyTorch forward (eval mode)."""
    B, S = cls_reason_results.shape
    H = type_weight.shape[-1]
    cls_tab = params["cls_embeddings"]
    cols = []
    for c in range(S):
        idx_c = cls_reason_results[:, c]
        if c % 3 == 0:
            cols.append(cls_tab[idx_c])
        else:
            cols.append(type_weight[idx_c])
    raw = jnp.stack(cols, axis=1)                                   # (B, S, H)

    def ln(x, g, b):
        mu = jnp.mean(x, axis=-1, keepdims=True)
        var = jnp.mean((x - mu) ** 2, axis=-1, keepdims=True)
        return (x - mu) / jnp.sqrt(var + eps) * g + b

    raw = ln(raw, params["pair_ln_gamma"], params["pair_ln_beta"])
    pos = jnp.broadcast_to(params["position_embeddings"], (B, S, H))
    tok = jnp.broadcast_to(jnp.tile(params["token_type_embeddings"], (1, 5, 1)),
                           (B, S, H))
    emb = ln(pos + tok, params["emb_ln_gamma"], params["emb_ln_beta"])
    return raw + emb


if __name__ == "__main__":
    B, S, H, V = 2, MAX_DEC_LENGTH, 32, 4

    key = jax.random.PRNGKey(0)
    k_cls, k_tok, k_pos, k_tw, k_i0, k_i1 = jax.random.split(key, 6)

    params = {
        "cls_embeddings": jax.random.normal(k_cls, (2, H), jnp.float32),
        "token_type_embeddings": jax.random.normal(k_tok, (1, MAX_TYPE_NUM, H),
                                                   jnp.float32) * 0.1,
        "position_embeddings": jax.random.normal(k_pos, (1, MAX_DEC_LENGTH, H),
                                                 jnp.float32) * 0.1,
        "pair_ln_gamma": jnp.ones((H,), jnp.float32),   # PyTorch LayerNorm default
        "pair_ln_beta": jnp.zeros((H,), jnp.float32),
        "emb_ln_gamma": jnp.ones((H,), jnp.float32),
        "emb_ln_beta": jnp.zeros((H,), jnp.float32),
    }
    type_weight = jax.random.normal(k_tw, (V, H), jnp.float32)

    # Build index matrix: cls columns (col % 3 == 0) index {0,1}, others index [0, V).
    cols = jnp.arange(S, dtype=jnp.int32)
    is_cls = (cols % 3 == 0)[None, :]
    cls_idx = jax.random.randint(k_i0, (B, S), 0, 2, dtype=jnp.int32)
    typ_idx = jax.random.randint(k_i1, (B, S), 0, V, dtype=jnp.int32)
    cls_reason_results = jnp.where(is_cls, cls_idx, typ_idx)

    run = jax.jit(lambda c, t: prev_pred_embeddings(c, t, params))
    out = jax.block_until_ready(run(cls_reason_results, type_weight))

    ref = _reference(cls_reason_results, type_weight, params)
    np.testing.assert_allclose(np.asarray(out), np.asarray(ref),
                               rtol=1e-5, atol=1e-5)
    print("KERNEL_OK")
</pallas_src>

<mosaic_0001>
module attributes {stable_mosaic.version = 11 : i64} {
  func.func @_prev_pred_emb_kernel(%arg0: i32, %arg1: memref<480x1xi32, #tpu.memory_space<vmem>>, %arg2: memref<2x32xf32, #tpu.memory_space<vmem>>, %arg3: memref<4x32xf32, #tpu.memory_space<vmem>>, %arg4: memref<480x32xf32, #tpu.memory_space<vmem>>, %arg5: memref<1x32xf32, #tpu.memory_space<vmem>>, %arg6: memref<1x32xf32, #tpu.memory_space<vmem>>, %arg7: memref<480x32xf32, #tpu.memory_space<vmem>>) attributes {dimension_semantics = [#tpu.dimension_semantics<parallel>], iteration_bounds = array<i64: 1>, scalar_prefetch = 0 : i64, scratch_operands = 0 : i64, tpu.core_type = #tpu.core_type<tc>, window_params = [{transform_indices = @transform_0, window_bounds = array<i64: 480, 1>}, {pipeline_mode = #tpu.pipeline_mode<synchronous>, transform_indices = @transform_1, window_bounds = array<i64: 2, 32>}, {pipeline_mode = #tpu.pipeline_mode<synchronous>, transform_indices = @transform_2, window_bounds = array<i64: 4, 32>}, {pipeline_mode = #tpu.pipeline_mode<synchronous>, transform_indices = @transform_3, window_bounds = array<i64: 480, 32>}, {pipeline_mode = #tpu.pipeline_mode<synchronous>, transform_indices = @transform_4, window_bounds = array<i64: 1, 32>}, {pipeline_mode = #tpu.pipeline_mode<synchronous>, transform_indices = @transform_5, window_bounds = array<i64: 1, 32>}, {transform_indices = @transform_6, window_bounds = array<i64: 480, 32>}]} {
    %c0 = arith.constant 0 : index
    %c0_0 = arith.constant 0 : index
    %0 = vector.load %arg1[%c0, %c0_0] : memref<480x1xi32, #tpu.memory_space<vmem>>, vector<480x1xi32>
    %1 = tpu.iota {dimensions = array<i32: 0>} : vector<480x1xi32>
    %c3_i32 = arith.constant 3 : i32
    %c0_i32 = arith.constant 0 : i32
    %2 = arith.cmpi eq, %c3_i32, %c0_i32 : i32
    %c1_i32 = arith.constant 1 : i32
    %3 = arith.select %2, %c1_i32, %c3_i32 : i32
    %4 = vector.broadcast %3 : i32 to vector<480x1xi32>
    %5 = arith.remsi %1, %4 : vector<480x1xi32>
    %c0_i32_1 = arith.constant 0 : i32
    %6 = vector.broadcast %c0_i32_1 : i32 to vector<480x1xi32>
    %7 = arith.cmpi ne, %5, %6 : vector<480x1xi32>
    %c0_i32_2 = arith.constant 0 : i32
    %8 = vector.broadcast %c0_i32_2 : i32 to vector<480x1xi32>
    %9 = arith.cmpi slt, %5, %8 : vector<480x1xi32>
    %c0_i32_3 = arith.constant 0 : i32
    %10 = arith.cmpi slt, %3, %c0_i32_3 : i32
    %11 = vector.broadcast %10 : i1 to vector<480x1xi1>
    %12 = vector.broadcast %11 : vector<480x1xi1> to vector<480x1xi1>
    %13 = arith.xori %9, %12 : vector<480x1xi1>
    %14 = arith.andi %13, %7 : vector<480x1xi1>
    %15 = vector.broadcast %3 : i32 to vector<480x1xi32>
    %16 = arith.addi %5, %15 : vector<480x1xi32>
    %17 = arith.select %14, %16, %5 : vector<480x1xi1>, vector<480x1xi32>
    %c0_i32_4 = arith.constant 0 : i32
    %18 = vector.broadcast %c0_i32_4 : i32 to vector<480x1xi32>
    %19 = arith.cmpi eq, %17, %18 : vector<480x1xi32>
    %20 = tpu.iota {dimensions = array<i32: 1>} : vector<480x4xi32>
    %21 = vector.broadcast %0 : vector<480x1xi32> to vector<480x4xi32>
    %22 = arith.cmpi eq, %20, %21 : vector<480x4xi32>
    %23 = arith.extui %22 : vector<480x4xi1> to vector<480x4xi32>
    %24 = arith.sitofp %23 : vector<480x4xi32> to vector<480x4xf32>
    %c0_5 = arith.constant 0 : index
    %c0_6 = arith.constant 0 : index
    %25 = vector.load %arg3[%c0_5, %c0_6] : memref<4x32xf32, #tpu.memory_space<vmem>>, vector<4x32xf32>
    %cst = arith.constant dense<0.000000e+00> : vector<480x32xf32>
    %26 = tpu.matmul %24, %25, %cst {dimension_numbers = #tpu.dot_dimension_numbers<[1], [0], [0], [1], [0, 0, 1, 1], [], []>} : vector<480x4xf32>, vector<4x32xf32>, vector<480x32xf32> -> vector<480x32xf32>
    %c1_i32_7 = arith.constant 1 : i32
    %27 = vector.broadcast %c1_i32_7 : i32 to vector<480x1xi32>
    %28 = arith.cmpi eq, %0, %27 : vector<480x1xi32>
    %c1 = arith.constant 1 : index
    %c0_8 = arith.constant 0 : index
    %29 = vector.load %arg2[%c1, %c0_8] : memref<2x32xf32, #tpu.memory_space<vmem>>, vector<1x32xf32>
    %c0_9 = arith.constant 0 : index
    %c0_10 = arith.constant 0 : index
    %30 = vector.load %arg2[%c0_9, %c0_10] : memref<2x32xf32, #tpu.memory_space<vmem>>, vector<1x32xf32>
    %31 = vector.shape_cast %28 : vector<480x1xi1> to vector<480x1xi1>
    %32 = vector.broadcast %31 : vector<480x1xi1> to vector<480x32xi1>
    %33 = vector.shape_cast %29 : vector<1x32xf32> to vector<1x32xf32>
    %34 = vector.broadcast %33 : vector<1x32xf32> to vector<480x32xf32>
    %35 = vector.shape_cast %30 : vector<1x32xf32> to vector<1x32xf32>
    %36 = vector.broadcast %35 : vector<1x32xf32> to vector<480x32xf32>
    %37 = arith.select %32, %34, %36 : vector<480x32xi1>, vector<480x32xf32>
    %38 = vector.shape_cast %19 : vector<480x1xi1> to vector<480x1xi1>
    %39 = vector.broadcast %38 : vector<480x1xi1> to vector<480x32xi1>
    %40 = arith.select %39, %37, %26 : vector<480x32xi1>, vector<480x32xf32>
    %cst_11 = arith.constant dense<0.000000e+00> : vector<480xf32>
    %41 = vector.multi_reduction <add>, %40, %cst_11 [1] : vector<480x32xf32> to vector<480xf32>
    %42 = vector.shape_cast %41 : vector<480xf32> to vector<480x1xf32>
    %cst_12 = arith.constant 3.200000e+01 : f32
    %43 = vector.broadcast %cst_12 : f32 to vector<480x1xf32>
    %44 = arith.divf %42, %43 : vector<480x1xf32>
    %45 = vector.broadcast %44 : vector<480x1xf32> to vector<480x32xf32>
    %46 = arith.subf %40, %45 : vector<480x32xf32>
    %47 = arith.mulf %46, %46 : vector<480x32xf32>
    %cst_13 = arith.constant dense<0.000000e+00> : vector<480xf32>
    %48 = vector.multi_reduction <add>, %47, %cst_13 [1] : vector<480x32xf32> to vector<480xf32>
    %49 = vector.shape_cast %48 : vector<480xf32> to vector<480x1xf32>
    %cst_14 = arith.constant 3.200000e+01 : f32
    %50 = vector.broadcast %cst_14 : f32 to vector<480x1xf32>
    %51 = arith.divf %49, %50 : vector<480x1xf32>
    %cst_15 = arith.constant 9.99999996E-13 : f32
    %52 = vector.broadcast %cst_15 : f32 to vector<480x1xf32>
    %53 = arith.addf %51, %52 : vector<480x1xf32>
    %54 = math.rsqrt %53 : vector<480x1xf32>
    %55 = vector.broadcast %54 : vector<480x1xf32> to vector<480x32xf32>
    %56 = arith.mulf %46, %55 : vector<480x32xf32>
    %c0_16 = arith.constant 0 : index
    %c0_17 = arith.constant 0 : index
    %57 = vector.load %arg5[%c0_16, %c0_17] : memref<1x32xf32, #tpu.memory_space<vmem>>, vector<1x32xf32>
    %58 = vector.broadcast %57 : vector<1x32xf32> to vector<480x32xf32>
    %59 = arith.mulf %56, %58 : vector<480x32xf32>
    %c0_18 = arith.constant 0 : index
    %c0_19 = arith.constant 0 : index
    %60 = vector.load %arg6[%c0_18, %c0_19] : memref<1x32xf32, #tpu.memory_space<vmem>>, vector<1x32xf32>
    %61 = vector.broadcast %60 : vector<1x32xf32> to vector<480x32xf32>
    %62 = arith.addf %59, %61 : vector<480x32xf32>
    %c0_20 = arith.constant 0 : index
    %c0_21 = arith.constant 0 : index
    %63 = vector.load %arg4[%c0_20, %c0_21] : memref<480x32xf32, #tpu.memory_space<vmem>>, vector<480x32xf32>
    %64 = arith.addf %62, %63 : vector<480x32xf32>
    %c0_22 = arith.constant 0 : index
    %c0_23 = arith.constant 0 : index
    %65 = vector.load %arg7[%c0_22, %c0_23] : memref<480x32xf32, #tpu.memory_space<vmem>>, vector<480x32xf32>
    tpu.vector_store %arg7[%c0_22, %c0_23], %64 {strides = array<i32>} : memref<480x32xf32, #tpu.memory_space<vmem>>, vector<480x32xf32>,
    return
  }
  func.func @transform_0(%arg0: i32) -> (i32, i32) {
    %c0_i32 = arith.constant 0 : i32
    %c0_i32_0 = arith.constant 0 : i32
    return %arg0, %c0_i32 : i32, i32
  }
  func.func @transform_1(%arg0: i32) -> (i32, i32) {
    %c0_i32 = arith.constant 0 : i32
    %c0_i32_0 = arith.constant 0 : i32
    %c0_i32_1 = arith.constant 0 : i32
    return %c0_i32, %c0_i32_0 : i32, i32
  }
  func.func @transform_2(%arg0: i32) -> (i32, i32) {
    %c0_i32 = arith.constant 0 : i32
    %c0_i32_0 = arith.constant 0 : i32
    %c0_i32_1 = arith.constant 0 : i32
    return %c0_i32, %c0_i32_0 : i32, i32
  }
  func.func @transform_3(%arg0: i32) -> (i32, i32) {
    %c0_i32 = arith.constant 0 : i32
    %c0_i32_0 = arith.constant 0 : i32
    %c0_i32_1 = arith.constant 0 : i32
    return %c0_i32, %c0_i32_0 : i32, i32
  }
  func.func @transform_4(%arg0: i32) -> (i32, i32) {
    %c0_i32 = arith.constant 0 : i32
    %c0_i32_0 = arith.constant 0 : i32
    %c0_i32_1 = arith.constant 0 : i32
    return %c0_i32, %c0_i32_0 : i32, i32
  }
  func.func @transform_5(%arg0: i32) -> (i32, i32) {
    %c0_i32 = arith.constant 0 : i32
    %c0_i32_0 = arith.constant 0 : i32
    %c0_i32_1 = arith.constant 0 : i32
    return %c0_i32, %c0_i32_0 : i32, i32
  }
  func.func @transform_6(%arg0: i32) -> (i32, i32) {
    %c0_i32 = arith.constant 0 : i32
    %c0_i32_0 = arith.constant 0 : i32
    return %arg0, %c0_i32 : i32, i32
  }
}

</mosaic_0001>

<llo_original>
// kernel: tile.17
$region0: #{tile.17}
  %s0 = inlined_call_operand.vmem [shape: f32[32,15,32], index: 0, kind: input, shape index: {}]
  %s1 = inlined_call_operand.vmem [shape: f32[480,32], index: 1, kind: output, shape index: {}]
  %v2 = vld [vmem:[%s0] sm:$0xff]
  %vm3 = vcmask 261120
  %4 = vst.msk [vmem:[%s1] sm:$0xff] %vm3, %v2
  %s5 = scalar_lea.vmem %s0, 8
  %v6 = vld [vmem:[%s5] sm:$0x7f]
  %vm7 = vcmask 261120
  %s8 = scalar_lea.vmem %s1, 8
  %9 = vst.msk [vmem:[%s8] sm:$0x7f] %vm7, %v6
  %s10 = scalar_lea.vmem %s0, 16
  %v11 = vld [vmem:[%s10] sm:$0xff]
  %vm12 = vcmask 261120
  %s13 = scalar_lea.vmem %s1, 15
  %14 = vst.msk [vmem:[%s13] sm:$0xff] %vm12, %v11
  %s15 = scalar_lea.vmem %s0, 24
  %v16 = vld [vmem:[%s15] sm:$0x7f]
  %vm17 = vcmask 261120
  %s18 = scalar_lea.vmem %s1, 23
  %19 = vst.msk [vmem:[%s18] sm:$0x7f] %vm17, %v16
  %s20 = scalar_lea.vmem %s0, 32
  %v21 = vld [vmem:[%s20] sm:$0xff]
  %vm22 = vcmask 261120
  %s23 = scalar_lea.vmem %s1, 30
  %24 = vst.msk [vmem:[%s23] sm:$0xff] %vm22, %v21
  %s25 = scalar_lea.vmem %s0, 40
  %v26 = vld [vmem:[%s25] sm:$0x7f]
  %vm27 = vcmask 261120
  %s28 = scalar_lea.vmem %s1, 38
  %29 = vst.msk [vmem:[%s28] sm:$0x7f] %vm27, %v26
  %s30 = scalar_lea.vmem %s0, 48
  %v31 = vld [vmem:[%s30] sm:$0xff]
  %vm32 = vcmask 261120
  %s33 = scalar_lea.vmem %s1, 45
  %34 = vst.msk [vmem:[%s33] sm:$0xff] %vm32, %v31
  %s35 = scalar_lea.vmem %s0, 56
  %v36 = vld [vmem:[%s35] sm:$0x7f]
  %vm37 = vcmask 261120
  %s38 = scalar_lea.vmem %s1, 53
  %39 = vst.msk [vmem:[%s38] sm:$0x7f] %vm37, %v36
  %s40 = scalar_lea.vmem %s0, 64
  %v41 = vld [vmem:[%s40] sm:$0xff]
  %vm42 = vcmask 261120
  %s43 = scalar_lea.vmem %s1, 60
  %44 = vst.msk [vmem:[%s43] sm:$0xff] %vm42, %v41
  %s45 = scalar_lea.vmem %s0, 72
  %v46 = vld [vmem:[%s45] sm:$0x7f]
  %vm47 = vcmask 261120
  %s48 = scalar_lea.vmem %s1, 68
  %49 = vst.msk [vmem:[%s48] sm:$0x7f] %vm47, %v46
  %s50 = scalar_lea.vmem %s0, 80
  %v51 = vld [vmem:[%s50] sm:$0xff]
  %vm52 = vcmask 261120
  %s53 = scalar_lea.vmem %s1, 75
  %54 = vst.msk [vmem:[%s53] sm:$0xff] %vm52, %v51
  %s55 = scalar_lea.vmem %s0, 88
  %v56 = vld [vmem:[%s55] sm:$0x7f]
  %vm57 = vcmask 261120
  %s58 = scalar_lea.vmem %s1, 83
  %59 = vst.msk [vmem:[%s58] sm:$0x7f] %vm57, %v56
  %s60 = scalar_lea.vmem %s0, 96
  %v61 = vld [vmem:[%s60] sm:$0xff]
  %vm62 = vcmask 261120
  %s63 = scalar_lea.vmem %s1, 90
  %64 = vst.msk [vmem:[%s63] sm:$0xff] %vm62, %v61
  %s65 = scalar_lea.vmem %s0, 104
  %v66 = vld [vmem:[%s65] sm:$0x7f]
  %vm67 = vcmask 261120
  %s68 = scalar_lea.vmem %s1, 98
  %69 = vst.msk [vmem:[%s68] sm:$0x7f] %vm67, %v66
  %s70 = scalar_lea.vmem %s0, 112
  %v71 = vld [vmem:[%s70] sm:$0xff]
  %vm72 = vcmask 261120
  %s73 = scalar_lea.vmem %s1, 105
  %74 = vst.msk [vmem:[%s73] sm:$0xff] %vm72, %v71
  %s75 = scalar_lea.vmem %s0, 120
  %v76 = vld [vmem:[%s75] sm:$0x7f]
  %vm77 = vcmask 261120
  %s78 = scalar_lea.vmem %s1, 113
  %79 = vst.msk [vmem:[%s78] sm:$0x7f] %vm77, %v76
  %s80 = scalar_lea.vmem %s0, 128
  %v81 = vld [vmem:[%s80] sm:$0xff]
  %vm82 = vcmask 261120
  %s83 = scalar_lea.vmem %s1, 120
  %84 = vst.msk [vmem:[%s83] sm:$0xff] %vm82, %v81
  %s85 = scalar_lea.vmem %s0, 136
  %v86 = vld [vmem:[%s85] sm:$0x7f]
  %vm87 = vcmask 261120
  %s88 = scalar_lea.vmem %s1, 128
  %89 = vst.msk [vmem:[%s88] sm:$0x7f] %vm87, %v86
  %s90 = scalar_lea.vmem %s0, 144
  %v91 = vld [vmem:[%s90] sm:$0xff]
  %vm92 = vcmask 261120
  %s93 = scalar_lea.vmem %s1, 135
  %94 = vst.msk [vmem:[%s93] sm:$0xff] %vm92, %v91
  %s95 = scalar_lea.vmem %s0, 152
  %v96 = vld [vmem:[%s95] sm:$0x7f]
  %vm97 = vcmask 261120
  %s98 = scalar_lea.vmem %s1, 143
  %99 = vst.msk [vmem:[%s98] sm:$0x7f] %vm97, %v96
  %s100 = scalar_lea.vmem %s0, 160
  %v101 = vld [vmem:[%s100] sm:$0xff]
  %vm102 = vcmask 261120
  %s103 = scalar_lea.vmem %s1, 150
  %104 = vst.msk [vmem:[%s103] sm:$0xff] %vm102, %v101
  %s105 = scalar_lea.vmem %s0, 168
  %v106 = vld [vmem:[%s105] sm:$0x7f]
  %vm107 = vcmask 261120
  %s108 = scalar_lea.vmem %s1, 158
  %109 = vst.msk [vmem:[%s108] sm:$0x7f] %vm107, %v106
  %s110 = scalar_lea.vmem %s0, 176
  %v111 = vld [vmem:[%s110] sm:$0xff]
  %vm112 = vcmask 261120
  %s113 = scalar_lea.vmem %s1, 165
  %114 = vst.msk [vmem:[%s113] sm:$0xff] %vm112, %v111
  %s115 = scalar_lea.vmem %s0, 184
  %v116 = vld [vmem:[%s115] sm:$0x7f]
  %vm117 = vcmask 261120
  %s118 = scalar_lea.vmem %s1, 173
  %119 = vst.msk [vmem:[%s118] sm:$0x7f] %vm117, %v116
  %s120 = scalar_lea.vmem %s0, 192
  %v121 = vld [vmem:[%s120] sm:$0xff]
  %vm122 = vcmask 261120
  %s123 = scalar_lea.vmem %s1, 180
  %124 = vst.msk [vmem:[%s123] sm:$0xff] %vm122, %v121
  %s125 = scalar_lea.vmem %s0, 200
  %v126 = vld [vmem:[%s125] sm:$0x7f]
  %vm127 = vcmask 261120
  %s128 = scalar_lea.vmem %s1, 188
  %129 = vst.msk [vmem:[%s128] sm:$0x7f] %vm127, %v126
  %s130 = scalar_lea.vmem %s0, 208
  %v131 = vld [vmem:[%s130] sm:$0xff]
  %vm132 = vcmask 261120
  %s133 = scalar_lea.vmem %s1, 195
  %134 = vst.msk [vmem:[%s133] sm:$0xff] %vm132, %v131
  %s135 = scalar_lea.vmem %s0, 216
  %v136 = vld [vmem:[%s135] sm:$0x7f]
  %vm137 = vcmask 261120
  %s138 = scalar_lea.vmem %s1, 203
  %139 = vst.msk [vmem:[%s138] sm:$0x7f] %vm137, %v136
  %s140 = scalar_lea.vmem %s0, 224
  %v141 = vld [vmem:[%s140] sm:$0xff]
  %vm142 = vcmask 261120
  %s143 = scalar_lea.vmem %s1, 210
  %144 = vst.msk [vmem:[%s143] sm:$0xff] %vm142, %v141
  %s145 = scalar_lea.vmem %s0, 232
  %v146 = vld [vmem:[%s145] sm:$0x7f]
  %vm147 = vcmask 261120
  %s148 = scalar_lea.vmem %s1, 218
  %149 = vst.msk [vmem:[%s148] sm:$0x7f] %vm147, %v146
  %s150 = scalar_lea.vmem %s0, 240
  %v151 = vld [vmem:[%s150] sm:$0xff]
  %vm152 = vcmask 261120
  %s153 = scalar_lea.vmem %s1, 225
  %154 = vst.msk [vmem:[%s153] sm:$0xff] %vm152, %v151
  %s155 = scalar_lea.vmem %s0, 248
  %v156 = vld [vmem:[%s155] sm:$0x7f]
  %vm157 = vcmask 261120
  %s158 = scalar_lea.vmem %s1, 233
  %159 = vst.msk [vmem:[%s158] sm:$0x7f] %vm157, %v156
  %s160 = scalar_lea.vmem %s0, 256
  %v161 = vld [vmem:[%s160] sm:$0xff]
  %vm162 = vcmask 261120
  %s163 = scalar_lea.vmem %s1, 240
  %164 = vst.msk [vmem:[%s163] sm:$0xff] %vm162, %v161
  %s165 = scalar_lea.vmem %s0, 264
  %v166 = vld [vmem:[%s165] sm:$0x7f]
  %vm167 = vcmask 261120
  %s168 = scalar_lea.vmem %s1, 248
  %169 = vst.msk [vmem:[%s168] sm:$0x7f] %vm167, %v166
  %s170 = scalar_lea.vmem %s0, 272
  %v171 = vld [vmem:[%s170] sm:$0xff]
  %vm172 = vcmask 261120
  %s173 = scalar_lea.vmem %s1, 255
  %174 = vst.msk [vmem:[%s173] sm:$0xff] %vm172, %v171
  %s175 = scalar_lea.vmem %s0, 280
  %v176 = vld [vmem:[%s175] sm:$0x7f]
  %vm177 = vcmask 261120
  %s178 = scalar_lea.vmem %s1, 263
  %179 = vst.msk [vmem:[%s178] sm:$0x7f] %vm177, %v176
  %s180 = scalar_lea.vmem %s0, 288
  %v181 = vld [vmem:[%s180] sm:$0xff]
  %vm182 = vcmask 261120
  %s183 = scalar_lea.vmem %s1, 270
  %184 = vst.msk [vmem:[%s183] sm:$0xff] %vm182, %v181
  %s185 = scalar_lea.vmem %s0, 296
  %v186 = vld [vmem:[%s185] sm:$0x7f]
  %vm187 = vcmask 261120
  %s188 = scalar_lea.vmem %s1, 278
  %189 = vst.msk [vmem:[%s188] sm:$0x7f] %vm187, %v186
  %s190 = scalar_lea.vmem %s0, 304
  %v191 = vld [vmem:[%s190] sm:$0xff]
  %vm192 = vcmask 261120
  %s193 = scalar_lea.vmem %s1, 285
  %194 = vst.msk [vmem:[%s193] sm:$0xff] %vm192, %v191
  %s195 = scalar_lea.vmem %s0, 312
  %v196 = vld [vmem:[%s195] sm:$0x7f]
  %vm197 = vcmask 261120
  %s198 = scalar_lea.vmem %s1, 293
  %199 = vst.msk [vmem:[%s198] sm:$0x7f] %vm197, %v196
  %s200 = scalar_lea.vmem %s0, 320
  %v201 = vld [vmem:[%s200] sm:$0xff]
  %vm202 = vcmask 261120
  %s203 = scalar_lea.vmem %s1, 300
  %204 = vst.msk [vmem:[%s203] sm:$0xff] %vm202, %v201
  %s205 = scalar_lea.vmem %s0, 328
  %v206 = vld [vmem:[%s205] sm:$0x7f]
  %vm207 = vcmask 261120
  %s208 = scalar_lea.vmem %s1, 308
  %209 = vst.msk [vmem:[%s208] sm:$0x7f] %vm207, %v206
  %s210 = scalar_lea.vmem %s0, 336
  %v211 = vld [vmem:[%s210] sm:$0xff]
  %vm212 = vcmask 261120
  %s213 = scalar_lea.vmem %s1, 315
  %214 = vst.msk [vmem:[%s213] sm:$0xff] %vm212, %v211
  %s215 = scalar_lea.vmem %s0, 344
  %v216 = vld [vmem:[%s215] sm:$0x7f]
  %vm217 = vcmask 261120
  %s218 = scalar_lea.vmem %s1, 323
  %219 = vst.msk [vmem:[%s218] sm:$0x7f] %vm217, %v216
  %s220 = scalar_lea.vmem %s0, 352
  %v221 = vld [vmem:[%s220] sm:$0xff]
  %vm222 = vcmask 261120
  %s223 = scalar_lea.vmem %s1, 330
  %224 = vst.msk [vmem:[%s223] sm:$0xff] %vm222, %v221
  %s225 = scalar_lea.vmem %s0, 360
  %v226 = vld [vmem:[%s225] sm:$0x7f]
  %vm227 = vcmask 261120
  %s228 = scalar_lea.vmem %s1, 338
  %229 = vst.msk [vmem:[%s228] sm:$0x7f] %vm227, %v226
  %s230 = scalar_lea.vmem %s0, 368
  %v231 = vld [vmem:[%s230] sm:$0xff]
  %vm232 = vcmask 261120
  %s233 = scalar_lea.vmem %s1, 345
  %234 = vst.msk [vmem:[%s233] sm:$0xff] %vm232, %v231
  %s235 = scalar_lea.vmem %s0, 376
  %v236 = vld [vmem:[%s235] sm:$0x7f]
  %vm237 = vcmask 261120
  %s238 = scalar_lea.vmem %s1, 353
  %239 = vst.msk [vmem:[%s238] sm:$0x7f] %vm237, %v236
  %s240 = scalar_lea.vmem %s0, 384
  %v241 = vld [vmem:[%s240] sm:$0xff]
  %vm242 = vcmask 261120
  %s243 = scalar_lea.vmem %s1, 360
  %244 = vst.msk [vmem:[%s243] sm:$0xff] %vm242, %v241
  %s245 = scalar_lea.vmem %s0, 392
  %v246 = vld [vmem:[%s245] sm:$0x7f]
  %vm247 = vcmask 261120
  %s248 = scalar_lea.vmem %s1, 368
  %249 = vst.msk [vmem:[%s248] sm:$0x7f] %vm247, %v246
  %s250 = scalar_lea.vmem %s0, 400
  %v251 = vld [vmem:[%s250] sm:$0xff]
  %vm252 = vcmask 261120
  %s253 = scalar_lea.vmem %s1, 375
  %254 = vst.msk [vmem:[%s253] sm:$0xff] %vm252, %v251
  %s255 = scalar_lea.vmem %s0, 408
  %v256 = vld [vmem:[%s255] sm:$0x7f]
  %vm257 = vcmask 261120
  %s258 = scalar_lea.vmem %s1, 383
  %259 = vst.msk [vmem:[%s258] sm:$0x7f] %vm257, %v256
  %s260 = scalar_lea.vmem %s0, 416
  %v261 = vld [vmem:[%s260] sm:$0xff]
  %vm262 = vcmask 261120
  %s263 = scalar_lea.vmem %s1, 390
  %264 = vst.msk [vmem:[%s263] sm:$0xff] %vm262, %v261
  %s265 = scalar_lea.vmem %s0, 424
  %v266 = vld [vmem:[%s265] sm:$0x7f]
  %vm267 = vcmask 261120
  %s268 = scalar_lea.vmem %s1, 398
  %269 = vst.msk [vmem:[%s268] sm:$0x7f] %vm267, %v266
  %s270 = scalar_lea.vmem %s0, 432
  %v271 = vld [vmem:[%s270] sm:$0xff]
  %vm272 = vcmask 261120
  %s273 = scalar_lea.vmem %s1, 405
  %274 = vst.msk [vmem:[%s273] sm:$0xff] %vm272, %v271
  %s275 = scalar_lea.vmem %s0, 440
  %v276 = vld [vmem:[%s275] sm:$0x7f]
  %vm277 = vcmask 261120
  %s278 = scalar_lea.vmem %s1, 413
  %279 = vst.msk [vmem:[%s278] sm:$0x7f] %vm277, %v276
  %s280 = scalar_lea.vmem %s0, 448
  %v281 = vld [vmem:[%s280] sm:$0xff]
  %vm282 = vcmask 261120
  %s283 = scalar_lea.vmem %s1, 420
  %284 = vst.msk [vmem:[%s283] sm:$0xff] %vm282, %v281
  %s285 = scalar_lea.vmem %s0, 456
  %v286 = vld [vmem:[%s285] sm:$0x7f]
  %vm287 = vcmask 261120
  %s288 = scalar_lea.vmem %s1, 428
  %289 = vst.msk [vmem:[%s288] sm:$0x7f] %vm287, %v286
  %s290 = scalar_lea.vmem %s0, 464
  %v291 = vld [vmem:[%s290] sm:$0xff]
  %vm292 = vcmask 261120
  %s293 = scalar_lea.vmem %s1, 435
  %294 = vst.msk [vmem:[%s293] sm:$0xff] %vm292, %v291
  %s295 = scalar_lea.vmem %s0, 472
  %v296 = vld [vmem:[%s295] sm:$0x7f]
  %vm297 = vcmask 261120
  %s298 = scalar_lea.vmem %s1, 443
  %299 = vst.msk [vmem:[%s298] sm:$0x7f] %vm297, %v296
  %s300 = scalar_lea.vmem %s0, 480
  %v301 = vld [vmem:[%s300] sm:$0xff]
  %vm302 = vcmask 261120
  %s303 = scalar_lea.vmem %s1, 450
  %304 = vst.msk [vmem:[%s303] sm:$0xff] %vm302, %v301
  %s305 = scalar_lea.vmem %s0, 488
  %v306 = vld [vmem:[%s305] sm:$0x7f]
  %vm307 = vcmask 261120
  %s308 = scalar_lea.vmem %s1, 458
  %309 = vst.msk [vmem:[%s308] sm:$0x7f] %vm307, %v306
  %s310 = scalar_lea.vmem %s0, 496
  %v311 = vld [vmem:[%s310] sm:$0xff]
  %vm312 = vcmask 261120
  %s313 = scalar_lea.vmem %s1, 465
  %314 = vst.msk [vmem:[%s313] sm:$0xff] %vm312, %v311
  %s315 = scalar_lea.vmem %s0, 504
  %v316 = vld [vmem:[%s315] sm:$0x7f]
  %vm317 = vcmask 261120
  %s318 = scalar_lea.vmem %s1, 473
  %319 = vst.msk [vmem:[%s318] sm:$0x7f] %vm317, %v316

// kernel: _lambda_.1
$region0: #{_lambda_.1}
  #allocation0 [shape = 'u32[]', space=smem, size = 0x4, offset = 0x4, fixed_abs, tag = 'smem constant byte address 0x4 - core index']
  #allocation1 [shape = 'u32[144,128]{1,0:T(1,128)}', space=vmem, size = 0x12000, scoped, tag = 'internal scratch']
  %s0 = inlined_call_operand.vmem [shape: s32[480,1], index: 0, kind: input, shape index: {}]
  %s1 = inlined_call_operand.vmem [shape: f32[2,32], index: 1, kind: input, shape index: {}]
  %s2 = inlined_call_operand.vmem [shape: f32[4,32], index: 2, kind: input, shape index: {}]
  %s3 = inlined_call_operand.vmem [shape: f32[480,32], index: 3, kind: input, shape index: {}]
  %s4 = inlined_call_operand.vmem [shape: f32[1,32], index: 4, kind: input, shape index: {}]
  %s5 = inlined_call_operand.vmem [shape: f32[1,32], index: 5, kind: input, shape index: {}]
  %s6 = inlined_call_operand.vmem [shape: f32[480,32], index: 6, kind: output, shape index: {}]
  %s7 = sld [smem:[#allocation0]]
  $region34: #{_lambda_.1} parent=0
    _
  %s9 = ssub.s32 1, %s7
  %s10 = scalar_select 0, %s9, %s7
  // Predicated region
  $region2: #{_lambda_.1} parent=0 // pred_check
    _
  $region3: #{_lambda_.1} parent=0 // pred_check_branch
    %12 = sbr.rel (0) target = $region5
  $region4: #{_lambda_.1} parent=0 // pred_region
    _
  $region5: #{_lambda_.1} parent=0 // pred_fallthru
    _
  // Predicated region
  $region6: #{_lambda_.1} parent=0 // pred_check
    _
  $region7: #{_lambda_.1} parent=0 // pred_check_branch
    %14 = sbr.rel (0) target = $region9
  $region8: #{_lambda_.1} parent=0 // pred_region
    _
  $region9: #{_lambda_.1} parent=0 // pred_fallthru
    _
  // Predicated region
  $region10: #{_lambda_.1} parent=0 // pred_check
    _
  $region11: #{_lambda_.1} parent=0 // pred_check_branch
    %16 = sbr.rel (0) target = $region13
  $region12: #{_lambda_.1} parent=0 // pred_region
    _
  $region13: #{_lambda_.1} parent=0 // pred_fallthru
    _
  // Predicated region
  $region14: #{_lambda_.1} parent=0 // pred_check
    _
  $region15: #{_lambda_.1} parent=0 // pred_check_branch
    %18 = sbr.rel (0) target = $region17
  $region16: #{_lambda_.1} parent=0 // pred_region
    _
  $region17: #{_lambda_.1} parent=0 // pred_fallthru
    _
  // Predicated region
  $region18: #{_lambda_.1} parent=0 // pred_check
    _
  $region19: #{_lambda_.1} parent=0 // pred_check_branch
    %20 = sbr.rel (0) target = $region21
  $region20: #{_lambda_.1} parent=0 // pred_region
    _
  $region21: #{_lambda_.1} parent=0 // pred_fallthru
    _
  // Predicated region
  $region22: #{_lambda_.1} parent=0 // pred_check
    _
  $region23: #{_lambda_.1} parent=0 // pred_check_branch
    %22 = sbr.rel (0) target = $region25
  $region24: #{_lambda_.1} parent=0 // pred_region
    _
  $region25: #{_lambda_.1} parent=0 // pred_fallthru
    _
  %v23 = vld [vmem:[%s0] sm:$0xff]
  %v24 = vld [vmem:[%s0 + $0x8] sm:$0xff]
  %v25 = vld [vmem:[%s0 + $0x10] sm:$0xff]
  %v26 = vld [vmem:[%s0 + $0x18] sm:$0xff]
  %v27 = vld [vmem:[%s0 + $0x20] sm:$0xff]
  %v28 = vld [vmem:[%s0 + $0x28] sm:$0xff]
  %v29 = vld [vmem:[%s0 + $0x30] sm:$0xff]
  %v30 = vld [vmem:[%s0 + $0x38] sm:$0xff]
  %v31 = vld [vmem:[%s0 + $0x40] sm:$0xff]
  %v32 = vld [vmem:[%s0 + $0x48] sm:$0xff]
  %v33 = vld [vmem:[%s0 + $0x50] sm:$0xff]
  %v34 = vld [vmem:[%s0 + $0x58] sm:$0xff]
  %v35 = vld [vmem:[%s0 + $0x60] sm:$0xff]
  %v36 = vld [vmem:[%s0 + $0x68] sm:$0xff]
  %v37 = vld [vmem:[%s0 + $0x70] sm:$0xff]
  %v38 = vld [vmem:[%s0 + $0x78] sm:$0xff]
  %v39 = vld [vmem:[%s0 + $0x80] sm:$0xff]
  %v40 = vld [vmem:[%s0 + $0x88] sm:$0xff]
  %v41 = vld [vmem:[%s0 + $0x90] sm:$0xff]
  %v42 = vld [vmem:[%s0 + $0x98] sm:$0xff]
  %v43 = vld [vmem:[%s0 + $0xa0] sm:$0xff]
  %v44 = vld [vmem:[%s0 + $0xa8] sm:$0xff]
  %v45 = vld [vmem:[%s0 + $0xb0] sm:$0xff]
  %v46 = vld [vmem:[%s0 + $0xb8] sm:$0xff]
  %v47 = vld [vmem:[%s0 + $0xc0] sm:$0xff]
  %v48 = vld [vmem:[%s0 + $0xc8] sm:$0xff]
  %v49 = vld [vmem:[%s0 + $0xd0] sm:$0xff]
  %v50 = vld [vmem:[%s0 + $0xd8] sm:$0xff]
  %v51 = vld [vmem:[%s0 + $0xe0] sm:$0xff]
  %v52 = vld [vmem:[%s0 + $0xe8] sm:$0xff]
  %v53 = vld [vmem:[%s0 + $0xf0] sm:$0xff]
  %v54 = vld [vmem:[%s0 + $0xf8] sm:$0xff]
  %v55 = vld [vmem:[%s0 + $0x100] sm:$0xff]
  %v56 = vld [vmem:[%s0 + $0x108] sm:$0xff]
  %v57 = vld [vmem:[%s0 + $0x110] sm:$0xff]
  %v58 = vld [vmem:[%s0 + $0x118] sm:$0xff]
  %v59 = vld [vmem:[%s0 + $0x120] sm:$0xff]
  %v60 = vld [vmem:[%s0 + $0x128] sm:$0xff]
  %v61 = vld [vmem:[%s0 + $0x130] sm:$0xff]
  %v62 = vld [vmem:[%s0 + $0x138] sm:$0xff]
  %v63 = vld [vmem:[%s0 + $0x140] sm:$0xff]
  %v64 = vld [vmem:[%s0 + $0x148] sm:$0xff]
  %v65 = vld [vmem:[%s0 + $0x150] sm:$0xff]
  %v66 = vld [vmem:[%s0 + $0x158] sm:$0xff]
  %v67 = vld [vmem:[%s0 + $0x160] sm:$0xff]
  %v68 = vld [vmem:[%s0 + $0x168] sm:$0xff]
  %v69 = vld [vmem:[%s0 + $0x170] sm:$0xff]
  %v70 = vld [vmem:[%s0 + $0x178] sm:$0xff]
  %v71 = vld [vmem:[%s0 + $0x180] sm:$0xff]
  %v72 = vld [vmem:[%s0 + $0x188] sm:$0xff]
  %v73 = vld [vmem:[%s0 + $0x190] sm:$0xff]
  %v74 = vld [vmem:[%s0 + $0x198] sm:$0xff]
  %v75 = vld [vmem:[%s0 + $0x1a0] sm:$0xff]
  %v76 = vld [vmem:[%s0 + $0x1a8] sm:$0xff]
  %v77 = vld [vmem:[%s0 + $0x1b0] sm:$0xff]
  %v78 = vld [vmem:[%s0 + $0x1b8] sm:$0xff]
  %v79 = vld [vmem:[%s0 + $0x1c0] sm:$0xff]
  %v80 = vld [vmem:[%s0 + $0x1c8] sm:$0xff]
  %v81 = vld [vmem:[%s0 + $0x1d0] sm:$0xff]
  %v82 = vld [vmem:[%s0 + $0x1d8] sm:$0xff]
  %v83 = vlaneseq
  %v84 = vshrl.u32 %v83, 7
  %v85 = vadd.s32 %v84, 8
  %v86 = vadd.s32 %v84, 16
  %v87 = vadd.s32 %v84, 24
  %v88 = vadd.s32 %v84, 32
  %v89 = vadd.s32 %v84, 40
  %v90 = vadd.s32 %v84, 48
  %v91 = vadd.s32 %v84, 56
  %v92 = vadd.s32 %v84, 64
  %v93 = vadd.s32 %v84, 72
  %v94 = vadd.s32 %v84, 80
  %v95 = vadd.s32 %v84, 88
  %v96 = vadd.s32 %v84, 96
  %v97 = vadd.s32 %v84, 104
  %v98 = vadd.s32 %v84, 112
  %v99 = vadd.s32 %v84, 120
  %v100 = vadd.s32 %v84, 128
  %v101 = vadd.s32 %v84, 136
  %v102 = vadd.s32 %v84, 144
  %v103 = vadd.s32 %v84, 152
  %v104 = vadd.s32 %v84, 160
  %v105 = vadd.s32 %v84, 168
  %v106 = vadd.s32 %v84, 176
  %v107 = vadd.s32 %v84, 184
  %v108 = vadd.s32 %v84, 192
  %v109 = vadd.s32 %v84, 200
  %v110 = vadd.s32 %v84, 208
  %v111 = vadd.s32 %v84, 216
  %v112 = vadd.s32 %v84, 224
  %v113 = vadd.s32 %v84, 232
  %v114 = vadd.s32 %v84, 240
  %v115 = vadd.s32 %v84, 248
  %v116 = vadd.s32 %v84, 256
  %v117 = vadd.s32 %v84, 264
  %v118 = vadd.s32 %v84, 272
  %v119 = vadd.s32 %v84, 280
  %v120 = vadd.s32 %v84, 288
  %v121 = vadd.s32 %v84, 296
  %v122 = vadd.s32 %v84, 304
  %v123 = vadd.s32 %v84, 312
  %v124 = vadd.s32 %v84, 320
  %v125 = vadd.s32 %v84, 328
  %v126 = vadd.s32 %v84, 336
  %v127 = vadd.s32 %v84, 344
  %v128 = vadd.s32 %v84, 352
  %v129 = vadd.s32 %v84, 360
  %v130 = vadd.s32 %v84, 368
  %v131 = vadd.s32 %v84, 376
  %v132 = vadd.s32 %v84, 384
  %v133 = vadd.s32 %v84, 392
  %v134 = vadd.s32 %v84, 400
  %v135 = vadd.s32 %v84, 408
  %v136 = vadd.s32 %v84, 416
  %v137 = vadd.s32 %v84, 424
  %v138 = vadd.s32 %v84, 432
  %v139 = vadd.s32 %v84, 440
  %v140 = vadd.s32 %v84, 448
  %v141 = vadd.s32 %v84, 456
  %v142 = vadd.s32 %v84, 464
  %v143 = vadd.s32 %v84, 472
  %vm144 = vcmp.lt.s32.totalorder %v84, 0
  %v145 = vsub.s32 0, %v84
  %v146 = vsel %vm144, %v145, %v84
  %v147 = vmul.u32.u64.compose %v146, 2863311531
  %v148 = vextract.low.u32 %v147
  %v149 = vextract.high.u32 %v147
  %v150 = vshrl.u32 %v149, 1
  %v151 = vmul.u32 %v150, 3
  %v152 = vsub.s32 %v146, %v151
  %v153 = vsub.s32 0, %v152
  %v154 = vsel %vm144, %v153, %v152
  %vm155 = vcmp.lt.s32.totalorder %v85, 0
  %v156 = vsub.s32 0, %v85
  %v157 = vsel %vm155, %v156, %v85
  %v158 = vmul.u32.u64.compose %v157, 2863311531
  %v159 = vextract.low.u32 %v158
  %v160 = vextract.high.u32 %v158
  %v161 = vshrl.u32 %v160, 1
  %v162 = vmul.u32 %v161, 3
  %v163 = vsub.s32 %v157, %v162
  %v164 = vsub.s32 0, %v163
  %v165 = vsel %vm155, %v164, %v163
  %vm166 = vcmp.lt.s32.totalorder %v86, 0
  %v167 = vsub.s32 0, %v86
  %v168 = vsel %vm166, %v167, %v86
  %v169 = vmul.u32.u64.compose %v168, 2863311531
  %v170 = vextract.low.u32 %v169
  %v171 = vextract.high.u32 %v169
  %v172 = vshrl.u32 %v171, 1
  %v173 = vmul.u32 %v172, 3
  %v174 = vsub.s32 %v168, %v173
  %v175 = vsub.s32 0, %v174
  %v176 = vsel %vm166, %v175, %v174
  %vm177 = vcmp.lt.s32.totalorder %v87, 0
  %v178 = vsub.s32 0, %v87
  %v179 = vsel %vm177, %v178, %v87
  %v180 = vmul.u32.u64.compose %v179, 2863311531
  %v181 = vextract.low.u32 %v180
  %v182 = vextract.high.u32 %v180
  %v183 = vshrl.u32 %v182, 1
  %v184 = vmul.u32 %v183, 3
  %v185 = vsub.s32 %v179, %v184
  %v186 = vsub.s32 0, %v185
  %v187 = vsel %vm177, %v186, %v185
  %vm188 = vcmp.lt.s32.totalorder %v88, 0
  %v189 = vsub.s32 0, %v88
  %v190 = vsel %vm188, %v189, %v88
  %v191 = vmul.u32.u64.compose %v190, 2863311531
  %v192 = vextract.low.u32 %v191
  %v193 = vextract.high.u32 %v191
  %v194 = vshrl.u32 %v193, 1
  %v195 = vmul.u32 %v194, 3
  %v196 = vsub.s32 %v190, %v195
  %v197 = vsub.s32 0, %v196
  %v198 = vsel %vm188, %v197, %v196
  %vm199 = vcmp.lt.s32.totalorder %v89, 0
  %v200 = vsub.s32 0, %v89
  %v201 = vsel %vm199, %v200, %v89
  %v202 = vmul.u32.u64.compose %v201, 2863311531
  %v203 = vextract.low.u32 %v202
  %v204 = vextract.high.u32 %v202
  %v205 = vshrl.u32 %v204, 1
  %v206 = vmul.u32 %v205, 3
  %v207 = vsub.s32 %v201, %v206
  %v208 = vsub.s32 0, %v207
  %v209 = vsel %vm199, %v208, %v207
  %vm210 = vcmp.lt.s32.totalorder %v90, 0
  %v211 = vsub.s32 0, %v90
  %v212 = vsel %vm210, %v211, %v90
  %v213 = vmul.u32.u64.compose %v212, 2863311531
  %v214 = vextract.low.u32 %v213
  %v215 = vextract.high.u32 %v213
  %v216 = vshrl.u32 %v215, 1
  %v217 = vmul.u32 %v216, 3
  %v218 = vsub.s32 %v212, %v217
  %v219 = vsub.s32 0, %v218
  %v220 = vsel %vm210, %v219, %v218
  %vm221 = vcmp.lt.s32.totalorder %v91, 0
  %v222 = vsub.s32 0, %v91
  %v223 = vsel %vm221, %v222, %v91
  %v224 = vmul.u32.u64.compose %v223, 2863311531
  %v225 = vextract.low.u32 %v224
  %v226 = vextract.high.u32 %v224
  %v227 = vshrl.u32 %v226, 1
  %v228 = vmul.u32 %v227, 3
  %v229 = vsub.s32 %v223, %v228
  %v230 = vsub.s32 0, %v229
  %v231 = vsel %vm221, %v230, %v229
  %vm232 = vcmp.lt.s32.totalorder %v92, 0
  %v233 = vsub.s32 0, %v92
  %v234 = vsel %vm232, %v233, %v92
  %v235 = vmul.u32.u64.compose %v234, 2863311531
  %v236 = vextract.low.u32 %v235
  %v237 = vextract.high.u32 %v235
  %v238 = vshrl.u32 %v237, 1
  %v239 = vmul.u32 %v238, 3
  %v240 = vsub.s32 %v234, %v239
  %v241 = vsub.s32 0, %v240
  %v242 = vsel %vm232, %v241, %v240
  %vm243 = vcmp.lt.s32.totalorder %v93, 0
  %v244 = vsub.s32 0, %v93
  %v245 = vsel %vm243, %v244, %v93
  %v246 = vmul.u32.u64.compose %v245, 2863311531
  %v247 = vextract.low.u32 %v246
  %v248 = vextract.high.u32 %v246
  %v249 = vshrl.u32 %v248, 1
  %v250 = vmul.u32 %v249, 3
  %v251 = vsub.s32 %v245, %v250
  %v252 = vsub.s32 0, %v251
  %v253 = vsel %vm243, %v252, %v251
  %vm254 = vcmp.lt.s32.totalorder %v94, 0
  %v255 = vsub.s32 0, %v94
  %v256 = vsel %vm254, %v255, %v94
  %v257 = vmul.u32.u64.compose %v256, 2863311531
  %v258 = vextract.low.u32 %v257
  %v259 = vextract.high.u32 %v257
  %v260 = vshrl.u32 %v259, 1
  %v261 = vmul.u32 %v260, 3
  %v262 = vsub.s32 %v256, %v261
  %v263 = vsub.s32 0, %v262
  %v264 = vsel %vm254, %v263, %v262
  %vm265 = vcmp.lt.s32.totalorder %v95, 0
  %v266 = vsub.s32 0, %v95
  %v267 = vsel %vm265, %v266, %v95
  %v268 = vmul.u32.u64.compose %v267, 2863311531
  %v269 = vextract.low.u32 %v268
  %v270 = vextract.high.u32 %v268
  %v271 = vshrl.u32 %v270, 1
  %v272 = vmul.u32 %v271, 3
  %v273 = vsub.s32 %v267, %v272
  %v274 = vsub.s32 0, %v273
  %v275 = vsel %vm265, %v274, %v273
  %vm276 = vcmp.lt.s32.totalorder %v96, 0
  %v277 = vsub.s32 0, %v96
  %v278 = vsel %vm276, %v277, %v96
  %v279 = vmul.u32.u64.compose %v278, 2863311531
  %v280 = vextract.low.u32 %v279
  %v281 = vextract.high.u32 %v279
  %v282 = vshrl.u32 %v281, 1
  %v283 = vmul.u32 %v282, 3
  %v284 = vsub.s32 %v278, %v283
  %v285 = vsub.s32 0, %v284
  %v286 = vsel %vm276, %v285, %v284
  %vm287 = vcmp.lt.s32.totalorder %v97, 0
  %v288 = vsub.s32 0, %v97
  %v289 = vsel %vm287, %v288, %v97
  %v290 = vmul.u32.u64.compose %v289, 2863311531
  %v291 = vextract.low.u32 %v290
  %v292 = vextract.high.u32 %v290
  %v293 = vshrl.u32 %v292, 1
  %v294 = vmul.u32 %v293, 3
  %v295 = vsub.s32 %v289, %v294
  %v296 = vsub.s32 0, %v295
  %v297 = vsel %vm287, %v296, %v295
  %vm298 = vcmp.lt.s32.totalorder %v98, 0
  %v299 = vsub.s32 0, %v98
  %v300 = vsel %vm298, %v299, %v98
  %v301 = vmul.u32.u64.compose %v300, 2863311531
  %v302 = vextract.low.u32 %v301
  %v303 = vextract.high.u32 %v301
  %v304 = vshrl.u32 %v303, 1
  %v305 = vmul.u32 %v304, 3
  %v306 = vsub.s32 %v300, %v305
  %v307 = vsub.s32 0, %v306
  %v308 = vsel %vm298, %v307, %v306
  %vm309 = vcmp.lt.s32.totalorder %v99, 0
  %v310 = vsub.s32 0, %v99
  %v311 = vsel %vm309, %v310, %v99
  %v312 = vmul.u32.u64.compose %v311, 2863311531
  %v313 = vextract.low.u32 %v312
  %v314 = vextract.high.u32 %v312
  %v315 = vshrl.u32 %v314, 1
  %v316 = vmul.u32 %v315, 3
  %v317 = vsub.s32 %v311, %v316
  %v318 = vsub.s32 0, %v317
  %v319 = vsel %vm309, %v318, %v317
  %vm320 = vcmp.lt.s32.totalorder %v100, 0
  %v321 = vsub.s32 0, %v100
  %v322 = vsel %vm320, %v321, %v100
  %v323 = vmul.u32.u64.compose %v322, 2863311531
  %v324 = vextract.low.u32 %v323
  %v325 = vextract.high.u32 %v323
  %v326 = vshrl.u32 %v325, 1
  %v327 = vmul.u32 %v326, 3
  %v328 = vsub.s32 %v322, %v327
  %v329 = vsub.s32 0, %v328
  %v330 = vsel %vm320, %v329, %v328
  %vm331 = vcmp.lt.s32.totalorder %v101, 0
  %v332 = vsub.s32 0, %v101
  %v333 = vsel %vm331, %v332, %v101
  %v334 = vmul.u32.u64.compose %v333, 2863311531
  %v335 = vextract.low.u32 %v334
  %v336 = vextract.high.u32 %v334
  %v337 = vshrl.u32 %v336, 1
  %v338 = vmul.u32 %v337, 3
  %v339 = vsub.s32 %v333, %v338
  %v340 = vsub.s32 0, %v339
  %v341 = vsel %vm331, %v340, %v339
  %vm342 = vcmp.lt.s32.totalorder %v102, 0
  %v343 = vsub.s32 0, %v102
  %v344 = vsel %vm342, %v343, %v102
  %v345 = vmul.u32.u64.compose %v344, 2863311531
  %v346 = vextract.low.u32 %v345
  %v347 = vextract.high.u32 %v345
  %v348 = vshrl.u32 %v347, 1
  %v349 = vmul.u32 %v348, 3
  %v350 = vsub.s32 %v344, %v349
  %v351 = vsub.s32 0, %v350
  %v352 = vsel %vm342, %v351, %v350
  %vm353 = vcmp.lt.s32.totalorder %v103, 0
  %v354 = vsub.s32 0, %v103
  %v355 = vsel %vm353, %v354, %v103
  %v356 = vmul.u32.u64.compose %v355, 2863311531
  %v357 = vextract.low.u32 %v356
  %v358 = vextract.high.u32 %v356
  %v359 = vshrl.u32 %v358, 1
  %v360 = vmul.u32 %v359, 3
  %v361 = vsub.s32 %v355, %v360
  %v362 = vsub.s32 0, %v361
  %v363 = vsel %vm353, %v362, %v361
  %vm364 = vcmp.lt.s32.totalorder %v104, 0
  %v365 = vsub.s32 0, %v104
  %v366 = vsel %vm364, %v365, %v104
  %v367 = vmul.u32.u64.compose %v366, 2863311531
  %v368 = vextract.low.u32 %v367
  %v369 = vextract.high.u32 %v367
  %v370 = vshrl.u32 %v369, 1
  %v371 = vmul.u32 %v370, 3
  %v372 = vsub.s32 %v366, %v371
  %v373 = vsub.s32 0, %v372
  %v374 = vsel %vm364, %v373, %v372
  %vm375 = vcmp.lt.s32.totalorder %v105, 0
  %v376 = vsub.s32 0, %v105
  %v377 = vsel %vm375, %v376, %v105
  %v378 = vmul.u32.u64.compose %v377, 2863311531
  %v379 = vextract.low.u32 %v378
  %v380 = vextract.high.u32 %v378
  %v381 = vshrl.u32 %v380, 1
  %v382 = vmul.u32 %v381, 3
  %v383 = vsub.s32 %v377, %v382
  %v384 = vsub.s32 0, %v383
  %v385 = vsel %vm375, %v384, %v383
  %vm386 = vcmp.lt.s32.totalorder %v106, 0
  %v387 = vsub.s32 0, %v106
  %v388 = vsel %vm386, %v387, %v106
  %v389 = vmul.u32.u64.compose %v388, 2863311531
  %v390 = vextract.low.u32 %v389
  %v391 = vextract.high.u32 %v389
  %v392 = vshrl.u32 %v391, 1
  %v393 = vmul.u32 %v392, 3
  %v394 = vsub.s32 %v388, %v393
  %v395 = vsub.s32 0, %v394
  %v396 = vsel %vm386, %v395, %v394
  %vm397 = vcmp.lt.s32.totalorder %v107, 0
  %v398 = vsub.s32 0, %v107
  %v399 = vsel %vm397, %v398, %v107
  %v400 = vmul.u32.u64.compose %v399, 2863311531
  %v401 = vextract.low.u32 %v400
  %v402 = vextract.high.u32 %v400
  %v403 = vshrl.u32 %v402, 1
  %v404 = vmul.u32 %v403, 3
  %v405 = vsub.s32 %v399, %v404
  %v406 = vsub.s32 0, %v405
  %v407 = vsel %vm397, %v406, %v405
  %vm408 = vcmp.lt.s32.totalorder %v108, 0
  %v409 = vsub.s32 0, %v108
  %v410 = vsel %vm408, %v409, %v108
  %v411 = vmul.u32.u64.compose %v410, 2863311531
  %v412 = vextract.low.u32 %v411
  %v413 = vextract.high.u32 %v411
  %v414 = vshrl.u32 %v413, 1
  %v415 = vmul.u32 %v414, 3
  %v416 = vsub.s32 %v410, %v415
  %v417 = vsub.s32 0, %v416
  %v418 = vsel %vm408, %v417, %v416
  %vm419 = vcmp.lt.s32.totalorder %v109, 0
  %v420 = vsub.s32 0, %v109
  %v421 = vsel %vm419, %v420, %v109
  %v422 = vmul.u32.u64.compose %v421, 2863311531
  %v423 = vextract.low.u32 %v422
  %v424 = vextract.high.u32 %v422
  %v425 = vshrl.u32 %v424, 1
  %v426 = vmul.u32 %v425, 3
  %v427 = vsub.s32 %v421, %v426
  %v428 = vsub.s32 0, %v427
  %v429 = vsel %vm419, %v428, %v427
  %vm430 = vcmp.lt.s32.totalorder %v110, 0
  %v431 = vsub.s32 0, %v110
  %v432 = vsel %vm430, %v431, %v110
  %v433 = vmul.u32.u64.compose %v432, 2863311531
  %v434 = vextract.low.u32 %v433
  %v435 = vextract.high.u32 %v433
  %v436 = vshrl.u32 %v435, 1
  %v437 = vmul.u32 %v436, 3
  %v438 = vsub.s32 %v432, %v437
  %v439 = vsub.s32 0, %v438
  %v440 = vsel %vm430, %v439, %v438
  %vm441 = vcmp.lt.s32.totalorder %v111, 0
  %v442 = vsub.s32 0, %v111
  %v443 = vsel %vm441, %v442, %v111
  %v444 = vmul.u32.u64.compose %v443, 2863311531
  %v445 = vextract.low.u32 %v444
  %v446 = vextract.high.u32 %v444
  %v447 = vshrl.u32 %v446, 1
  %v448 = vmul.u32 %v447, 3
  %v449 = vsub.s32 %v443, %v448
  %v450 = vsub.s32 0, %v449
  %v451 = vsel %vm441, %v450, %v449
  %vm452 = vcmp.lt.s32.totalorder %v112, 0
  %v453 = vsub.s32 0, %v112
  %v454 = vsel %vm452, %v453, %v112
  %v455 = vmul.u32.u64.compose %v454, 2863311531
  %v456 = vextract.low.u32 %v455
  %v457 = vextract.high.u32 %v455
  %v458 = vshrl.u32 %v457, 1
  %v459 = vmul.u32 %v458, 3
  %v460 = vsub.s32 %v454, %v459
  %v461 = vsub.s32 0, %v460
  %v462 = vsel %vm452, %v461, %v460
  %vm463 = vcmp.lt.s32.totalorder %v113, 0
  %v464 = vsub.s32 0, %v113
  %v465 = vsel %vm463, %v464, %v113
  %v466 = vmul.u32.u64.compose %v465, 2863311531
  %v467 = vextract.low.u32 %v466
  %v468 = vextract.high.u32 %v466
  %v469 = vshrl.u32 %v468, 1
  %v470 = vmul.u32 %v469, 3
  %v471 = vsub.s32 %v465, %v470
  %v472 = vsub.s32 0, %v471
  %v473 = vsel %vm463, %v472, %v471
  %vm474 = vcmp.lt.s32.totalorder %v114, 0
  %v475 = vsub.s32 0, %v114
  %v476 = vsel %vm474, %v475, %v114
  %v477 = vmul.u32.u64.compose %v476, 2863311531
  %v478 = vextract.low.u32 %v477
  %v479 = vextract.high.u32 %v477
  %v480 = vshrl.u32 %v479, 1
  %v481 = vmul.u32 %v480, 3
  %v482 = vsub.s32 %v476, %v481
  %v483 = vsub.s32 0, %v482
  %v484 = vsel %vm474, %v483, %v482
  %vm485 = vcmp.lt.s32.totalorder %v115, 0
  %v486 = vsub.s32 0, %v115
  %v487 = vsel %vm485, %v486, %v115
  %v488 = vmul.u32.u64.compose %v487, 2863311531
  %v489 = vextract.low.u32 %v488
  %v490 = vextract.high.u32 %v488
  %v491 = vshrl.u32 %v490, 1
  %v492 = vmul.u32 %v491, 3
  %v493 = vsub.s32 %v487, %v492
  %v494 = vsub.s32 0, %v493
  %v495 = vsel %vm485, %v494, %v493
  %vm496 = vcmp.lt.s32.totalorder %v116, 0
  %v497 = vsub.s32 0, %v116
  %v498 = vsel %vm496, %v497, %v116
  %v499 = vmul.u32.u64.compose %v498, 2863311531
  %v500 = vextract.low.u32 %v499
  %v501 = vextract.high.u32 %v499
  %v502 = vshrl.u32 %v501, 1
  %v503 = vmul.u32 %v502, 3
  %v504 = vsub.s32 %v498, %v503
  %v505 = vsub.s32 0, %v504
  %v506 = vsel %vm496, %v505, %v504
  %vm507 = vcmp.lt.s32.totalorder %v117, 0
  %v508 = vsub.s32 0, %v117
  %v509 = vsel %vm507, %v508, %v117
  %v510 = vmul.u32.u64.compose %v509, 2863311531
  %v511 = vextract.low.u32 %v510
  %v512 = vextract.high.u32 %v510
  %v513 = vshrl.u32 %v512, 1
  %v514 = vmul.u32 %v513, 3
  %v515 = vsub.s32 %v509, %v514
  %v516 = vsub.s32 0, %v515
  %v517 = vsel %vm507, %v516, %v515
  %vm518 = vcmp.lt.s32.totalorder %v118, 0
  %v519 = vsub.s32 0, %v118
  %v520 = vsel %vm518, %v519, %v118
  %v521 = vmul.u32.u64.compose %v520, 2863311531
  %v522 = vextract.low.u32 %v521
  %v523 = vextract.high.u32 %v521
  %v524 = vshrl.u32 %v523, 1
  %v525 = vmul.u32 %v524, 3
  %v526 = vsub.s32 %v520, %v525
  %v527 = vsub.s32 0, %v526
  %v528 = vsel %vm518, %v527, %v526
  %vm529 = vcmp.lt.s32.totalorder %v119, 0
  %v530 = vsub.s32 0, %v119
  %v531 = vsel %vm529, %v530, %v119
  %v532 = vmul.u32.u64.compose %v531, 2863311531
  %v533 = vextract.low.u32 %v532
  %v534 = vextract.high.u32 %v532
  %v535 = vshrl.u32 %v534, 1
  %v536 = vmul.u32 %v535, 3
  %v537 = vsub.s32 %v531, %v536
  %v538 = vsub.s32 0, %v537
  %v539 = vsel %vm529, %v538, %v537
  %vm540 = vcmp.lt.s32.totalorder %v120, 0
  %v541 = vsub.s32 0, %v120
  %v542 = vsel %vm540, %v541, %v120
  %v543 = vmul.u32.u64.compose %v542, 2863311531
  %v544 = vextract.low.u32 %v543
  %v545 = vextract.high.u32 %v543
  %v546 = vshrl.u32 %v545, 1
  %v547 = vmul.u32 %v546, 3
  %v548 = vsub.s32 %v542, %v547
  %v549 = vsub.s32 0, %v548
  %v550 = vsel %vm540, %v549, %v548
  %vm551 = vcmp.lt.s32.totalorder %v121, 0
  %v552 = vsub.s32 0, %v121
  %v553 = vsel %vm551, %v552, %v121
  %v554 = vmul.u32.u64.compose %v553, 2863311531
  %v555 = vextract.low.u32 %v554
  %v556 = vextract.high.u32 %v554
  %v557 = vshrl.u32 %v556, 1
  %v558 = vmul.u32 %v557, 3
  %v559 = vsub.s32 %v553, %v558
  %v560 = vsub.s32 0, %v559
  %v561 = vsel %vm551, %v560, %v559
  %vm562 = vcmp.lt.s32.totalorder %v122, 0
  %v563 = vsub.s32 0, %v122
  %v564 = vsel %vm562, %v563, %v122
  %v565 = vmul.u32.u64.compose %v564, 2863311531
  %v566 = vextract.low.u32 %v565
  %v567 = vextract.high.u32 %v565
  %v568 = vshrl.u32 %v567, 1
  %v569 = vmul.u32 %v568, 3
  %v570 = vsub.s32 %v564, %v569
  %v571 = vsub.s32 0, %v570
  %v572 = vsel %vm562, %v571, %v570
  %vm573 = vcmp.lt.s32.totalorder %v123, 0
  %v574 = vsub.s32 0, %v123
  %v575 = vsel %vm573, %v574, %v123
  %v576 = vmul.u32.u64.compose %v575, 2863311531
  %v577 = vextract.low.u32 %v576
  %v578 = vextract.high.u32 %v576
  %v579 = vshrl.u32 %v578, 1
  %v580 = vmul.u32 %v579, 3
  %v581 = vsub.s32 %v575, %v580
  %v582 = vsub.s32 0, %v581
  %v583 = vsel %vm573, %v582, %v581
  %vm584 = vcmp.lt.s32.totalorder %v124, 0
  %v585 = vsub.s32 0, %v124
  %v586 = vsel %vm584, %v585, %v124
  %v587 = vmul.u32.u64.compose %v586, 2863311531
  %v588 = vextract.low.u32 %v587
  %v589 = vextract.high.u32 %v587
  %v590 = vshrl.u32 %v589, 1
  %v591 = vmul.u32 %v590, 3
  %v592 = vsub.s32 %v586, %v591
  %v593 = vsub.s32 0, %v592
  %v594 = vsel %vm584, %v593, %v592
  %vm595 = vcmp.lt.s32.totalorder %v125, 0
  %v596 = vsub.s32 0, %v125
  %v597 = vsel %vm595, %v596, %v125
  %v598 = vmul.u32.u64.compose %v597, 2863311531
  %v599 = vextract.low.u32 %v598
  %v600 = vextract.high.u32 %v598
  %v601 = vshrl.u32 %v600, 1
  %v602 = vmul.u32 %v601, 3
  %v603 = vsub.s32 %v597, %v602
  %v604 = vsub.s32 0, %v603
  %v605 = vsel %vm595, %v604, %v603
  %vm606 = vcmp.lt.s32.totalorder %v126, 0
  %v607 = vsub.s32 0, %v126
  %v608 = vsel %vm606, %v607, %v126
  %v609 = vmul.u32.u64.compose %v608, 2863311531
  %v610 = vextract.low.u32 %v609
  %v611 = vextract.high.u32 %v609
  %v612 = vshrl.u32 %v611, 1
  %v613 = vmul.u32 %v612, 3
  %v614 = vsub.s32 %v608, %v613
  %v615 = vsub.s32 0, %v614
  %v616 = vsel %vm606, %v615, %v614
  %vm617 = vcmp.lt.s32.totalorder %v127, 0
  %v618 = vsub.s32 0, %v127
  %v619 = vsel %vm617, %v618, %v127
  %v620 = vmul.u32.u64.compose %v619, 2863311531
  %v621 = vextract.low.u32 %v620
  %v622 = vextract.high.u32 %v620
  %v623 = vshrl.u32 %v622, 1
  %v624 = vmul.u32 %v623, 3
  %v625 = vsub.s32 %v619, %v624
  %v626 = vsub.s32 0, %v625
  %v627 = vsel %vm617, %v626, %v625
  %vm628 = vcmp.lt.s32.totalorder %v128, 0
  %v629 = vsub.s32 0, %v128
  %v630 = vsel %vm628, %v629, %v128
  %v631 = vmul.u32.u64.compose %v630, 2863311531
  %v632 = vextract.low.u32 %v631
  %v633 = vextract.high.u32 %v631
  %v634 = vshrl.u32 %v633, 1
  %v635 = vmul.u32 %v634, 3
  %v636 = vsub.s32 %v630, %v635
  %v637 = vsub.s32 0, %v636
  %v638 = vsel %vm628, %v637, %v636
  %vm639 = vcmp.lt.s32.totalorder %v129, 0
  %v640 = vsub.s32 0, %v129
  %v641 = vsel %vm639, %v640, %v129
  %v642 = vmul.u32.u64.compose %v641, 2863311531
  %v643 = vextract.low.u32 %v642
  %v644 = vextract.high.u32 %v642
  %v645 = vshrl.u32 %v644, 1
  %v646 = vmul.u32 %v645, 3
  %v647 = vsub.s32 %v641, %v646
  %v648 = vsub.s32 0, %v647
  %v649 = vsel %vm639, %v648, %v647
  %vm650 = vcmp.lt.s32.totalorder %v130, 0
  %v651 = vsub.s32 0, %v130
  %v652 = vsel %vm650, %v651, %v130
  %v653 = vmul.u32.u64.compose %v652, 2863311531
  %v654 = vextract.low.u32 %v653
  %v655 = vextract.high.u32 %v653
  %v656 = vshrl.u32 %v655, 1
  %v657 = vmul.u32 %v656, 3
  %v658 = vsub.s32 %v652, %v657
  %v659 = vsub.s32 0, %v658
  %v660 = vsel %vm650, %v659, %v658
  %vm661 = vcmp.lt.s32.totalorder %v131, 0
  %v662 = vsub.s32 0, %v131
  %v663 = vsel %vm661, %v662, %v131
  %v664 = vmul.u32.u64.compose %v663, 2863311531
  %v665 = vextract.low.u32 %v664
  %v666 = vextract.high.u32 %v664
  %v667 = vshrl.u32 %v666, 1
  %v668 = vmul.u32 %v667, 3
  %v669 = vsub.s32 %v663, %v668
  %v670 = vsub.s32 0, %v669
  %v671 = vsel %vm661, %v670, %v669
  %vm672 = vcmp.lt.s32.totalorder %v132, 0
  %v673 = vsub.s32 0, %v132
  %v674 = vsel %vm672, %v673, %v132
  %v675 = vmul.u32.u64.compose %v674, 2863311531
  %v676 = vextract.low.u32 %v675
  %v677 = vextract.high.u32 %v675
  %v678 = vshrl.u32 %v677, 1
  %v679 = vmul.u32 %v678, 3
  %v680 = vsub.s32 %v674, %v679
  %v681 = vsub.s32 0, %v680
  %v682 = vsel %vm672, %v681, %v680
  %vm683 = vcmp.lt.s32.totalorder %v133, 0
  %v684 = vsub.s32 0, %v133
  %v685 = vsel %vm683, %v684, %v133
  %v686 = vmul.u32.u64.compose %v685, 2863311531
  %v687 = vextract.low.u32 %v686
  %v688 = vextract.high.u32 %v686
  %v689 = vshrl.u32 %v688, 1
  %v690 = vmul.u32 %v689, 3
  %v691 = vsub.s32 %v685, %v690
  %v692 = vsub.s32 0, %v691
  %v693 = vsel %vm683, %v692, %v691
  %vm694 = vcmp.lt.s32.totalorder %v134, 0
  %v695 = vsub.s32 0, %v134
  %v696 = vsel %vm694, %v695, %v134
  %v697 = vmul.u32.u64.compose %v696, 2863311531
  %v698 = vextract.low.u32 %v697
  %v699 = vextract.high.u32 %v697
  %v700 = vshrl.u32 %v699, 1
  %v701 = vmul.u32 %v700, 3
  %v702 = vsub.s32 %v696, %v701
  %v703 = vsub.s32 0, %v702
  %v704 = vsel %vm694, %v703, %v702
  %vm705 = vcmp.lt.s32.totalorder %v135, 0
  %v706 = vsub.s32 0, %v135
  %v707 = vsel %vm705, %v706, %v135
  %v708 = vmul.u32.u64.compose %v707, 2863311531
  %v709 = vextract.low.u32 %v708
  %v710 = vextract.high.u32 %v708
  %v711 = vshrl.u32 %v710, 1
  %v712 = vmul.u32 %v711, 3
  %v713 = vsub.s32 %v707, %v712
  %v714 = vsub.s32 0, %v713
  %v715 = vsel %vm705, %v714, %v713
  %vm716 = vcmp.lt.s32.totalorder %v136, 0
  %v717 = vsub.s32 0, %v136
  %v718 = vsel %vm716, %v717, %v136
  %v719 = vmul.u32.u64.compose %v718, 2863311531
  %v720 = vextract.low.u32 %v719
  %v721 = vextract.high.u32 %v719
  %v722 = vshrl.u32 %v721, 1
  %v723 = vmul.u32 %v722, 3
  %v724 = vsub.s32 %v718, %v723
  %v725 = vsub.s32 0, %v724
  %v726 = vsel %vm716, %v725, %v724
  %vm727 = vcmp.lt.s32.totalorder %v137, 0
  %v728 = vsub.s32 0, %v137
  %v729 = vsel %vm727, %v728, %v137
  %v730 = vmul.u32.u64.compose %v729, 2863311531
  %v731 = vextract.low.u32 %v730
  %v732 = vextract.high.u32 %v730
  %v733 = vshrl.u32 %v732, 1
  %v734 = vmul.u32 %v733, 3
  %v735 = vsub.s32 %v729, %v734
  %v736 = vsub.s32 0, %v735
  %v737 = vsel %vm727, %v736, %v735
  %vm738 = vcmp.lt.s32.totalorder %v138, 0
  %v739 = vsub.s32 0, %v138
  %v740 = vsel %vm738, %v739, %v138
  %v741 = vmul.u32.u64.compose %v740, 2863311531
  %v742 = vextract.low.u32 %v741
  %v743 = vextract.high.u32 %v741
  %v744 = vshrl.u32 %v743, 1
  %v745 = vmul.u32 %v744, 3
  %v746 = vsub.s32 %v740, %v745
  %v747 = vsub.s32 0, %v746
  %v748 = vsel %vm738, %v747, %v746
  %vm749 = vcmp.lt.s32.totalorder %v139, 0
  %v750 = vsub.s32 0, %v139
  %v751 = vsel %vm749, %v750, %v139
  %v752 = vmul.u32.u64.compose %v751, 2863311531
  %v753 = vextract.low.u32 %v752
  %v754 = vextract.high.u32 %v752
  %v755 = vshrl.u32 %v754, 1
  %v756 = vmul.u32 %v755, 3
  %v757 = vsub.s32 %v751, %v756
  %v758 = vsub.s32 0, %v757
  %v759 = vsel %vm749, %v758, %v757
  %vm760 = vcmp.lt.s32.totalorder %v140, 0
  %v761 = vsub.s32 0, %v140
  %v762 = vsel %vm760, %v761, %v140
  %v763 = vmul.u32.u64.compose %v762, 2863311531
  %v764 = vextract.low.u32 %v763
  %v765 = vextract.high.u32 %v763
  %v766 = vshrl.u32 %v765, 1
  %v767 = vmul.u32 %v766, 3
  %v768 = vsub.s32 %v762, %v767
  %v769 = vsub.s32 0, %v768
  %v770 = vsel %vm760, %v769, %v768
  %vm771 = vcmp.lt.s32.totalorder %v141, 0
  %v772 = vsub.s32 0, %v141
  %v773 = vsel %vm771, %v772, %v141
  %v774 = vmul.u32.u64.compose %v773, 2863311531
  %v775 = vextract.low.u32 %v774
  %v776 = vextract.high.u32 %v774
  %v777 = vshrl.u32 %v776, 1
  %v778 = vmul.u32 %v777, 3
  %v779 = vsub.s32 %v773, %v778
  %v780 = vsub.s32 0, %v779
  %v781 = vsel %vm771, %v780, %v779
  %vm782 = vcmp.lt.s32.totalorder %v142, 0
  %v783 = vsub.s32 0, %v142
  %v784 = vsel %vm782, %v783, %v142
  %v785 = vmul.u32.u64.compose %v784, 2863311531
  %v786 = vextract.low.u32 %v785
  %v787 = vextract.high.u32 %v785
  %v788 = vshrl.u32 %v787, 1
  %v789 = vmul.u32 %v788, 3
  %v790 = vsub.s32 %v784, %v789
  %v791 = vsub.s32 0, %v790
  %v792 = vsel %vm782, %v791, %v790
  %vm793 = vcmp.lt.s32.totalorder %v143, 0
  %v794 = vsub.s32 0, %v143
  %v795 = vsel %vm793, %v794, %v143
  %v796 = vmul.u32.u64.compose %v795, 2863311531
  %v797 = vextract.low.u32 %v796
  %v798 = vextract.high.u32 %v796
  %v799 = vshrl.u32 %v798, 1
  %v800 = vmul.u32 %v799, 3
  %v801 = vsub.s32 %v795, %v800
  %v802 = vsub.s32 0, %v801
  %v803 = vsel %vm793, %v802, %v801
  %vm804 = vcmp.ne.s32.totalorder %v154, 0
  %vm805 = vcmp.ne.s32.totalorder %v165, 0
  %vm806 = vcmp.ne.s32.totalorder %v176, 0
  %vm807 = vcmp.ne.s32.totalorder %v187, 0
  %vm808 = vcmp.ne.s32.totalorder %v198, 0
  %vm809 = vcmp.ne.s32.totalorder %v209, 0
  %vm810 = vcmp.ne.s32.totalorder %v220, 0
  %vm811 = vcmp.ne.s32.totalorder %v231, 0
  %vm812 = vcmp.ne.s32.totalorder %v242, 0
  %vm813 = vcmp.ne.s32.totalorder %v253, 0
  %vm814 = vcmp.ne.s32.totalorder %v264, 0
  %vm815 = vcmp.ne.s32.totalorder %v275, 0
  %vm816 = vcmp.ne.s32.totalorder %v286, 0
  %vm817 = vcmp.ne.s32.totalorder %v297, 0
  %vm818 = vcmp.ne.s32.totalorder %v308, 0
  %vm819 = vcmp.ne.s32.totalorder %v319, 0
  %vm820 = vcmp.ne.s32.totalorder %v330, 0
  %vm821 = vcmp.ne.s32.totalorder %v341, 0
  %vm822 = vcmp.ne.s32.totalorder %v352, 0
  %vm823 = vcmp.ne.s32.totalorder %v363, 0
  %vm824 = vcmp.ne.s32.totalorder %v374, 0
  %vm825 = vcmp.ne.s32.totalorder %v385, 0
  %vm826 = vcmp.ne.s32.totalorder %v396, 0
  %vm827 = vcmp.ne.s32.totalorder %v407, 0
  %vm828 = vcmp.ne.s32.totalorder %v418, 0
  %vm829 = vcmp.ne.s32.totalorder %v429, 0
  %vm830 = vcmp.ne.s32.totalorder %v440, 0
  %vm831 = vcmp.ne.s32.totalorder %v451, 0
  %vm832 = vcmp.ne.s32.totalorder %v462, 0
  %vm833 = vcmp.ne.s32.totalorder %v473, 0
  %vm834 = vcmp.ne.s32.totalorder %v484, 0
  %vm835 = vcmp.ne.s32.totalorder %v495, 0
  %vm836 = vcmp.ne.s32.totalorder %v506, 0
  %vm837 = vcmp.ne.s32.totalorder %v517, 0
  %vm838 = vcmp.ne.s32.totalorder %v528, 0
  %vm839 = vcmp.ne.s32.totalorder %v539, 0
  %vm840 = vcmp.ne.s32.totalorder %v550, 0
  %vm841 = vcmp.ne.s32.totalorder %v561, 0
  %vm842 = vcmp.ne.s32.totalorder %v572, 0
  %vm843 = vcmp.ne.s32.totalorder %v583, 0
  %vm844 = vcmp.ne.s32.totalorder %v594, 0
  %vm845 = vcmp.ne.s32.totalorder %v605, 0
  %vm846 = vcmp.ne.s32.totalorder %v616, 0
  %vm847 = vcmp.ne.s32.totalorder %v627, 0
  %vm848 = vcmp.ne.s32.totalorder %v638, 0
  %vm849 = vcmp.ne.s32.totalorder %v649, 0
  %vm850 = vcmp.ne.s32.totalorder %v660, 0
  %vm851 = vcmp.ne.s32.totalorder %v671, 0
  %vm852 = vcmp.ne.s32.totalorder %v682, 0
  %vm853 = vcmp.ne.s32.totalorder %v693, 0
  %vm854 = vcmp.ne.s32.totalorder %v704, 0
  %vm855 = vcmp.ne.s32.totalorder %v715, 0
  %vm856 = vcmp.ne.s32.totalorder %v726, 0
  %vm857 = vcmp.ne.s32.totalorder %v737, 0
  %vm858 = vcmp.ne.s32.totalorder %v748, 0
  %vm859 = vcmp.ne.s32.totalorder %v759, 0
  %vm860 = vcmp.ne.s32.totalorder %v770, 0
  %vm861 = vcmp.ne.s32.totalorder %v781, 0
  %vm862 = vcmp.ne.s32.totalorder %v792, 0
  %vm863 = vcmp.ne.s32.totalorder %v803, 0
  %vm864 = vcmp.lt.s32.totalorder %v154, 0
  %vm865 = vcmp.lt.s32.totalorder %v165, 0
  %vm866 = vcmp.lt.s32.totalorder %v176, 0
  %vm867 = vcmp.lt.s32.totalorder %v187, 0
  %vm868 = vcmp.lt.s32.totalorder %v198, 0
  %vm869 = vcmp.lt.s32.totalorder %v209, 0
  %vm870 = vcmp.lt.s32.totalorder %v220, 0
  %vm871 = vcmp.lt.s32.totalorder %v231, 0
  %vm872 = vcmp.lt.s32.totalorder %v242, 0
  %vm873 = vcmp.lt.s32.totalorder %v253, 0
  %vm874 = vcmp.lt.s32.totalorder %v264, 0
  %vm875 = vcmp.lt.s32.totalorder %v275, 0
  %vm876 = vcmp.lt.s32.totalorder %v286, 0
  %vm877 = vcmp.lt.s32.totalorder %v297, 0
  %vm878 = vcmp.lt.s32.totalorder %v308, 0
  %vm879 = vcmp.lt.s32.totalorder %v319, 0
  %vm880 = vcmp.lt.s32.totalorder %v330, 0
  %vm881 = vcmp.lt.s32.totalorder %v341, 0
  %vm882 = vcmp.lt.s32.totalorder %v352, 0
  %vm883 = vcmp.lt.s32.totalorder %v363, 0
  %vm884 = vcmp.lt.s32.totalorder %v374, 0
  %vm885 = vcmp.lt.s32.totalorder %v385, 0
  %vm886 = vcmp.lt.s32.totalorder %v396, 0
  %vm887 = vcmp.lt.s32.totalorder %v407, 0
  %vm888 = vcmp.lt.s32.totalorder %v418, 0
  %vm889 = vcmp.lt.s32.totalorder %v429, 0
  %vm890 = vcmp.lt.s32.totalorder %v440, 0
  %vm891 = vcmp.lt.s32.totalorder %v451, 0
  %vm892 = vcmp.lt.s32.totalorder %v462, 0
  %vm893 = vcmp.lt.s32.totalorder %v473, 0
  %vm894 = vcmp.lt.s32.totalorder %v484, 0
  %vm895 = vcmp.lt.s32.totalorder %v495, 0
  %vm896 = vcmp.lt.s32.totalorder %v506, 0
  %vm897 = vcmp.lt.s32.totalorder %v517, 0
  %vm898 = vcmp.lt.s32.totalorder %v528, 0
  %vm899 = vcmp.lt.s32.totalorder %v539, 0
  %vm900 = vcmp.lt.s32.totalorder %v550, 0
  %vm901 = vcmp.lt.s32.totalorder %v561, 0
  %vm902 = vcmp.lt.s32.totalorder %v572, 0
  %vm903 = vcmp.lt.s32.totalorder %v583, 0
  %vm904 = vcmp.lt.s32.totalorder %v594, 0
  %vm905 = vcmp.lt.s32.totalorder %v605, 0
  %vm906 = vcmp.lt.s32.totalorder %v616, 0
  %vm907 = vcmp.lt.s32.totalorder %v627, 0
  %vm908 = vcmp.lt.s32.totalorder %v638, 0
  %vm909 = vcmp.lt.s32.totalorder %v649, 0
  %vm910 = vcmp.lt.s32.totalorder %v660, 0
  %vm911 = vcmp.lt.s32.totalorder %v671, 0
  %vm912 = vcmp.lt.s32.totalorder %v682, 0
  %vm913 = vcmp.lt.s32.totalorder %v693, 0
  %vm914 = vcmp.lt.s32.totalorder %v704, 0
  %vm915 = vcmp.lt.s32.totalorder %v715, 0
  %vm916 = vcmp.lt.s32.totalorder %v726, 0
  %vm917 = vcmp.lt.s32.totalorder %v737, 0
  %vm918 = vcmp.lt.s32.totalorder %v748, 0
  %vm919 = vcmp.lt.s32.totalorder %v759, 0
  %vm920 = vcmp.lt.s32.totalorder %v770, 0
  %vm921 = vcmp.lt.s32.totalorder %v781, 0
  %vm922 = vcmp.lt.s32.totalorder %v792, 0
  %vm923 = vcmp.lt.s32.totalorder %v803, 0
  %vm924 = vmand %vm864, %vm804
  %vm925 = vmand %vm865, %vm805
  %vm926 = vmand %vm866, %vm806
  %vm927 = vmand %vm867, %vm807
  %vm928 = vmand %vm868, %vm808
  %vm929 = vmand %vm869, %vm809
  %vm930 = vmand %vm870, %vm810
  %vm931 = vmand %vm871, %vm811
  %vm932 = vmand %vm872, %vm812
  %vm933 = vmand %vm873, %vm813
  %vm934 = vmand %vm874, %vm814
  %vm935 = vmand %vm875, %vm815
  %vm936 = vmand %vm876, %vm816
  %vm937 = vmand %vm877, %vm817
  %vm938 = vmand %vm878, %vm818
  %vm939 = vmand %vm879, %vm819
  %vm940 = vmand %vm880, %vm820
  %vm941 = vmand %vm881, %vm821
  %vm942 = vmand %vm882, %vm822
  %vm943 = vmand %vm883, %vm823
  %vm944 = vmand %vm884, %vm824
  %vm945 = vmand %vm885, %vm825
  %vm946 = vmand %vm886, %vm826
  %vm947 = vmand %vm887, %vm827
  %vm948 = vmand %vm888, %vm828
  %vm949 = vmand %vm889, %vm829
  %vm950 = vmand %vm890, %vm830
  %vm951 = vmand %vm891, %vm831
  %vm952 = vmand %vm892, %vm832
  %vm953 = vmand %vm893, %vm833
  %vm954 = vmand %vm894, %vm834
  %vm955 = vmand %vm895, %vm835
  %vm956 = vmand %vm896, %vm836
  %vm957 = vmand %vm897, %vm837
  %vm958 = vmand %vm898, %vm838
  %vm959 = vmand %vm899, %vm839
  %vm960 = vmand %vm900, %vm840
  %vm961 = vmand %vm901, %vm841
  %vm962 = vmand %vm902, %vm842
  %vm963 = vmand %vm903, %vm843
  %vm964 = vmand %vm904, %vm844
  %vm965 = vmand %vm905, %vm845
  %vm966 = vmand %vm906, %vm846
  %vm967 = vmand %vm907, %vm847
  %vm968 = vmand %vm908, %vm848
  %vm969 = vmand %vm909, %vm849
  %vm970 = vmand %vm910, %vm850
  %vm971 = vmand %vm911, %vm851
  %vm972 = vmand %vm912, %vm852
  %vm973 = vmand %vm913, %vm853
  %vm974 = vmand %vm914, %vm854
  %vm975 = vmand %vm915, %vm855
  %vm976 = vmand %vm916, %vm856
  %vm977 = vmand %vm917, %vm857
  %vm978 = vmand %vm918, %vm858
  %vm979 = vmand %vm919, %vm859
  %vm980 = vmand %vm920, %vm860
  %vm981 = vmand %vm921, %vm861
  %vm982 = vmand %vm922, %vm862
  %vm983 = vmand %vm923, %vm863
  %v984 = vadd.s32 %v154, 3
  %v985 = vadd.s32 %v165, 3
  %v986 = vadd.s32 %v176, 3
  %v987 = vadd.s32 %v187, 3
  %v988 = vadd.s32 %v198, 3
  %v989 = vadd.s32 %v209, 3
  %v990 = vadd.s32 %v220, 3
  %v991 = vadd.s32 %v231, 3
  %v992 = vadd.s32 %v242, 3
  %v993 = vadd.s32 %v253, 3
  %v994 = vadd.s32 %v264, 3
  %v995 = vadd.s32 %v275, 3
  %v996 = vadd.s32 %v286, 3
  %v997 = vadd.s32 %v297, 3
  %v998 = vadd.s32 %v308, 3
  %v999 = vadd.s32 %v319, 3
  %v1000 = vadd.s32 %v330, 3
  %v1001 = vadd.s32 %v341, 3
  %v1002 = vadd.s32 %v352, 3
  %v1003 = vadd.s32 %v363, 3
  %v1004 = vadd.s32 %v374, 3
  %v1005 = vadd.s32 %v385, 3
  %v1006 = vadd.s32 %v396, 3
  %v1007 = vadd.s32 %v407, 3
  %v1008 = vadd.s32 %v418, 3
  %v1009 = vadd.s32 %v429, 3
  %v1010 = vadd.s32 %v440, 3
  %v1011 = vadd.s32 %v451, 3
  %v1012 = vadd.s32 %v462, 3
  %v1013 = vadd.s32 %v473, 3
  %v1014 = vadd.s32 %v484, 3
  %v1015 = vadd.s32 %v495, 3
  %v1016 = vadd.s32 %v506, 3
  %v1017 = vadd.s32 %v517, 3
  %v1018 = vadd.s32 %v528, 3
  %v1019 = vadd.s32 %v539, 3
  %v1020 = vadd.s32 %v550, 3
  %v1021 = vadd.s32 %v561, 3
  %v1022 = vadd.s32 %v572, 3
  %v1023 = vadd.s32 %v583, 3
  %v1024 = vadd.s32 %v594, 3
  %v1025 = vadd.s32 %v605, 3
  %v1026 = vadd.s32 %v616, 3
  %v1027 = vadd.s32 %v627, 3
  %v1028 = vadd.s32 %v638, 3
  %v1029 = vadd.s32 %v649, 3
  %v1030 = vadd.s32 %v660, 3
  %v1031 = vadd.s32 %v671, 3
  %v1032 = vadd.s32 %v682, 3
  %v1033 = vadd.s32 %v693, 3
  %v1034 = vadd.s32 %v704, 3
  %v1035 = vadd.s32 %v715, 3
  %v1036 = vadd.s32 %v726, 3
  %v1037 = vadd.s32 %v737, 3
  %v1038 = vadd.s32 %v748, 3
  %v1039 = vadd.s32 %v759, 3
  %v1040 = vadd.s32 %v770, 3
  %v1041 = vadd.s32 %v781, 3
  %v1042 = vadd.s32 %v792, 3
  %v1043 = vadd.s32 %v803, 3
  %v1044 = vsel %vm924, %v984, %v154
  %v1045 = vsel %vm925, %v985, %v165
  %v1046 = vsel %vm926, %v986, %v176
  %v1047 = vsel %vm927, %v987, %v187
  %v1048 = vsel %vm928, %v988, %v198
  %v1049 = vsel %vm929, %v989, %v209
  %v1050 = vsel %vm930, %v990, %v220
  %v1051 = vsel %vm931, %v991, %v231
  %v1052 = vsel %vm932, %v992, %v242
  %v1053 = vsel %vm933, %v993, %v253
  %v1054 = vsel %vm934, %v994, %v264
  %v1055 = vsel %vm935, %v995, %v275
  %v1056 = vsel %vm936, %v996, %v286
  %v1057 = vsel %vm937, %v997, %v297
  %v1058 = vsel %vm938, %v998, %v308
  %v1059 = vsel %vm939, %v999, %v319
  %v1060 = vsel %vm940, %v1000, %v330
  %v1061 = vsel %vm941, %v1001, %v341
  %v1062 = vsel %vm942, %v1002, %v352
  %v1063 = vsel %vm943, %v1003, %v363
  %v1064 = vsel %vm944, %v1004, %v374
  %v1065 = vsel %vm945, %v1005, %v385
  %v1066 = vsel %vm946, %v1006, %v396
  %v1067 = vsel %vm947, %v1007, %v407
  %v1068 = vsel %vm948, %v1008, %v418
  %v1069 = vsel %vm949, %v1009, %v429
  %v1070 = vsel %vm950, %v1010, %v440
  %v1071 = vsel %vm951, %v1011, %v451
  %v1072 = vsel %vm952, %v1012, %v462
  %v1073 = vsel %vm953, %v1013, %v473
  %v1074 = vsel %vm954, %v1014, %v484
  %v1075 = vsel %vm955, %v1015, %v495
  %v1076 = vsel %vm956, %v1016, %v506
  %v1077 = vsel %vm957, %v1017, %v517
  %v1078 = vsel %vm958, %v1018, %v528
  %v1079 = vsel %vm959, %v1019, %v539
  %v1080 = vsel %vm960, %v1020, %v550
  %v1081 = vsel %vm961, %v1021, %v561
  %v1082 = vsel %vm962, %v1022, %v572
  %v1083 = vsel %vm963, %v1023, %v583
  %v1084 = vsel %vm964, %v1024, %v594
  %v1085 = vsel %vm965, %v1025, %v605
  %v1086 = vsel %vm966, %v1026, %v616
  %v1087 = vsel %vm967, %v1027, %v627
  %v1088 = vsel %vm968, %v1028, %v638
  %v1089 = vsel %vm969, %v1029, %v649
  %v1090 = vsel %vm970, %v1030, %v660
  %v1091 = vsel %vm971, %v1031, %v671
  %v1092 = vsel %vm972, %v1032, %v682
  %v1093 = vsel %vm973, %v1033, %v693
  %v1094 = vsel %vm974, %v1034, %v704
  %v1095 = vsel %vm975, %v1035, %v715
  %v1096 = vsel %vm976, %v1036, %v726
  %v1097 = vsel %vm977, %v1037, %v737
  %v1098 = vsel %vm978, %v1038, %v748
  %v1099 = vsel %vm979, %v1039, %v759
  %v1100 = vsel %vm980, %v1040, %v770
  %v1101 = vsel %vm981, %v1041, %v781
  %v1102 = vsel %vm982, %v1042, %v792
  %v1103 = vsel %vm983, %v1043, %v803
  %vm1104 = vcmp.eq.s32.totalorder %v1044, 0
  %vm1105 = vcmp.eq.s32.totalorder %v1045, 0
  %vm1106 = vcmp.eq.s32.totalorder %v1046, 0
  %vm1107 = vcmp.eq.s32.totalorder %v1047, 0
  %vm1108 = vcmp.eq.s32.totalorder %v1048, 0
  %vm1109 = vcmp.eq.s32.totalorder %v1049, 0
  %vm1110 = vcmp.eq.s32.totalorder %v1050, 0
  %vm1111 = vcmp.eq.s32.totalorder %v1051, 0
  %vm1112 = vcmp.eq.s32.totalorder %v1052, 0
  %vm1113 = vcmp.eq.s32.totalorder %v1053, 0
  %vm1114 = vcmp.eq.s32.totalorder %v1054, 0
  %vm1115 = vcmp.eq.s32.totalorder %v1055, 0
  %vm1116 = vcmp.eq.s32.totalorder %v1056, 0
  %vm1117 = vcmp.eq.s32.totalorder %v1057, 0
  %vm1118 = vcmp.eq.s32.totalorder %v1058, 0
  %vm1119 = vcmp.eq.s32.totalorder %v1059, 0
  %vm1120 = vcmp.eq.s32.totalorder %v1060, 0
  %vm1121 = vcmp.eq.s32.totalorder %v1061, 0
  %vm1122 = vcmp.eq.s32.totalorder %v1062, 0
  %vm1123 = vcmp.eq.s32.totalorder %v1063, 0
  %vm1124 = vcmp.eq.s32.totalorder %v1064, 0
  %vm1125 = vcmp.eq.s32.totalorder %v1065, 0
  %vm1126 = vcmp.eq.s32.totalorder %v1066, 0
  %vm1127 = vcmp.eq.s32.totalorder %v1067, 0
  %vm1128 = vcmp.eq.s32.totalorder %v1068, 0
  %vm1129 = vcmp.eq.s32.totalorder %v1069, 0
  %vm1130 = vcmp.eq.s32.totalorder %v1070, 0
  %vm1131 = vcmp.eq.s32.totalorder %v1071, 0
  %vm1132 = vcmp.eq.s32.totalorder %v1072, 0
  %vm1133 = vcmp.eq.s32.totalorder %v1073, 0
  %vm1134 = vcmp.eq.s32.totalorder %v1074, 0
  %vm1135 = vcmp.eq.s32.totalorder %v1075, 0
  %vm1136 = vcmp.eq.s32.totalorder %v1076, 0
  %vm1137 = vcmp.eq.s32.totalorder %v1077, 0
  %vm1138 = vcmp.eq.s32.totalorder %v1078, 0
  %vm1139 = vcmp.eq.s32.totalorder %v1079, 0
  %vm1140 = vcmp.eq.s32.totalorder %v1080, 0
  %vm1141 = vcmp.eq.s32.totalorder %v1081, 0
  %vm1142 = vcmp.eq.s32.totalorder %v1082, 0
  %vm1143 = vcmp.eq.s32.totalorder %v1083, 0
  %vm1144 = vcmp.eq.s32.totalorder %v1084, 0
  %vm1145 = vcmp.eq.s32.totalorder %v1085, 0
  %vm1146 = vcmp.eq.s32.totalorder %v1086, 0
  %vm1147 = vcmp.eq.s32.totalorder %v1087, 0
  %vm1148 = vcmp.eq.s32.totalorder %v1088, 0
  %vm1149 = vcmp.eq.s32.totalorder %v1089, 0
  %vm1150 = vcmp.eq.s32.totalorder %v1090, 0
  %vm1151 = vcmp.eq.s32.totalorder %v1091, 0
  %vm1152 = vcmp.eq.s32.totalorder %v1092, 0
  %vm1153 = vcmp.eq.s32.totalorder %v1093, 0
  %vm1154 = vcmp.eq.s32.totalorder %v1094, 0
  %vm1155 = vcmp.eq.s32.totalorder %v1095, 0
  %vm1156 = vcmp.eq.s32.totalorder %v1096, 0
  %vm1157 = vcmp.eq.s32.totalorder %v1097, 0
  %vm1158 = vcmp.eq.s32.totalorder %v1098, 0
  %vm1159 = vcmp.eq.s32.totalorder %v1099, 0
  %vm1160 = vcmp.eq.s32.totalorder %v1100, 0
  %vm1161 = vcmp.eq.s32.totalorder %v1101, 0
  %vm1162 = vcmp.eq.s32.totalorder %v1102, 0
  %vm1163 = vcmp.eq.s32.totalorder %v1103, 0
  %v1164 = vlaneseq
  %v1165 = vand.u32 %v1164, 127
  %1166 = vset.pattern.permute.xlu0 0
  %1167 = vperm.xlu0 %1166, %v23
  %v1168 = vpop.permute.xlu0 %1167
  %1169 = vset.pattern.permute.xlu0 0
  %1170 = vperm.xlu0 %1169, %v24
  %v1171 = vpop.permute.xlu0 %1170
  %1172 = vset.pattern.permute.xlu0 0
  %1173 = vperm.xlu0 %1172, %v25
  %v1174 = vpop.permute.xlu0 %1173
  %1175 = vset.pattern.permute.xlu0 0
  %1176 = vperm.xlu0 %1175, %v26
  %v1177 = vpop.permute.xlu0 %1176
  %1178 = vset.pattern.permute.xlu0 0
  %1179 = vperm.xlu0 %1178, %v27
  %v1180 = vpop.permute.xlu0 %1179
  %1181 = vset.pattern.permute.xlu0 0
  %1182 = vperm.xlu0 %1181, %v28
  %v1183 = vpop.permute.xlu0 %1182
  %1184 = vset.pattern.permute.xlu0 0
  %1185 = vperm.xlu0 %1184, %v29
  %v1186 = vpop.permute.xlu0 %1185
  %1187 = vset.pattern.permute.xlu0 0
  %1188 = vperm.xlu0 %1187, %v30
  %v1189 = vpop.permute.xlu0 %1188
  %1190 = vset.pattern.permute.xlu0 0
  %1191 = vperm.xlu0 %1190, %v31
  %v1192 = vpop.permute.xlu0 %1191
  %1193 = vset.pattern.permute.xlu0 0
  %1194 = vperm.xlu0 %1193, %v32
  %v1195 = vpop.permute.xlu0 %1194
  %1196 = vset.pattern.permute.xlu0 0
  %1197 = vperm.xlu0 %1196, %v33
  %v1198 = vpop.permute.xlu0 %1197
  %1199 = vset.pattern.permute.xlu0 0
  %1200 = vperm.xlu0 %1199, %v34
  %v1201 = vpop.permute.xlu0 %1200
  %1202 = vset.pattern.permute.xlu0 0
  %1203 = vperm.xlu0 %1202, %v35
  %v1204 = vpop.permute.xlu0 %1203
  %1205 = vset.pattern.permute.xlu0 0
  %1206 = vperm.xlu0 %1205, %v36
  %v1207 = vpop.permute.xlu0 %1206
  %1208 = vset.pattern.permute.xlu0 0
  %1209 = vperm.xlu0 %1208, %v37
  %v1210 = vpop.permute.xlu0 %1209
  %1211 = vset.pattern.permute.xlu0 0
  %1212 = vperm.xlu0 %1211, %v38
  %v1213 = vpop.permute.xlu0 %1212
  %1214 = vset.pattern.permute.xlu0 0
  %1215 = vperm.xlu0 %1214, %v39
  %v1216 = vpop.permute.xlu0 %1215
  %1217 = vset.pattern.permute.xlu0 0
  %1218 = vperm.xlu0 %1217, %v40
  %v1219 = vpop.permute.xlu0 %1218
  %1220 = vset.pattern.permute.xlu0 0
  %1221 = vperm.xlu0 %1220, %v41
  %v1222 = vpop.permute.xlu0 %1221
  %1223 = vset.pattern.permute.xlu0 0
  %1224 = vperm.xlu0 %1223, %v42
  %v1225 = vpop.permute.xlu0 %1224
  %1226 = vset.pattern.permute.xlu0 0
  %1227 = vperm.xlu0 %1226, %v43
  %v1228 = vpop.permute.xlu0 %1227
  %1229 = vset.pattern.permute.xlu0 0
  %1230 = vperm.xlu0 %1229, %v44
  %v1231 = vpop.permute.xlu0 %1230
  %1232 = vset.pattern.permute.xlu0 0
  %1233 = vperm.xlu0 %1232, %v45
  %v1234 = vpop.permute.xlu0 %1233
  %1235 = vset.pattern.permute.xlu0 0
  %1236 = vperm.xlu0 %1235, %v46
  %v1237 = vpop.permute.xlu0 %1236
  %1238 = vset.pattern.permute.xlu0 0
  %1239 = vperm.xlu0 %1238, %v47
  %v1240 = vpop.permute.xlu0 %1239
  %1241 = vset.pattern.permute.xlu0 0
  %1242 = vperm.xlu0 %1241, %v48
  %v1243 = vpop.permute.xlu0 %1242
  %1244 = vset.pattern.permute.xlu0 0
  %1245 = vperm.xlu0 %1244, %v49
  %v1246 = vpop.permute.xlu0 %1245
  %1247 = vset.pattern.permute.xlu0 0
  %1248 = vperm.xlu0 %1247, %v50
  %v1249 = vpop.permute.xlu0 %1248
  %1250 = vset.pattern.permute.xlu0 0
  %1251 = vperm.xlu0 %1250, %v51
  %v1252 = vpop.permute.xlu0 %1251
  %1253 = vset.pattern.permute.xlu0 0
  %1254 = vperm.xlu0 %1253, %v52
  %v1255 = vpop.permute.xlu0 %1254
  %1256 = vset.pattern.permute.xlu0 0
  %1257 = vperm.xlu0 %1256, %v53
  %v1258 = vpop.permute.xlu0 %1257
  %1259 = vset.pattern.permute.xlu0 0
  %1260 = vperm.xlu0 %1259, %v54
  %v1261 = vpop.permute.xlu0 %1260
  %1262 = vset.pattern.permute.xlu0 0
  %1263 = vperm.xlu0 %1262, %v55
  %v1264 = vpop.permute.xlu0 %1263
  %1265 = vset.pattern.permute.xlu0 0
  %1266 = vperm.xlu0 %1265, %v56
  %v1267 = vpop.permute.xlu0 %1266
  %1268 = vset.pattern.permute.xlu0 0
  %1269 = vperm.xlu0 %1268, %v57
  %v1270 = vpop.permute.xlu0 %1269
  %1271 = vset.pattern.permute.xlu0 0
  %1272 = vperm.xlu0 %1271, %v58
  %v1273 = vpop.permute.xlu0 %1272
  %1274 = vset.pattern.permute.xlu0 0
  %1275 = vperm.xlu0 %1274, %v59
  %v1276 = vpop.permute.xlu0 %1275
  %1277 = vset.pattern.permute.xlu0 0
  %1278 = vperm.xlu0 %1277, %v60
  %v1279 = vpop.permute.xlu0 %1278
  %1280 = vset.pattern.permute.xlu0 0
  %1281 = vperm.xlu0 %1280, %v61
  %v1282 = vpop.permute.xlu0 %1281
  %1283 = vset.pattern.permute.xlu0 0
  %1284 = vperm.xlu0 %1283, %v62
  %v1285 = vpop.permute.xlu0 %1284
  %1286 = vset.pattern.permute.xlu0 0
  %1287 = vperm.xlu0 %1286, %v63
  %v1288 = vpop.permute.xlu0 %1287
  %1289 = vset.pattern.permute.xlu0 0
  %1290 = vperm.xlu0 %1289, %v64
  %v1291 = vpop.permute.xlu0 %1290
  %1292 = vset.pattern.permute.xlu0 0
  %1293 = vperm.xlu0 %1292, %v65
  %v1294 = vpop.permute.xlu0 %1293
  %1295 = vset.pattern.permute.xlu0 0
  %1296 = vperm.xlu0 %1295, %v66
  %v1297 = vpop.permute.xlu0 %1296
  %1298 = vset.pattern.permute.xlu0 0
  %1299 = vperm.xlu0 %1298, %v67
  %v1300 = vpop.permute.xlu0 %1299
  %1301 = vset.pattern.permute.xlu0 0
  %1302 = vperm.xlu0 %1301, %v68
  %v1303 = vpop.permute.xlu0 %1302
  %1304 = vset.pattern.permute.xlu0 0
  %1305 = vperm.xlu0 %1304, %v69
  %v1306 = vpop.permute.xlu0 %1305
  %1307 = vset.pattern.permute.xlu0 0
  %1308 = vperm.xlu0 %1307, %v70
  %v1309 = vpop.permute.xlu0 %1308
  %1310 = vset.pattern.permute.xlu0 0
  %1311 = vperm.xlu0 %1310, %v71
  %v1312 = vpop.permute.xlu0 %1311
  %1313 = vset.pattern.permute.xlu0 0
  %1314 = vperm.xlu0 %1313, %v72
  %v1315 = vpop.permute.xlu0 %1314
  %1316 = vset.pattern.permute.xlu0 0
  %1317 = vperm.xlu0 %1316, %v73
  %v1318 = vpop.permute.xlu0 %1317
  %1319 = vset.pattern.permute.xlu0 0
  %1320 = vperm.xlu0 %1319, %v74
  %v1321 = vpop.permute.xlu0 %1320
  %1322 = vset.pattern.permute.xlu0 0
  %1323 = vperm.xlu0 %1322, %v75
  %v1324 = vpop.permute.xlu0 %1323
  %1325 = vset.pattern.permute.xlu0 0
  %1326 = vperm.xlu0 %1325, %v76
  %v1327 = vpop.permute.xlu0 %1326
  %1328 = vset.pattern.permute.xlu0 0
  %1329 = vperm.xlu0 %1328, %v77
  %v1330 = vpop.permute.xlu0 %1329
  %1331 = vset.pattern.permute.xlu0 0
  %1332 = vperm.xlu0 %1331, %v78
  %v1333 = vpop.permute.xlu0 %1332
  %1334 = vset.pattern.permute.xlu0 0
  %1335 = vperm.xlu0 %1334, %v79
  %v1336 = vpop.permute.xlu0 %1335
  %1337 = vset.pattern.permute.xlu0 0
  %1338 = vperm.xlu0 %1337, %v80
  %v1339 = vpop.permute.xlu0 %1338
  %1340 = vset.pattern.permute.xlu0 0
  %1341 = vperm.xlu0 %1340, %v81
  %v1342 = vpop.permute.xlu0 %1341
  %1343 = vset.pattern.permute.xlu0 0
  %1344 = vperm.xlu0 %1343, %v82
  %v1345 = vpop.permute.xlu0 %1344
  %vm1346 = vcmp.eq.s32.totalorder %v1165, %v1168
  %vm1347 = vcmp.eq.s32.totalorder %v1165, %v1171
  %vm1348 = vcmp.eq.s32.totalorder %v1165, %v1174
  %vm1349 = vcmp.eq.s32.totalorder %v1165, %v1177
  %vm1350 = vcmp.eq.s32.totalorder %v1165, %v1180
  %vm1351 = vcmp.eq.s32.totalorder %v1165, %v1183
  %vm1352 = vcmp.eq.s32.totalorder %v1165, %v1186
  %vm1353 = vcmp.eq.s32.totalorder %v1165, %v1189
  %vm1354 = vcmp.eq.s32.totalorder %v1165, %v1192
  %vm1355 = vcmp.eq.s32.totalorder %v1165, %v1195
  %vm1356 = vcmp.eq.s32.totalorder %v1165, %v1198
  %vm1357 = vcmp.eq.s32.totalorder %v1165, %v1201
  %vm1358 = vcmp.eq.s32.totalorder %v1165, %v1204
  %vm1359 = vcmp.eq.s32.totalorder %v1165, %v1207
  %vm1360 = vcmp.eq.s32.totalorder %v1165, %v1210
  %vm1361 = vcmp.eq.s32.totalorder %v1165, %v1213
  %vm1362 = vcmp.eq.s32.totalorder %v1165, %v1216
  %vm1363 = vcmp.eq.s32.totalorder %v1165, %v1219
  %vm1364 = vcmp.eq.s32.totalorder %v1165, %v1222
  %vm1365 = vcmp.eq.s32.totalorder %v1165, %v1225
  %vm1366 = vcmp.eq.s32.totalorder %v1165, %v1228
  %vm1367 = vcmp.eq.s32.totalorder %v1165, %v1231
  %vm1368 = vcmp.eq.s32.totalorder %v1165, %v1234
  %vm1369 = vcmp.eq.s32.totalorder %v1165, %v1237
  %vm1370 = vcmp.eq.s32.totalorder %v1165, %v1240
  %vm1371 = vcmp.eq.s32.totalorder %v1165, %v1243
  %vm1372 = vcmp.eq.s32.totalorder %v1165, %v1246
  %vm1373 = vcmp.eq.s32.totalorder %v1165, %v1249
  %vm1374 = vcmp.eq.s32.totalorder %v1165, %v1252
  %vm1375 = vcmp.eq.s32.totalorder %v1165, %v1255
  %vm1376 = vcmp.eq.s32.totalorder %v1165, %v1258
  %vm1377 = vcmp.eq.s32.totalorder %v1165, %v1261
  %vm1378 = vcmp.eq.s32.totalorder %v1165, %v1264
  %vm1379 = vcmp.eq.s32.totalorder %v1165, %v1267
  %vm1380 = vcmp.eq.s32.totalorder %v1165, %v1270
  %vm1381 = vcmp.eq.s32.totalorder %v1165, %v1273
  %vm1382 = vcmp.eq.s32.totalorder %v1165, %v1276
  %vm1383 = vcmp.eq.s32.totalorder %v1165, %v1279
  %vm1384 = vcmp.eq.s32.totalorder %v1165, %v1282
  %vm1385 = vcmp.eq.s32.totalorder %v1165, %v1285
  %vm1386 = vcmp.eq.s32.totalorder %v1165, %v1288
  %vm1387 = vcmp.eq.s32.totalorder %v1165, %v1291
  %vm1388 = vcmp.eq.s32.totalorder %v1165, %v1294
  %vm1389 = vcmp.eq.s32.totalorder %v1165, %v1297
  %vm1390 = vcmp.eq.s32.totalorder %v1165, %v1300
  %vm1391 = vcmp.eq.s32.totalorder %v1165, %v1303
  %vm1392 = vcmp.eq.s32.totalorder %v1165, %v1306
  %vm1393 = vcmp.eq.s32.totalorder %v1165, %v1309
  %vm1394 = vcmp.eq.s32.totalorder %v1165, %v1312
  %vm1395 = vcmp.eq.s32.totalorder %v1165, %v1315
  %vm1396 = vcmp.eq.s32.totalorder %v1165, %v1318
  %vm1397 = vcmp.eq.s32.totalorder %v1165, %v1321
  %vm1398 = vcmp.eq.s32.totalorder %v1165, %v1324
  %vm1399 = vcmp.eq.s32.totalorder %v1165, %v1327
  %vm1400 = vcmp.eq.s32.totalorder %v1165, %v1330
  %vm1401 = vcmp.eq.s32.totalorder %v1165, %v1333
  %vm1402 = vcmp.eq.s32.totalorder %v1165, %v1336
  %vm1403 = vcmp.eq.s32.totalorder %v1165, %v1339
  %vm1404 = vcmp.eq.s32.totalorder %v1165, %v1342
  %vm1405 = vcmp.eq.s32.totalorder %v1165, %v1345
  %v1406 = vsel %vm1346, 1, 0
  %v1407 = vsel %vm1347, 1, 0
  %v1408 = vsel %vm1348, 1, 0
  %v1409 = vsel %vm1349, 1, 0
  %v1410 = vsel %vm1350, 1, 0
  %v1411 = vsel %vm1351, 1, 0
  %v1412 = vsel %vm1352, 1, 0
  %v1413 = vsel %vm1353, 1, 0
  %v1414 = vsel %vm1354, 1, 0
  %v1415 = vsel %vm1355, 1, 0
  %v1416 = vsel %vm1356, 1, 0
  %v1417 = vsel %vm1357, 1, 0
  %v1418 = vsel %vm1358, 1, 0
  %v1419 = vsel %vm1359, 1, 0
  %v1420 = vsel %vm1360, 1, 0
  %v1421 = vsel %vm1361, 1, 0
  %v1422 = vsel %vm1362, 1, 0
  %v1423 = vsel %vm1363, 1, 0
  %v1424 = vsel %vm1364, 1, 0
  %v1425 = vsel %vm1365, 1, 0
  %v1426 = vsel %vm1366, 1, 0
  %v1427 = vsel %vm1367, 1, 0
  %v1428 = vsel %vm1368, 1, 0
  %v1429 = vsel %vm1369, 1, 0
  %v1430 = vsel %vm1370, 1, 0
  %v1431 = vsel %vm1371, 1, 0
  %v1432 = vsel %vm1372, 1, 0
  %v1433 = vsel %vm1373, 1, 0
  %v1434 = vsel %vm1374, 1, 0
  %v1435 = vsel %vm1375, 1, 0
  %v1436 = vsel %vm1376, 1, 0
  %v1437 = vsel %vm1377, 1, 0
  %v1438 = vsel %vm1378, 1, 0
  %v1439 = vsel %vm1379, 1, 0
  %v1440 = vsel %vm1380, 1, 0
  %v1441 = vsel %vm1381, 1, 0
  %v1442 = vsel %vm1382, 1, 0
  %v1443 = vsel %vm1383, 1, 0
  %v1444 = vsel %vm1384, 1, 0
  %v1445 = vsel %vm1385, 1, 0
  %v1446 = vsel %vm1386, 1, 0
  %v1447 = vsel %vm1387, 1, 0
  %v1448 = vsel %vm1388, 1, 0
  %v1449 = vsel %vm1389, 1, 0
  %v1450 = vsel %vm1390, 1, 0
  %v1451 = vsel %vm1391, 1, 0
  %v1452 = vsel %vm1392, 1, 0
  %v1453 = vsel %vm1393, 1, 0
  %v1454 = vsel %vm1394, 1, 0
  %v1455 = vsel %vm1395, 1, 0
  %v1456 = vsel %vm1396, 1, 0
  %v1457 = vsel %vm1397, 1, 0
  %v1458 = vsel %vm1398, 1, 0
  %v1459 = vsel %vm1399, 1, 0
  %v1460 = vsel %vm1400, 1, 0
  %v1461 = vsel %vm1401, 1, 0
  %v1462 = vsel %vm1402, 1, 0
  %v1463 = vsel %vm1403, 1, 0
  %v1464 = vsel %vm1404, 1, 0
  %v1465 = vsel %vm1405, 1, 0
  %v1466 = vcvt.s32.f32 %v1406
  %v1467 = vcvt.s32.f32 %v1407
  %v1468 = vcvt.s32.f32 %v1408
  %v1469 = vcvt.s32.f32 %v1409
  %v1470 = vcvt.s32.f32 %v1410
  %v1471 = vcvt.s32.f32 %v1411
  %v1472 = vcvt.s32.f32 %v1412
  %v1473 = vcvt.s32.f32 %v1413
  %v1474 = vcvt.s32.f32 %v1414
  %v1475 = vcvt.s32.f32 %v1415
  %v1476 = vcvt.s32.f32 %v1416
  %v1477 = vcvt.s32.f32 %v1417
  %v1478 = vcvt.s32.f32 %v1418
  %v1479 = vcvt.s32.f32 %v1419
  %v1480 = vcvt.s32.f32 %v1420
  %v1481 = vcvt.s32.f32 %v1421
  %v1482 = vcvt.s32.f32 %v1422
  %v1483 = vcvt.s32.f32 %v1423
  %v1484 = vcvt.s32.f32 %v1424
  %v1485 = vcvt.s32.f32 %v1425
  %v1486 = vcvt.s32.f32 %v1426
  %v1487 = vcvt.s32.f32 %v1427
  %v1488 = vcvt.s32.f32 %v1428
  %v1489 = vcvt.s32.f32 %v1429
  %v1490 = vcvt.s32.f32 %v1430
  %v1491 = vcvt.s32.f32 %v1431
  %v1492 = vcvt.s32.f32 %v1432
  %v1493 = vcvt.s32.f32 %v1433
  %v1494 = vcvt.s32.f32 %v1434
  %v1495 = vcvt.s32.f32 %v1435
  %v1496 = vcvt.s32.f32 %v1436
  %v1497 = vcvt.s32.f32 %v1437
  %v1498 = vcvt.s32.f32 %v1438
  %v1499 = vcvt.s32.f32 %v1439
  %v1500 = vcvt.s32.f32 %v1440
  %v1501 = vcvt.s32.f32 %v1441
  %v1502 = vcvt.s32.f32 %v1442
  %v1503 = vcvt.s32.f32 %v1443
  %v1504 = vcvt.s32.f32 %v1444
  %v1505 = vcvt.s32.f32 %v1445
  %v1506 = vcvt.s32.f32 %v1446
  %v1507 = vcvt.s32.f32 %v1447
  %v1508 = vcvt.s32.f32 %v1448
  %v1509 = vcvt.s32.f32 %v1449
  %v1510 = vcvt.s32.f32 %v1450
  %v1511 = vcvt.s32.f32 %v1451
  %v1512 = vcvt.s32.f32 %v1452
  %v1513 = vcvt.s32.f32 %v1453
  %v1514 = vcvt.s32.f32 %v1454
  %v1515 = vcvt.s32.f32 %v1455
  %v1516 = vcvt.s32.f32 %v1456
  %v1517 = vcvt.s32.f32 %v1457
  %v1518 = vcvt.s32.f32 %v1458
  %v1519 = vcvt.s32.f32 %v1459
  %v1520 = vcvt.s32.f32 %v1460
  %v1521 = vcvt.s32.f32 %v1461
  %v1522 = vcvt.s32.f32 %v1462
  %v1523 = vcvt.s32.f32 %v1463
  %v1524 = vcvt.s32.f32 %v1464
  %v1525 = vcvt.s32.f32 %v1465
  %v1526 = vld [vmem:[%s2] sm:$0xf]
  %vm1527 = vcmask 31744
  %v1529 = vsel %vm1527, %v1466, 0
  %v1532 = vsel %vm1527, %v1467, 0
  %v1535 = vsel %vm1527, %v1468, 0
  %v1538 = vsel %vm1527, %v1469, 0
  %v1541 = vsel %vm1527, %v1470, 0
  %v1544 = vsel %vm1527, %v1471, 0
  %v1547 = vsel %vm1527, %v1472, 0
  %v1550 = vsel %vm1527, %v1473, 0
  %v1553 = vsel %vm1527, %v1474, 0
  %v1556 = vsel %vm1527, %v1475, 0
  %v1559 = vsel %vm1527, %v1476, 0
  %v1562 = vsel %vm1527, %v1477, 0
  %v1565 = vsel %vm1527, %v1478, 0
  %v1568 = vsel %vm1527, %v1479, 0
  %v1571 = vsel %vm1527, %v1480, 0
  %v1574 = vsel %vm1527, %v1481, 0
  %v1577 = vsel %vm1527, %v1482, 0
  %v1580 = vsel %vm1527, %v1483, 0
  %v1583 = vsel %vm1527, %v1484, 0
  %v1586 = vsel %vm1527, %v1485, 0
  %v1589 = vsel %vm1527, %v1486, 0
  %v1592 = vsel %vm1527, %v1487, 0
  %v1595 = vsel %vm1527, %v1488, 0
  %v1598 = vsel %vm1527, %v1489, 0
  %v1601 = vsel %vm1527, %v1490, 0
  %v1604 = vsel %vm1527, %v1491, 0
  %v1607 = vsel %vm1527, %v1492, 0
  %v1610 = vsel %vm1527, %v1493, 0
  %v1613 = vsel %vm1527, %v1494, 0
  %v1616 = vsel %vm1527, %v1495, 0
  %v1619 = vsel %vm1527, %v1496, 0
  %v1622 = vsel %vm1527, %v1497, 0
  %v1625 = vsel %vm1527, %v1498, 0
  %v1628 = vsel %vm1527, %v1499, 0
  %v1631 = vsel %vm1527, %v1500, 0
  %v1634 = vsel %vm1527, %v1501, 0
  %v1637 = vsel %vm1527, %v1502, 0
  %v1640 = vsel %vm1527, %v1503, 0
  %v1643 = vsel %vm1527, %v1504, 0
  %v1646 = vsel %vm1527, %v1505, 0
  %v1649 = vsel %vm1527, %v1506, 0
  %v1652 = vsel %vm1527, %v1507, 0
  %v1655 = vsel %vm1527, %v1508, 0
  %v1658 = vsel %vm1527, %v1509, 0
  %v1661 = vsel %vm1527, %v1510, 0
  %v1664 = vsel %vm1527, %v1511, 0
  %v1667 = vsel %vm1527, %v1512, 0
  %v1670 = vsel %vm1527, %v1513, 0
  %v1673 = vsel %vm1527, %v1514, 0
  %v1676 = vsel %vm1527, %v1515, 0
  %v1679 = vsel %vm1527, %v1516, 0
  %v1682 = vsel %vm1527, %v1517, 0
  %v1685 = vsel %vm1527, %v1518, 0
  %v1688 = vsel %vm1527, %v1519, 0
  %v1691 = vsel %vm1527, %v1520, 0
  %v1694 = vsel %vm1527, %v1521, 0
  %v1697 = vsel %vm1527, %v1522, 0
  %v1700 = vsel %vm1527, %v1523, 0
  %v1703 = vsel %vm1527, %v1524, 0
  %v1706 = vsel %vm1527, %v1525, 0
  %vm1708 = vcmask 1043456
  %v1710 = vsel %vm1708, %v1526, 0
  %1712 = vmatprep.subr.mxu0 0.0
  %1713 = vmatpush1.msra.mxu0 %v1710
  %1714 = vmatprep.subr.mxu0 0.0
  %1715 = vmatpush1.msra.mxu0 0.0
  %1716 = vmatprep.subr.mxu0 0.0
  %1717 = vmatpush1.msra.mxu0 0.0
  %1718 = vmatprep.subr.mxu0 0.0
  %1719 = vmatpush1.msra.mxu0 0.0
  %1720 = vmatprep.subr.mxu0 0.0
  %1721 = vmatpush1.msra.mxu0 0.0
  %1722 = vmatprep.subr.mxu0 0.0
  %1723 = vmatpush1.msra.mxu0 0.0
  %1724 = vmatprep.subr.mxu0 0.0
  %1725 = vmatpush1.msra.mxu0 0.0
  %1726 = vmatprep.subr.mxu0 0.0
  %1727 = vmatpush1.msra.mxu0 0.0
  %1728 = vmatprep.subr.mxu0 0.0
  %1729 = vmatpush1.msra.mxu0 0.0
  %1730 = vmatprep.subr.mxu0 0.0
  %1731 = vmatpush1.msra.mxu0 0.0
  %1732 = vmatprep.subr.mxu0 0.0
  %1733 = vmatpush1.msra.mxu0 0.0
  %1734 = vmatprep.subr.mxu0 0.0
  %1735 = vmatpush1.msra.mxu0 0.0
  %1736 = vmatprep.subr.mxu0 0.0
  %1737 = vmatpush1.msra.mxu0 0.0
  %1738 = vmatprep.subr.mxu0 0.0
  %1739 = vmatpush1.msra.mxu0 0.0
  %1740 = vmatprep.subr.mxu0 0.0
  %1741 = vmatpush1.msra.mxu0 0.0
  %1742 = vmatprep.subr.mxu0 0.0
  %1743 = vmatpush1.msra.mxu0 0.0
  %1744 = vmatprep.subr.mxu0 0.0
  %1745 = vmatpush1.msra.mxu0 0.0
  %1746 = vmatprep.subr.mxu0 0.0
  %1747 = vmatpush1.msra.mxu0 0.0
  %1748 = vmatprep.subr.mxu0 0.0
  %1749 = vmatpush1.msra.mxu0 0.0
  %1750 = vmatprep.subr.mxu0 0.0
  %1751 = vmatpush1.msra.mxu0 0.0
  %1752 = vmatprep.subr.mxu0 0.0
  %1753 = vmatpush1.msra.mxu0 0.0
  %1754 = vmatprep.subr.mxu0 0.0
  %1755 = vmatpush1.msra.mxu0 0.0
  %1756 = vmatprep.subr.mxu0 0.0
  %1757 = vmatpush1.msra.mxu0 0.0
  %1758 = vmatprep.subr.mxu0 0.0
  %1759 = vmatpush1.msra.mxu0 0.0
  %1760 = vmatprep.subr.mxu0 0.0
  %1761 = vmatpush1.msra.mxu0 0.0
  %1762 = vmatprep.subr.mxu0 0.0
  %1763 = vmatpush1.msra.mxu0 0.0
  %1764 = vmatprep.subr.mxu0 0.0
  %1765 = vmatpush1.msra.mxu0 0.0
  %1766 = vmatprep.subr.mxu0 0.0
  %1767 = vmatpush1.msra.mxu0 0.0
  %1768 = vmatprep.subr.mxu0 0.0
  %1769 = vmatpush1.msra.mxu0 0.0
  %1770 = vmatprep.subr.mxu0 0.0
  %1771 = vmatpush1.msra.mxu0 0.0
  %1772 = vmatprep.subr.mxu0 0.0
  %1773 = vmatpush1.msra.mxu0 0.0
  %1774 = vmatprep.subr.mxu0 0.0
  %1775 = vmatpush1.msra.mxu0 0.0
  %1776 = vmatprep.mubr.f32.mxu0 0.0
  %1777 = vmatmul.mubr.f32.gmra.mrb[0].mxu0 %v1529
  %v1778 = vpop.f32.mrb[0].mxu0
  %v1779 = vadd.f32 0.0, %v1778
  %v1780 = vpop.f32.mrb[0].mxu0
  %1781 = vmatprep.mubr.f32.mxu0 0.0
  %1782 = vmatmul.mubr.f32.gmra.mrb[0].mxu0 %v1532
  %v1783 = vpop.f32.mrb[0].mxu0
  %v1784 = vadd.f32 0.0, %v1783
  %v1785 = vpop.f32.mrb[0].mxu0
  %1786 = vmatprep.mubr.f32.mxu0 0.0
  %1787 = vmatmul.mubr.f32.gmra.mrb[0].mxu0 %v1535
  %v1788 = vpop.f32.mrb[0].mxu0
  %v1789 = vadd.f32 0.0, %v1788
  %v1790 = vpop.f32.mrb[0].mxu0
  %1791 = vmatprep.mubr.f32.mxu0 0.0
  %1792 = vmatmul.mubr.f32.gmra.mrb[0].mxu0 %v1538
  %v1793 = vpop.f32.mrb[0].mxu0
  %v1794 = vadd.f32 0.0, %v1793
  %v1795 = vpop.f32.mrb[0].mxu0
  %1796 = vmatprep.mubr.f32.mxu0 0.0
  %1797 = vmatmul.mubr.f32.gmra.mrb[0].mxu0 %v1541
  %v1798 = vpop.f32.mrb[0].mxu0
  %v1799 = vadd.f32 0.0, %v1798
  %v1800 = vpop.f32.mrb[0].mxu0
  %1801 = vmatprep.mubr.f32.mxu0 0.0
  %1802 = vmatmul.mubr.f32.gmra.mrb[0].mxu0 %v1544
  %v1803 = vpop.f32.mrb[0].mxu0
  %v1804 = vadd.f32 0.0, %v1803
  %v1805 = vpop.f32.mrb[0].mxu0
  %1806 = vmatprep.mubr.f32.mxu0 0.0
  %1807 = vmatmul.mubr.f32.gmra.mrb[0].mxu0 %v1547
  %v1808 = vpop.f32.mrb[0].mxu0
  %v1809 = vadd.f32 0.0, %v1808
  %v1810 = vpop.f32.mrb[0].mxu0
  %1811 = vmatprep.mubr.f32.mxu0 0.0
  %1812 = vmatmul.mubr.f32.gmra.mrb[0].mxu0 %v1550
  %v1813 = vpop.f32.mrb[0].mxu0
  %v1814 = vadd.f32 0.0, %v1813
  %v1815 = vpop.f32.mrb[0].mxu0
  %1816 = vmatprep.mubr.f32.mxu0 0.0
  %1817 = vmatmul.mubr.f32.gmra.mrb[0].mxu0 %v1553
  %v1818 = vpop.f32.mrb[0].mxu0
  %v1819 = vadd.f32 0.0, %v1818
  %v1820 = vpop.f32.mrb[0].mxu0
  %1821 = vmatprep.mubr.f32.mxu0 0.0
  %1822 = vmatmul.mubr.f32.gmra.mrb[0].mxu0 %v1556
  %v1823 = vpop.f32.mrb[0].mxu0
  %v1824 = vadd.f32 0.0, %v1823
  %v1825 = vpop.f32.mrb[0].mxu0
  %1826 = vmatprep.mubr.f32.mxu0 0.0
  %1827 = vmatmul.mubr.f32.gmra.mrb[0].mxu0 %v1559
  %v1828 = vpop.f32.mrb[0].mxu0
  %v1829 = vadd.f32 0.0, %v1828
  %v1830 = vpop.f32.mrb[0].mxu0
  %1831 = vmatprep.mubr.f32.mxu0 0.0
  %1832 = vmatmul.mubr.f32.gmra.mrb[0].mxu0 %v1562
  %v1833 = vpop.f32.mrb[0].mxu0
  %v1834 = vadd.f32 0.0, %v1833
  %v1835 = vpop.f32.mrb[0].mxu0
  %1836 = vmatprep.mubr.f32.mxu0 0.0
  %1837 = vmatmul.mubr.f32.gmra.mrb[0].mxu0 %v1565
  %v1838 = vpop.f32.mrb[0].mxu0
  %v1839 = vadd.f32 0.0, %v1838
  %v1840 = vpop.f32.mrb[0].mxu0
  %1841 = vmatprep.mubr.f32.mxu0 0.0
  %1842 = vmatmul.mubr.f32.gmra.mrb[0].mxu0 %v1568
  %v1843 = vpop.f32.mrb[0].mxu0
  %v1844 = vadd.f32 0.0, %v1843
  %v1845 = vpop.f32.mrb[0].mxu0
  %1846 = vmatprep.mubr.f32.mxu0 0.0
  %1847 = vmatmul.mubr.f32.gmra.mrb[0].mxu0 %v1571
  %v1848 = vpop.f32.mrb[0].mxu0
  %v1849 = vadd.f32 0.0, %v1848
  %v1850 = vpop.f32.mrb[0].mxu0
  %1851 = vmatprep.mubr.f32.mxu0 0.0
  %1852 = vmatmul.mubr.f32.gmra.mrb[0].mxu0 %v1574
  %v1853 = vpop.f32.mrb[0].mxu0
  %v1854 = vadd.f32 0.0, %v1853
  %v1855 = vpop.f32.mrb[0].mxu0
  %1856 = vmatprep.mubr.f32.mxu0 0.0
  %1857 = vmatmul.mubr.f32.gmra.mrb[0].mxu0 %v1577
  %v1858 = vpop.f32.mrb[0].mxu0
  %v1859 = vadd.f32 0.0, %v1858
  %v1860 = vpop.f32.mrb[0].mxu0
  %1861 = vmatprep.mubr.f32.mxu0 0.0
  %1862 = vmatmul.mubr.f32.gmra.mrb[0].mxu0 %v1580
  %v1863 = vpop.f32.mrb[0].mxu0
  %v1864 = vadd.f32 0.0, %v1863
  %v1865 = vpop.f32.mrb[0].mxu0
  %1866 = vmatprep.mubr.f32.mxu0 0.0
  %1867 = vmatmul.mubr.f32.gmra.mrb[0].mxu0 %v1583
  %v1868 = vpop.f32.mrb[0].mxu0
  %v1869 = vadd.f32 0.0, %v1868
  %v1870 = vpop.f32.mrb[0].mxu0
  %1871 = vmatprep.mubr.f32.mxu0 0.0
  %1872 = vmatmul.mubr.f32.gmra.mrb[0].mxu0 %v1586
  %v1873 = vpop.f32.mrb[0].mxu0
  %v1874 = vadd.f32 0.0, %v1873
  %v1875 = vpop.f32.mrb[0].mxu0
  %1876 = vmatprep.mubr.f32.mxu0 0.0
  %1877 = vmatmul.mubr.f32.gmra.mrb[0].mxu0 %v1589
  %v1878 = vpop.f32.mrb[0].mxu0
  %v1879 = vadd.f32 0.0, %v1878
  %v1880 = vpop.f32.mrb[0].mxu0
  %1881 = vmatprep.mubr.f32.mxu0 0.0
  %1882 = vmatmul.mubr.f32.gmra.mrb[0].mxu0 %v1592
  %v1883 = vpop.f32.mrb[0].mxu0
  %v1884 = vadd.f32 0.0, %v1883
  %v1885 = vpop.f32.mrb[0].mxu0
  %1886 = vmatprep.mubr.f32.mxu0 0.0
  %1887 = vmatmul.mubr.f32.gmra.mrb[0].mxu0 %v1595
  %v1888 = vpop.f32.mrb[0].mxu0
  %v1889 = vadd.f32 0.0, %v1888
  %v1890 = vpop.f32.mrb[0].mxu0
  %1891 = vmatprep.mubr.f32.mxu0 0.0
  %1892 = vmatmul.mubr.f32.gmra.mrb[0].mxu0 %v1598
  %v1893 = vpop.f32.mrb[0].mxu0
  %v1894 = vadd.f32 0.0, %v1893
  %v1895 = vpop.f32.mrb[0].mxu0
  %1896 = vmatprep.mubr.f32.mxu0 0.0
  %1897 = vmatmul.mubr.f32.gmra.mrb[0].mxu0 %v1601
  %v1898 = vpop.f32.mrb[0].mxu0
  %v1899 = vadd.f32 0.0, %v1898
  %v1900 = vpop.f32.mrb[0].mxu0
  %1901 = vmatprep.mubr.f32.mxu0 0.0
  %1902 = vmatmul.mubr.f32.gmra.mrb[0].mxu0 %v1604
  %v1903 = vpop.f32.mrb[0].mxu0
  %v1904 = vadd.f32 0.0, %v1903
  %v1905 = vpop.f32.mrb[0].mxu0
  %1906 = vmatprep.mubr.f32.mxu0 0.0
  %1907 = vmatmul.mubr.f32.gmra.mrb[0].mxu0 %v1607
  %v1908 = vpop.f32.mrb[0].mxu0
  %v1909 = vadd.f32 0.0, %v1908
  %v1910 = vpop.f32.mrb[0].mxu0
  %1911 = vmatprep.mubr.f32.mxu0 0.0
  %1912 = vmatmul.mubr.f32.gmra.mrb[0].mxu0 %v1610
  %v1913 = vpop.f32.mrb[0].mxu0
  %v1914 = vadd.f32 0.0, %v1913
  %v1915 = vpop.f32.mrb[0].mxu0
  %1916 = vmatprep.mubr.f32.mxu0 0.0
  %1917 = vmatmul.mubr.f32.gmra.mrb[0].mxu0 %v1613
  %v1918 = vpop.f32.mrb[0].mxu0
  %v1919 = vadd.f32 0.0, %v1918
  %v1920 = vpop.f32.mrb[0].mxu0
  %1921 = vmatprep.mubr.f32.mxu0 0.0
  %1922 = vmatmul.mubr.f32.gmra.mrb[0].mxu0 %v1616
  %v1923 = vpop.f32.mrb[0].mxu0
  %v1924 = vadd.f32 0.0, %v1923
  %v1925 = vpop.f32.mrb[0].mxu0
  %1926 = vmatprep.mubr.f32.mxu0 0.0
  %1927 = vmatmul.mubr.f32.gmra.mrb[0].mxu0 %v1619
  %v1928 = vpop.f32.mrb[0].mxu0
  %v1929 = vadd.f32 0.0, %v1928
  %v1930 = vpop.f32.mrb[0].mxu0
  %1931 = vmatprep.mubr.f32.mxu0 0.0
  %1932 = vmatmul.mubr.f32.gmra.mrb[0].mxu0 %v1622
  %v1933 = vpop.f32.mrb[0].mxu0
  %v1934 = vadd.f32 0.0, %v1933
  %v1935 = vpop.f32.mrb[0].mxu0
  %1936 = vmatprep.mubr.f32.mxu0 0.0
  %1937 = vmatmul.mubr.f32.gmra.mrb[0].mxu0 %v1625
  %v1938 = vpop.f32.mrb[0].mxu0
  %v1939 = vadd.f32 0.0, %v1938
  %v1940 = vpop.f32.mrb[0].mxu0
  %1941 = vmatprep.mubr.f32.mxu0 0.0
  %1942 = vmatmul.mubr.f32.gmra.mrb[0].mxu0 %v1628
  %v1943 = vpop.f32.mrb[0].mxu0
  %v1944 = vadd.f32 0.0, %v1943
  %v1945 = vpop.f32.mrb[0].mxu0
  %1946 = vmatprep.mubr.f32.mxu0 0.0
  %1947 = vmatmul.mubr.f32.gmra.mrb[0].mxu0 %v1631
  %v1948 = vpop.f32.mrb[0].mxu0
  %v1949 = vadd.f32 0.0, %v1948
  %v1950 = vpop.f32.mrb[0].mxu0
  %1951 = vmatprep.mubr.f32.mxu0 0.0
  %1952 = vmatmul.mubr.f32.gmra.mrb[0].mxu0 %v1634
  %v1953 = vpop.f32.mrb[0].mxu0
  %v1954 = vadd.f32 0.0, %v1953
  %v1955 = vpop.f32.mrb[0].mxu0
  %1956 = vmatprep.mubr.f32.mxu0 0.0
  %1957 = vmatmul.mubr.f32.gmra.mrb[0].mxu0 %v1637
  %v1958 = vpop.f32.mrb[0].mxu0
  %v1959 = vadd.f32 0.0, %v1958
  %v1960 = vpop.f32.mrb[0].mxu0
  %1961 = vmatprep.mubr.f32.mxu0 0.0
  %1962 = vmatmul.mubr.f32.gmra.mrb[0].mxu0 %v1640
  %v1963 = vpop.f32.mrb[0].mxu0
  %v1964 = vadd.f32 0.0, %v1963
  %v1965 = vpop.f32.mrb[0].mxu0
  %1966 = vmatprep.mubr.f32.mxu0 0.0
  %1967 = vmatmul.mubr.f32.gmra.mrb[0].mxu0 %v1643
  %v1968 = vpop.f32.mrb[0].mxu0
  %v1969 = vadd.f32 0.0, %v1968
  %v1970 = vpop.f32.mrb[0].mxu0
  %1971 = vmatprep.mubr.f32.mxu0 0.0
  %1972 = vmatmul.mubr.f32.gmra.mrb[0].mxu0 %v1646
  %v1973 = vpop.f32.mrb[0].mxu0
  %v1974 = vadd.f32 0.0, %v1973
  %v1975 = vpop.f32.mrb[0].mxu0
  %1976 = vmatprep.mubr.f32.mxu0 0.0
  %1977 = vmatmul.mubr.f32.gmra.mrb[0].mxu0 %v1649
  %v1978 = vpop.f32.mrb[0].mxu0
  %v1979 = vadd.f32 0.0, %v1978
  %v1980 = vpop.f32.mrb[0].mxu0
  %1981 = vmatprep.mubr.f32.mxu0 0.0
  %1982 = vmatmul.mubr.f32.gmra.mrb[0].mxu0 %v1652
  %v1983 = vpop.f32.mrb[0].mxu0
  %v1984 = vadd.f32 0.0, %v1983
  %v1985 = vpop.f32.mrb[0].mxu0
  %1986 = vmatprep.mubr.f32.mxu0 0.0
  %1987 = vmatmul.mubr.f32.gmra.mrb[0].mxu0 %v1655
  %v1988 = vpop.f32.mrb[0].mxu0
  %v1989 = vadd.f32 0.0, %v1988
  %v1990 = vpop.f32.mrb[0].mxu0
  %1991 = vmatprep.mubr.f32.mxu0 0.0
  %1992 = vmatmul.mubr.f32.gmra.mrb[0].mxu0 %v1658
  %v1993 = vpop.f32.mrb[0].mxu0
  %v1994 = vadd.f32 0.0, %v1993
  %v1995 = vpop.f32.mrb[0].mxu0
  %1996 = vmatprep.mubr.f32.mxu0 0.0
  %1997 = vmatmul.mubr.f32.gmra.mrb[0].mxu0 %v1661
  %v1998 = vpop.f32.mrb[0].mxu0
  %v1999 = vadd.f32 0.0, %v1998
  %v2000 = vpop.f32.mrb[0].mxu0
  %2001 = vmatprep.mubr.f32.mxu0 0.0
  %2002 = vmatmul.mubr.f32.gmra.mrb[0].mxu0 %v1664
  %v2003 = vpop.f32.mrb[0].mxu0
  %v2004 = vadd.f32 0.0, %v2003
  %v2005 = vpop.f32.mrb[0].mxu0
  %2006 = vmatprep.mubr.f32.mxu0 0.0
  %2007 = vmatmul.mubr.f32.gmra.mrb[0].mxu0 %v1667
  %v2008 = vpop.f32.mrb[0].mxu0
  %v2009 = vadd.f32 0.0, %v2008
  %v2010 = vpop.f32.mrb[0].mxu0
  %2011 = vmatprep.mubr.f32.mxu0 0.0
  %2012 = vmatmul.mubr.f32.gmra.mrb[0].mxu0 %v1670
  %v2013 = vpop.f32.mrb[0].mxu0
  %v2014 = vadd.f32 0.0, %v2013
  %v2015 = vpop.f32.mrb[0].mxu0
  %2016 = vmatprep.mubr.f32.mxu0 0.0
  %2017 = vmatmul.mubr.f32.gmra.mrb[0].mxu0 %v1673
  %v2018 = vpop.f32.mrb[0].mxu0
  %v2019 = vadd.f32 0.0, %v2018
  %v2020 = vpop.f32.mrb[0].mxu0
  %2021 = vmatprep.mubr.f32.mxu0 0.0
  %2022 = vmatmul.mubr.f32.gmra.mrb[0].mxu0 %v1676
  %v2023 = vpop.f32.mrb[0].mxu0
  %v2024 = vadd.f32 0.0, %v2023
  %v2025 = vpop.f32.mrb[0].mxu0
  %2026 = vmatprep.mubr.f32.mxu0 0.0
  %2027 = vmatmul.mubr.f32.gmra.mrb[0].mxu0 %v1679
  %v2028 = vpop.f32.mrb[0].mxu0
  %v2029 = vadd.f32 0.0, %v2028
  %v2030 = vpop.f32.mrb[0].mxu0
  %2031 = vmatprep.mubr.f32.mxu0 0.0
  %2032 = vmatmul.mubr.f32.gmra.mrb[0].mxu0 %v1682
  %v2033 = vpop.f32.mrb[0].mxu0
  %v2034 = vadd.f32 0.0, %v2033
  %v2035 = vpop.f32.mrb[0].mxu0
  %2036 = vmatprep.mubr.f32.mxu0 0.0
  %2037 = vmatmul.mubr.f32.gmra.mrb[0].mxu0 %v1685
  %v2038 = vpop.f32.mrb[0].mxu0
  %v2039 = vadd.f32 0.0, %v2038
  %v2040 = vpop.f32.mrb[0].mxu0
  %2041 = vmatprep.mubr.f32.mxu0 0.0
  %2042 = vmatmul.mubr.f32.gmra.mrb[0].mxu0 %v1688
  %v2043 = vpop.f32.mrb[0].mxu0
  %v2044 = vadd.f32 0.0, %v2043
  %v2045 = vpop.f32.mrb[0].mxu0
  %2046 = vmatprep.mubr.f32.mxu0 0.0
  %2047 = vmatmul.mubr.f32.gmra.mrb[0].mxu0 %v1691
  %v2048 = vpop.f32.mrb[0].mxu0
  %v2049 = vadd.f32 0.0, %v2048
  %v2050 = vpop.f32.mrb[0].mxu0
  %2051 = vmatprep.mubr.f32.mxu0 0.0
  %2052 = vmatmul.mubr.f32.gmra.mrb[0].mxu0 %v1694
  %v2053 = vpop.f32.mrb[0].mxu0
  %v2054 = vadd.f32 0.0, %v2053
  %v2055 = vpop.f32.mrb[0].mxu0
  %2056 = vmatprep.mubr.f32.mxu0 0.0
  %2057 = vmatmul.mubr.f32.gmra.mrb[0].mxu0 %v1697
  %v2058 = vpop.f32.mrb[0].mxu0
  %v2059 = vadd.f32 0.0, %v2058
  %v2060 = vpop.f32.mrb[0].mxu0
  %2061 = vmatprep.mubr.f32.mxu0 0.0
  %2062 = vmatmul.mubr.f32.gmra.mrb[0].mxu0 %v1700
  %v2063 = vpop.f32.mrb[0].mxu0
  %v2064 = vadd.f32 0.0, %v2063
  %v2065 = vpop.f32.mrb[0].mxu0
  %2066 = vmatprep.mubr.f32.mxu0 0.0
  %2067 = vmatmul.mubr.f32.gmra.mrb[0].mxu0 %v1703
  %v2068 = vpop.f32.mrb[0].mxu0
  %v2069 = vadd.f32 0.0, %v2068
  %v2070 = vpop.f32.mrb[0].mxu0
  %2071 = vmatprep.mubr.f32.mxu0 0.0
  %2072 = vmatmul.mubr.f32.gmra.mrb[0].mxu0 %v1706
  %v2073 = vpop.f32.mrb[0].mxu0
  %v2074 = vadd.f32 0.0, %v2073
  %v2075 = vpop.f32.mrb[0].mxu0
  %2076 = vdwg.mxu0
  %vm2077 = vcmp.eq.s32.totalorder %v23, 1
  %vm2078 = vcmp.eq.s32.totalorder %v24, 1
  %vm2079 = vcmp.eq.s32.totalorder %v25, 1
  %vm2080 = vcmp.eq.s32.totalorder %v26, 1
  %vm2081 = vcmp.eq.s32.totalorder %v27, 1
  %vm2082 = vcmp.eq.s32.totalorder %v28, 1
  %vm2083 = vcmp.eq.s32.totalorder %v29, 1
  %vm2084 = vcmp.eq.s32.totalorder %v30, 1
  %vm2085 = vcmp.eq.s32.totalorder %v31, 1
  %vm2086 = vcmp.eq.s32.totalorder %v32, 1
  %vm2087 = vcmp.eq.s32.totalorder %v33, 1
  %vm2088 = vcmp.eq.s32.totalorder %v34, 1
  %vm2089 = vcmp.eq.s32.totalorder %v35, 1
  %vm2090 = vcmp.eq.s32.totalorder %v36, 1
  %vm2091 = vcmp.eq.s32.totalorder %v37, 1
  %vm2092 = vcmp.eq.s32.totalorder %v38, 1
  %vm2093 = vcmp.eq.s32.totalorder %v39, 1
  %vm2094 = vcmp.eq.s32.totalorder %v40, 1
  %vm2095 = vcmp.eq.s32.totalorder %v41, 1
  %vm2096 = vcmp.eq.s32.totalorder %v42, 1
  %vm2097 = vcmp.eq.s32.totalorder %v43, 1
  %vm2098 = vcmp.eq.s32.totalorder %v44, 1
  %vm2099 = vcmp.eq.s32.totalorder %v45, 1
  %vm2100 = vcmp.eq.s32.totalorder %v46, 1
  %vm2101 = vcmp.eq.s32.totalorder %v47, 1
  %vm2102 = vcmp.eq.s32.totalorder %v48, 1
  %vm2103 = vcmp.eq.s32.totalorder %v49, 1
  %vm2104 = vcmp.eq.s32.totalorder %v50, 1
  %vm2105 = vcmp.eq.s32.totalorder %v51, 1
  %vm2106 = vcmp.eq.s32.totalorder %v52, 1
  %vm2107 = vcmp.eq.s32.totalorder %v53, 1
  %vm2108 = vcmp.eq.s32.totalorder %v54, 1
  %vm2109 = vcmp.eq.s32.totalorder %v55, 1
  %vm2110 = vcmp.eq.s32.totalorder %v56, 1
  %vm2111 = vcmp.eq.s32.totalorder %v57, 1
  %vm2112 = vcmp.eq.s32.totalorder %v58, 1
  %vm2113 = vcmp.eq.s32.totalorder %v59, 1
  %vm2114 = vcmp.eq.s32.totalorder %v60, 1
  %vm2115 = vcmp.eq.s32.totalorder %v61, 1
  %vm2116 = vcmp.eq.s32.totalorder %v62, 1
  %vm2117 = vcmp.eq.s32.totalorder %v63, 1
  %vm2118 = vcmp.eq.s32.totalorder %v64, 1
  %vm2119 = vcmp.eq.s32.totalorder %v65, 1
  %vm2120 = vcmp.eq.s32.totalorder %v66, 1
  %vm2121 = vcmp.eq.s32.totalorder %v67, 1
  %vm2122 = vcmp.eq.s32.totalorder %v68, 1
  %vm2123 = vcmp.eq.s32.totalorder %v69, 1
  %vm2124 = vcmp.eq.s32.totalorder %v70, 1
  %vm2125 = vcmp.eq.s32.totalorder %v71, 1
  %vm2126 = vcmp.eq.s32.totalorder %v72, 1
  %vm2127 = vcmp.eq.s32.totalorder %v73, 1
  %vm2128 = vcmp.eq.s32.totalorder %v74, 1
  %vm2129 = vcmp.eq.s32.totalorder %v75, 1
  %vm2130 = vcmp.eq.s32.totalorder %v76, 1
  %vm2131 = vcmp.eq.s32.totalorder %v77, 1
  %vm2132 = vcmp.eq.s32.totalorder %v78, 1
  %vm2133 = vcmp.eq.s32.totalorder %v79, 1
  %vm2134 = vcmp.eq.s32.totalorder %v80, 1
  %vm2135 = vcmp.eq.s32.totalorder %v81, 1
  %vm2136 = vcmp.eq.s32.totalorder %v82, 1
  %v2137 = vld [vmem:[%s1 + $0x1] sm:$0x1]
  %v2138 = vld [vmem:[%s1] sm:$0x1]
  %v2139 = vsel %vm2077, 1, 0
  %v2140 = vsel %vm2078, 1, 0
  %v2141 = vsel %vm2079, 1, 0
  %v2142 = vsel %vm2080, 1, 0
  %v2143 = vsel %vm2081, 1, 0
  %v2144 = vsel %vm2082, 1, 0
  %v2145 = vsel %vm2083, 1, 0
  %v2146 = vsel %vm2084, 1, 0
  %v2147 = vsel %vm2085, 1, 0
  %v2148 = vsel %vm2086, 1, 0
  %v2149 = vsel %vm2087, 1, 0
  %v2150 = vsel %vm2088, 1, 0
  %v2151 = vsel %vm2089, 1, 0
  %v2152 = vsel %vm2090, 1, 0
  %v2153 = vsel %vm2091, 1, 0
  %v2154 = vsel %vm2092, 1, 0
  %v2155 = vsel %vm2093, 1, 0
  %v2156 = vsel %vm2094, 1, 0
  %v2157 = vsel %vm2095, 1, 0
  %v2158 = vsel %vm2096, 1, 0
  %v2159 = vsel %vm2097, 1, 0
  %v2160 = vsel %vm2098, 1, 0
  %v2161 = vsel %vm2099, 1, 0
  %v2162 = vsel %vm2100, 1, 0
  %v2163 = vsel %vm2101, 1, 0
  %v2164 = vsel %vm2102, 1, 0
  %v2165 = vsel %vm2103, 1, 0
  %v2166 = vsel %vm2104, 1, 0
  %v2167 = vsel %vm2105, 1, 0
  %v2168 = vsel %vm2106, 1, 0
  %v2169 = vsel %vm2107, 1, 0
  %v2170 = vsel %vm2108, 1, 0
  %v2171 = vsel %vm2109, 1, 0
  %v2172 = vsel %vm2110, 1, 0
  %v2173 = vsel %vm2111, 1, 0
  %v2174 = vsel %vm2112, 1, 0
  %v2175 = vsel %vm2113, 1, 0
  %v2176 = vsel %vm2114, 1, 0
  %v2177 = vsel %vm2115, 1, 0
  %v2178 = vsel %vm2116, 1, 0
  %v2179 = vsel %vm2117, 1, 0
  %v2180 = vsel %vm2118, 1, 0
  %v2181 = vsel %vm2119, 1, 0
  %v2182 = vsel %vm2120, 1, 0
  %v2183 = vsel %vm2121, 1, 0
  %v2184 = vsel %vm2122, 1, 0
  %v2185 = vsel %vm2123, 1, 0
  %v2186 = vsel %vm2124, 1, 0
  %v2187 = vsel %vm2125, 1, 0
  %v2188 = vsel %vm2126, 1, 0
  %v2189 = vsel %vm2127, 1, 0
  %v2190 = vsel %vm2128, 1, 0
  %v2191 = vsel %vm2129, 1, 0
  %v2192 = vsel %vm2130, 1, 0
  %v2193 = vsel %vm2131, 1, 0
  %v2194 = vsel %vm2132, 1, 0
  %v2195 = vsel %vm2133, 1, 0
  %v2196 = vsel %vm2134, 1, 0
  %v2197 = vsel %vm2135, 1, 0
  %v2198 = vsel %vm2136, 1, 0
  %2199 = vset.pattern.permute.xlu0 0
  %2200 = vperm.xlu0 %2199, %v2139
  %v2201 = vpop.permute.xlu0 %2200
  %2202 = vset.pattern.permute.xlu0 0
  %2203 = vperm.xlu0 %2202, %v2140
  %v2204 = vpop.permute.xlu0 %2203
  %2205 = vset.pattern.permute.xlu0 0
  %2206 = vperm.xlu0 %2205, %v2141
  %v2207 = vpop.permute.xlu0 %2206
  %2208 = vset.pattern.permute.xlu0 0
  %2209 = vperm.xlu0 %2208, %v2142
  %v2210 = vpop.permute.xlu0 %2209
  %2211 = vset.pattern.permute.xlu0 0
  %2212 = vperm.xlu0 %2211, %v2143
  %v2213 = vpop.permute.xlu0 %2212
  %2214 = vset.pattern.permute.xlu0 0
  %2215 = vperm.xlu0 %2214, %v2144
  %v2216 = vpop.permute.xlu0 %2215
  %2217 = vset.pattern.permute.xlu0 0
  %2218 = vperm.xlu0 %2217, %v2145
  %v2219 = vpop.permute.xlu0 %2218
  %2220 = vset.pattern.permute.xlu0 0
  %2221 = vperm.xlu0 %2220, %v2146
  %v2222 = vpop.permute.xlu0 %2221
  %2223 = vset.pattern.permute.xlu0 0
  %2224 = vperm.xlu0 %2223, %v2147
  %v2225 = vpop.permute.xlu0 %2224
  %2226 = vset.pattern.permute.xlu0 0
  %2227 = vperm.xlu0 %2226, %v2148
  %v2228 = vpop.permute.xlu0 %2227
  %2229 = vset.pattern.permute.xlu0 0
  %2230 = vperm.xlu0 %2229, %v2149
  %v2231 = vpop.permute.xlu0 %2230
  %2232 = vset.pattern.permute.xlu0 0
  %2233 = vperm.xlu0 %2232, %v2150
  %v2234 = vpop.permute.xlu0 %2233
  %2235 = vset.pattern.permute.xlu0 0
  %2236 = vperm.xlu0 %2235, %v2151
  %v2237 = vpop.permute.xlu0 %2236
  %2238 = vset.pattern.permute.xlu0 0
  %2239 = vperm.xlu0 %2238, %v2152
  %v2240 = vpop.permute.xlu0 %2239
  %2241 = vset.pattern.permute.xlu0 0
  %2242 = vperm.xlu0 %2241, %v2153
  %v2243 = vpop.permute.xlu0 %2242
  %2244 = vset.pattern.permute.xlu0 0
  %2245 = vperm.xlu0 %2244, %v2154
  %v2246 = vpop.permute.xlu0 %2245
  %2247 = vset.pattern.permute.xlu0 0
  %2248 = vperm.xlu0 %2247, %v2155
  %v2249 = vpop.permute.xlu0 %2248
  %2250 = vset.pattern.permute.xlu0 0
  %2251 = vperm.xlu0 %2250, %v2156
  %v2252 = vpop.permute.xlu0 %2251
  %2253 = vset.pattern.permute.xlu0 0
  %2254 = vperm.xlu0 %2253, %v2157
  %v2255 = vpop.permute.xlu0 %2254
  %2256 = vset.pattern.permute.xlu0 0
  %2257 = vperm.xlu0 %2256, %v2158
  %v2258 = vpop.permute.xlu0 %2257
  %2259 = vset.pattern.permute.xlu0 0
  %2260 = vperm.xlu0 %2259, %v2159
  %v2261 = vpop.permute.xlu0 %2260
  %2262 = vset.pattern.permute.xlu0 0
  %2263 = vperm.xlu0 %2262, %v2160
  %v2264 = vpop.permute.xlu0 %2263
  %2265 = vset.pattern.permute.xlu0 0
  %2266 = vperm.xlu0 %2265, %v2161
  %v2267 = vpop.permute.xlu0 %2266
  %2268 = vset.pattern.permute.xlu0 0
  %2269 = vperm.xlu0 %2268, %v2162
  %v2270 = vpop.permute.xlu0 %2269
  %2271 = vset.pattern.permute.xlu0 0
  %2272 = vperm.xlu0 %2271, %v2163
  %v2273 = vpop.permute.xlu0 %2272
  %2274 = vset.pattern.permute.xlu0 0
  %2275 = vperm.xlu0 %2274, %v2164
  %v2276 = vpop.permute.xlu0 %2275
  %2277 = vset.pattern.permute.xlu0 0
  %2278 = vperm.xlu0 %2277, %v2165
  %v2279 = vpop.permute.xlu0 %2278
  %2280 = vset.pattern.permute.xlu0 0
  %2281 = vperm.xlu0 %2280, %v2166
  %v2282 = vpop.permute.xlu0 %2281
  %2283 = vset.pattern.permute.xlu0 0
  %2284 = vperm.xlu0 %2283, %v2167
  %v2285 = vpop.permute.xlu0 %2284
  %2286 = vset.pattern.permute.xlu0 0
  %2287 = vperm.xlu0 %2286, %v2168
  %v2288 = vpop.permute.xlu0 %2287
  %2289 = vset.pattern.permute.xlu0 0
  %2290 = vperm.xlu0 %2289, %v2169
  %v2291 = vpop.permute.xlu0 %2290
  %2292 = vset.pattern.permute.xlu0 0
  %2293 = vperm.xlu0 %2292, %v2170
  %v2294 = vpop.permute.xlu0 %2293
  %2295 = vset.pattern.permute.xlu0 0
  %2296 = vperm.xlu0 %2295, %v2171
  %v2297 = vpop.permute.xlu0 %2296
  %2298 = vset.pattern.permute.xlu0 0
  %2299 = vperm.xlu0 %2298, %v2172
  %v2300 = vpop.permute.xlu0 %2299
  %2301 = vset.pattern.permute.xlu0 0
  %2302 = vperm.xlu0 %2301, %v2173
  %v2303 = vpop.permute.xlu0 %2302
  %2304 = vset.pattern.permute.xlu0 0
  %2305 = vperm.xlu0 %2304, %v2174
  %v2306 = vpop.permute.xlu0 %2305
  %2307 = vset.pattern.permute.xlu0 0
  %2308 = vperm.xlu0 %2307, %v2175
  %v2309 = vpop.permute.xlu0 %2308
  %2310 = vset.pattern.permute.xlu0 0
  %2311 = vperm.xlu0 %2310, %v2176
  %v2312 = vpop.permute.xlu0 %2311
  %2313 = vset.pattern.permute.xlu0 0
  %2314 = vperm.xlu0 %2313, %v2177
  %v2315 = vpop.permute.xlu0 %2314
  %2316 = vset.pattern.permute.xlu0 0
  %2317 = vperm.xlu0 %2316, %v2178
  %v2318 = vpop.permute.xlu0 %2317
  %2319 = vset.pattern.permute.xlu0 0
  %2320 = vperm.xlu0 %2319, %v2179
  %v2321 = vpop.permute.xlu0 %2320
  %2322 = vset.pattern.permute.xlu0 0
  %2323 = vperm.xlu0 %2322, %v2180
  %v2324 = vpop.permute.xlu0 %2323
  %2325 = vset.pattern.permute.xlu0 0
  %2326 = vperm.xlu0 %2325, %v2181
  %v2327 = vpop.permute.xlu0 %2326
  %2328 = vset.pattern.permute.xlu0 0
  %2329 = vperm.xlu0 %2328, %v2182
  %v2330 = vpop.permute.xlu0 %2329
  %2331 = vset.pattern.permute.xlu0 0
  %2332 = vperm.xlu0 %2331, %v2183
  %v2333 = vpop.permute.xlu0 %2332
  %2334 = vset.pattern.permute.xlu0 0
  %2335 = vperm.xlu0 %2334, %v2184
  %v2336 = vpop.permute.xlu0 %2335
  %2337 = vset.pattern.permute.xlu0 0
  %2338 = vperm.xlu0 %2337, %v2185
  %v2339 = vpop.permute.xlu0 %2338
  %2340 = vset.pattern.permute.xlu0 0
  %2341 = vperm.xlu0 %2340, %v2186
  %v2342 = vpop.permute.xlu0 %2341
  %2343 = vset.pattern.permute.xlu0 0
  %2344 = vperm.xlu0 %2343, %v2187
  %v2345 = vpop.permute.xlu0 %2344
  %2346 = vset.pattern.permute.xlu0 0
  %2347 = vperm.xlu0 %2346, %v2188
  %v2348 = vpop.permute.xlu0 %2347
  %2349 = vset.pattern.permute.xlu0 0
  %2350 = vperm.xlu0 %2349, %v2189
  %v2351 = vpop.permute.xlu0 %2350
  %2352 = vset.pattern.permute.xlu0 0
  %2353 = vperm.xlu0 %2352, %v2190
  %v2354 = vpop.permute.xlu0 %2353
  %2355 = vset.pattern.permute.xlu0 0
  %2356 = vperm.xlu0 %2355, %v2191
  %v2357 = vpop.permute.xlu0 %2356
  %2358 = vset.pattern.permute.xlu0 0
  %2359 = vperm.xlu0 %2358, %v2192
  %v2360 = vpop.permute.xlu0 %2359
  %2361 = vset.pattern.permute.xlu0 0
  %2362 = vperm.xlu0 %2361, %v2193
  %v2363 = vpop.permute.xlu0 %2362
  %2364 = vset.pattern.permute.xlu0 0
  %2365 = vperm.xlu0 %2364, %v2194
  %v2366 = vpop.permute.xlu0 %2365
  %2367 = vset.pattern.permute.xlu0 0
  %2368 = vperm.xlu0 %2367, %v2195
  %v2369 = vpop.permute.xlu0 %2368
  %2370 = vset.pattern.permute.xlu0 0
  %2371 = vperm.xlu0 %2370, %v2196
  %v2372 = vpop.permute.xlu0 %2371
  %2373 = vset.pattern.permute.xlu0 0
  %2374 = vperm.xlu0 %2373, %v2197
  %v2375 = vpop.permute.xlu0 %2374
  %2376 = vset.pattern.permute.xlu0 0
  %2377 = vperm.xlu0 %2376, %v2198
  %v2378 = vpop.permute.xlu0 %2377
  %vm2379 = vcmp.eq.s32.totalorder %v2201, 1
  %vm2380 = vcmp.eq.s32.totalorder %v2204, 1
  %vm2381 = vcmp.eq.s32.totalorder %v2207, 1
  %vm2382 = vcmp.eq.s32.totalorder %v2210, 1
  %vm2383 = vcmp.eq.s32.totalorder %v2213, 1
  %vm2384 = vcmp.eq.s32.totalorder %v2216, 1
  %vm2385 = vcmp.eq.s32.totalorder %v2219, 1
  %vm2386 = vcmp.eq.s32.totalorder %v2222, 1
  %vm2387 = vcmp.eq.s32.totalorder %v2225, 1
  %vm2388 = vcmp.eq.s32.totalorder %v2228, 1
  %vm2389 = vcmp.eq.s32.totalorder %v2231, 1
  %vm2390 = vcmp.eq.s32.totalorder %v2234, 1
  %vm2391 = vcmp.eq.s32.totalorder %v2237, 1
  %vm2392 = vcmp.eq.s32.totalorder %v2240, 1
  %vm2393 = vcmp.eq.s32.totalorder %v2243, 1
  %vm2394 = vcmp.eq.s32.totalorder %v2246, 1
  %vm2395 = vcmp.eq.s32.totalorder %v2249, 1
  %vm2396 = vcmp.eq.s32.totalorder %v2252, 1
  %vm2397 = vcmp.eq.s32.totalorder %v2255, 1
  %vm2398 = vcmp.eq.s32.totalorder %v2258, 1
  %vm2399 = vcmp.eq.s32.totalorder %v2261, 1
  %vm2400 = vcmp.eq.s32.totalorder %v2264, 1
  %vm2401 = vcmp.eq.s32.totalorder %v2267, 1
  %vm2402 = vcmp.eq.s32.totalorder %v2270, 1
  %vm2403 = vcmp.eq.s32.totalorder %v2273, 1
  %vm2404 = vcmp.eq.s32.totalorder %v2276, 1
  %vm2405 = vcmp.eq.s32.totalorder %v2279, 1
  %vm2406 = vcmp.eq.s32.totalorder %v2282, 1
  %vm2407 = vcmp.eq.s32.totalorder %v2285, 1
  %vm2408 = vcmp.eq.s32.totalorder %v2288, 1
  %vm2409 = vcmp.eq.s32.totalorder %v2291, 1
  %vm2410 = vcmp.eq.s32.totalorder %v2294, 1
  %vm2411 = vcmp.eq.s32.totalorder %v2297, 1
  %vm2412 = vcmp.eq.s32.totalorder %v2300, 1
  %vm2413 = vcmp.eq.s32.totalorder %v2303, 1
  %vm2414 = vcmp.eq.s32.totalorder %v2306, 1
  %vm2415 = vcmp.eq.s32.totalorder %v2309, 1
  %vm2416 = vcmp.eq.s32.totalorder %v2312, 1
  %vm2417 = vcmp.eq.s32.totalorder %v2315, 1
  %vm2418 = vcmp.eq.s32.totalorder %v2318, 1
  %vm2419 = vcmp.eq.s32.totalorder %v2321, 1
  %vm2420 = vcmp.eq.s32.totalorder %v2324, 1
  %vm2421 = vcmp.eq.s32.totalorder %v2327, 1
  %vm2422 = vcmp.eq.s32.totalorder %v2330, 1
  %vm2423 = vcmp.eq.s32.totalorder %v2333, 1
  %vm2424 = vcmp.eq.s32.totalorder %v2336, 1
  %vm2425 = vcmp.eq.s32.totalorder %v2339, 1
  %vm2426 = vcmp.eq.s32.totalorder %v2342, 1
  %vm2427 = vcmp.eq.s32.totalorder %v2345, 1
  %vm2428 = vcmp.eq.s32.totalorder %v2348, 1
  %vm2429 = vcmp.eq.s32.totalorder %v2351, 1
  %vm2430 = vcmp.eq.s32.totalorder %v2354, 1
  %vm2431 = vcmp.eq.s32.totalorder %v2357, 1
  %vm2432 = vcmp.eq.s32.totalorder %v2360, 1
  %vm2433 = vcmp.eq.s32.totalorder %v2363, 1
  %vm2434 = vcmp.eq.s32.totalorder %v2366, 1
  %vm2435 = vcmp.eq.s32.totalorder %v2369, 1
  %vm2436 = vcmp.eq.s32.totalorder %v2372, 1
  %vm2437 = vcmp.eq.s32.totalorder %v2375, 1
  %vm2438 = vcmp.eq.s32.totalorder %v2378, 1
  %v2439 = vlaneseq
  %v2440 = vshrl.u32 %v2439, 7
  %v2441 = vsub.s32 0, %v2440
  %v2442 = vrot.slane %v2137, %v2441
  %v2443 = vlaneseq
  %v2444 = vshrl.u32 %v2443, 7
  %v2445 = vsub.s32 0, %v2444
  %v2446 = vrot.slane %v2138, %v2445
  %v2447 = vsel %vm2379, %v2442, %v2446
  %v2448 = vsel %vm2380, %v2442, %v2446
  %v2449 = vsel %vm2381, %v2442, %v2446
  %v2450 = vsel %vm2382, %v2442, %v2446
  %v2451 = vsel %vm2383, %v2442, %v2446
  %v2452 = vsel %vm2384, %v2442, %v2446
  %v2453 = vsel %vm2385, %v2442, %v2446
  %v2454 = vsel %vm2386, %v2442, %v2446
  %v2455 = vsel %vm2387, %v2442, %v2446
  %v2456 = vsel %vm2388, %v2442, %v2446
  %v2457 = vsel %vm2389, %v2442, %v2446
  %v2458 = vsel %vm2390, %v2442, %v2446
  %v2459 = vsel %vm2391, %v2442, %v2446
  %v2460 = vsel %vm2392, %v2442, %v2446
  %v2461 = vsel %vm2393, %v2442, %v2446
  %v2462 = vsel %vm2394, %v2442, %v2446
  %v2463 = vsel %vm2395, %v2442, %v2446
  %v2464 = vsel %vm2396, %v2442, %v2446
  %v2465 = vsel %vm2397, %v2442, %v2446
  %v2466 = vsel %vm2398, %v2442, %v2446
  %v2467 = vsel %vm2399, %v2442, %v2446
  %v2468 = vsel %vm2400, %v2442, %v2446
  %v2469 = vsel %vm2401, %v2442, %v2446
  %v2470 = vsel %vm2402, %v2442, %v2446
  %v2471 = vsel %vm2403, %v2442, %v2446
  %v2472 = vsel %vm2404, %v2442, %v2446
  %v2473 = vsel %vm2405, %v2442, %v2446
  %v2474 = vsel %vm2406, %v2442, %v2446
  %v2475 = vsel %vm2407, %v2442, %v2446
  %v2476 = vsel %vm2408, %v2442, %v2446
  %v2477 = vsel %vm2409, %v2442, %v2446
  %v2478 = vsel %vm2410, %v2442, %v2446
  %v2479 = vsel %vm2411, %v2442, %v2446
  %v2480 = vsel %vm2412, %v2442, %v2446
  %v2481 = vsel %vm2413, %v2442, %v2446
  %v2482 = vsel %vm2414, %v2442, %v2446
  %v2483 = vsel %vm2415, %v2442, %v2446
  %v2484 = vsel %vm2416, %v2442, %v2446
  %v2485 = vsel %vm2417, %v2442, %v2446
  %v2486 = vsel %vm2418, %v2442, %v2446
  %v2487 = vsel %vm2419, %v2442, %v2446
  %v2488 = vsel %vm2420, %v2442, %v2446
  %v2489 = vsel %vm2421, %v2442, %v2446
  %v2490 = vsel %vm2422, %v2442, %v2446
  %v2491 = vsel %vm2423, %v2442, %v2446
  %v2492 = vsel %vm2424, %v2442, %v2446
  %v2493 = vsel %vm2425, %v2442, %v2446
  %v2494 = vsel %vm2426, %v2442, %v2446
  %v2495 = vsel %vm2427, %v2442, %v2446
  %v2496 = vsel %vm2428, %v2442, %v2446
  %v2497 = vsel %vm2429, %v2442, %v2446
  %v2498 = vsel %vm2430, %v2442, %v2446
  %v2499 = vsel %vm2431, %v2442, %v2446
  %v2500 = vsel %vm2432, %v2442, %v2446
  %v2501 = vsel %vm2433, %v2442, %v2446
  %v2502 = vsel %vm2434, %v2442, %v2446
  %v2503 = vsel %vm2435, %v2442, %v2446
  %v2504 = vsel %vm2436, %v2442, %v2446
  %v2505 = vsel %vm2437, %v2442, %v2446
  %v2506 = vsel %vm2438, %v2442, %v2446
  %v2507 = vsel %vm1104, 1, 0
  %v2508 = vsel %vm1105, 1, 0
  %v2509 = vsel %vm1106, 1, 0
  %v2510 = vsel %vm1107, 1, 0
  %v2511 = vsel %vm1108, 1, 0
  %v2512 = vsel %vm1109, 1, 0
  %v2513 = vsel %vm1110, 1, 0
  %v2514 = vsel %vm1111, 1, 0
  %v2515 = vsel %vm1112, 1, 0
  %v2516 = vsel %vm1113, 1, 0
  %v2517 = vsel %vm1114, 1, 0
  %v2518 = vsel %vm1115, 1, 0
  %v2519 = vsel %vm1116, 1, 0
  %v2520 = vsel %vm1117, 1, 0
  %v2521 = vsel %vm1118, 1, 0
  %v2522 = vsel %vm1119, 1, 0
  %v2523 = vsel %vm1120, 1, 0
  %v2524 = vsel %vm1121, 1, 0
  %v2525 = vsel %vm1122, 1, 0
  %v2526 = vsel %vm1123, 1, 0
  %v2527 = vsel %vm1124, 1, 0
  %v2528 = vsel %vm1125, 1, 0
  %v2529 = vsel %vm1126, 1, 0
  %v2530 = vsel %vm1127, 1, 0
  %v2531 = vsel %vm1128, 1, 0
  %v2532 = vsel %vm1129, 1, 0
  %v2533 = vsel %vm1130, 1, 0
  %v2534 = vsel %vm1131, 1, 0
  %v2535 = vsel %vm1132, 1, 0
  %v2536 = vsel %vm1133, 1, 0
  %v2537 = vsel %vm1134, 1, 0
  %v2538 = vsel %vm1135, 1, 0
  %v2539 = vsel %vm1136, 1, 0
  %v2540 = vsel %vm1137, 1, 0
  %v2541 = vsel %vm1138, 1, 0
  %v2542 = vsel %vm1139, 1, 0
  %v2543 = vsel %vm1140, 1, 0
  %v2544 = vsel %vm1141, 1, 0
  %v2545 = vsel %vm1142, 1, 0
  %v2546 = vsel %vm1143, 1, 0
  %v2547 = vsel %vm1144, 1, 0
  %v2548 = vsel %vm1145, 1, 0
  %v2549 = vsel %vm1146, 1, 0
  %v2550 = vsel %vm1147, 1, 0
  %v2551 = vsel %vm1148, 1, 0
  %v2552 = vsel %vm1149, 1, 0
  %v2553 = vsel %vm1150, 1, 0
  %v2554 = vsel %vm1151, 1, 0
  %v2555 = vsel %vm1152, 1, 0
  %v2556 = vsel %vm1153, 1, 0
  %v2557 = vsel %vm1154, 1, 0
  %v2558 = vsel %vm1155, 1, 0
  %v2559 = vsel %vm1156, 1, 0
  %v2560 = vsel %vm1157, 1, 0
  %v2561 = vsel %vm1158, 1, 0
  %v2562 = vsel %vm1159, 1, 0
  %v2563 = vsel %vm1160, 1, 0
  %v2564 = vsel %vm1161, 1, 0
  %v2565 = vsel %vm1162, 1, 0
  %v2566 = vsel %vm1163, 1, 0
  %vm2567 = vcmp.eq.s32.totalorder %v2507, 1
  %vm2568 = vcmp.eq.s32.totalorder %v2508, 1
  %vm2569 = vcmp.eq.s32.totalorder %v2509, 1
  %vm2570 = vcmp.eq.s32.totalorder %v2510, 1
  %vm2571 = vcmp.eq.s32.totalorder %v2511, 1
  %vm2572 = vcmp.eq.s32.totalorder %v2512, 1
  %vm2573 = vcmp.eq.s32.totalorder %v2513, 1
  %vm2574 = vcmp.eq.s32.totalorder %v2514, 1
  %vm2575 = vcmp.eq.s32.totalorder %v2515, 1
  %vm2576 = vcmp.eq.s32.totalorder %v2516, 1
  %vm2577 = vcmp.eq.s32.totalorder %v2517, 1
  %vm2578 = vcmp.eq.s32.totalorder %v2518, 1
  %vm2579 = vcmp.eq.s32.totalorder %v2519, 1
  %vm2580 = vcmp.eq.s32.totalorder %v2520, 1
  %vm2581 = vcmp.eq.s32.totalorder %v2521, 1
  %vm2582 = vcmp.eq.s32.totalorder %v2522, 1
  %vm2583 = vcmp.eq.s32.totalorder %v2523, 1
  %vm2584 = vcmp.eq.s32.totalorder %v2524, 1
  %vm2585 = vcmp.eq.s32.totalorder %v2525, 1
  %vm2586 = vcmp.eq.s32.totalorder %v2526, 1
  %vm2587 = vcmp.eq.s32.totalorder %v2527, 1
  %vm2588 = vcmp.eq.s32.totalorder %v2528, 1
  %vm2589 = vcmp.eq.s32.totalorder %v2529, 1
  %vm2590 = vcmp.eq.s32.totalorder %v2530, 1
  %vm2591 = vcmp.eq.s32.totalorder %v2531, 1
  %vm2592 = vcmp.eq.s32.totalorder %v2532, 1
  %vm2593 = vcmp.eq.s32.totalorder %v2533, 1
  %vm2594 = vcmp.eq.s32.totalorder %v2534, 1
  %vm2595 = vcmp.eq.s32.totalorder %v2535, 1
  %vm2596 = vcmp.eq.s32.totalorder %v2536, 1
  %vm2597 = vcmp.eq.s32.totalorder %v2537, 1
  %vm2598 = vcmp.eq.s32.totalorder %v2538, 1
  %vm2599 = vcmp.eq.s32.totalorder %v2539, 1
  %vm2600 = vcmp.eq.s32.totalorder %v2540, 1
  %vm2601 = vcmp.eq.s32.totalorder %v2541, 1
  %vm2602 = vcmp.eq.s32.totalorder %v2542, 1
  %vm2603 = vcmp.eq.s32.totalorder %v2543, 1
  %vm2604 = vcmp.eq.s32.totalorder %v2544, 1
  %vm2605 = vcmp.eq.s32.totalorder %v2545, 1
  %vm2606 = vcmp.eq.s32.totalorder %v2546, 1
  %vm2607 = vcmp.eq.s32.totalorder %v2547, 1
  %vm2608 = vcmp.eq.s32.totalorder %v2548, 1
  %vm2609 = vcmp.eq.s32.totalorder %v2549, 1
  %vm2610 = vcmp.eq.s32.totalorder %v2550, 1
  %vm2611 = vcmp.eq.s32.totalorder %v2551, 1
  %vm2612 = vcmp.eq.s32.totalorder %v2552, 1
  %vm2613 = vcmp.eq.s32.totalorder %v2553, 1
  %vm2614 = vcmp.eq.s32.totalorder %v2554, 1
  %vm2615 = vcmp.eq.s32.totalorder %v2555, 1
  %vm2616 = vcmp.eq.s32.totalorder %v2556, 1
  %vm2617 = vcmp.eq.s32.totalorder %v2557, 1
  %vm2618 = vcmp.eq.s32.totalorder %v2558, 1
  %vm2619 = vcmp.eq.s32.totalorder %v2559, 1
  %vm2620 = vcmp.eq.s32.totalorder %v2560, 1
  %vm2621 = vcmp.eq.s32.totalorder %v2561, 1
  %vm2622 = vcmp.eq.s32.totalorder %v2562, 1
  %vm2623 = vcmp.eq.s32.totalorder %v2563, 1
  %vm2624 = vcmp.eq.s32.totalorder %v2564, 1
  %vm2625 = vcmp.eq.s32.totalorder %v2565, 1
  %vm2626 = vcmp.eq.s32.totalorder %v2566, 1
  %v2627 = vsel %vm2567, %v2447, %v1779
  %v2628 = vsel %vm2568, %v2448, %v1784
  %v2629 = vsel %vm2569, %v2449, %v1789
  %v2630 = vsel %vm2570, %v2450, %v1794
  %v2631 = vsel %vm2571, %v2451, %v1799
  %v2632 = vsel %vm2572, %v2452, %v1804
  %v2633 = vsel %vm2573, %v2453, %v1809
  %v2634 = vsel %vm2574, %v2454, %v1814
  %v2635 = vsel %vm2575, %v2455, %v1819
  %v2636 = vsel %vm2576, %v2456, %v1824
  %v2637 = vsel %vm2577, %v2457, %v1829
  %v2638 = vsel %vm2578, %v2458, %v1834
  %v2639 = vsel %vm2579, %v2459, %v1839
  %v2640 = vsel %vm2580, %v2460, %v1844
  %v2641 = vsel %vm2581, %v2461, %v1849
  %v2642 = vsel %vm2582, %v2462, %v1854
  %v2643 = vsel %vm2583, %v2463, %v1859
  %v2644 = vsel %vm2584, %v2464, %v1864
  %v2645 = vsel %vm2585, %v2465, %v1869
  %v2646 = vsel %vm2586, %v2466, %v1874
  %v2647 = vsel %vm2587, %v2467, %v1879
  %v2648 = vsel %vm2588, %v2468, %v1884
  %v2649 = vsel %vm2589, %v2469, %v1889
  %v2650 = vsel %vm2590, %v2470, %v1894
  %v2651 = vsel %vm2591, %v2471, %v1899
  %v2652 = vsel %vm2592, %v2472, %v1904
  %v2653 = vsel %vm2593, %v2473, %v1909
  %v2654 = vsel %vm2594, %v2474, %v1914
  %v2655 = vsel %vm2595, %v2475, %v1919
  %v2656 = vsel %vm2596, %v2476, %v1924
  %v2657 = vsel %vm2597, %v2477, %v1929
  %v2658 = vsel %vm2598, %v2478, %v1934
  %v2659 = vsel %vm2599, %v2479, %v1939
  %v2660 = vsel %vm2600, %v2480, %v1944
  %v2661 = vsel %vm2601, %v2481, %v1949
  %v2662 = vsel %vm2602, %v2482, %v1954
  %v2663 = vsel %vm2603, %v2483, %v1959
  %v2664 = vsel %vm2604, %v2484, %v1964
  %v2665 = vsel %vm2605, %v2485, %v1969
  %v2666 = vsel %vm2606, %v2486, %v1974
  %v2667 = vsel %vm2607, %v2487, %v1979
  %v2668 = vsel %vm2608, %v2488, %v1984
  %v2669 = vsel %vm2609, %v2489, %v1989
  %v2670 = vsel %vm2610, %v2490, %v1994
  %v2671 = vsel %vm2611, %v2491, %v1999
  %v2672 = vsel %vm2612, %v2492, %v2004
  %v2673 = vsel %vm2613, %v2493, %v2009
  %v2674 = vsel %vm2614, %v2494, %v2014
  %v2675 = vsel %vm2615, %v2495, %v2019
  %v2676 = vsel %vm2616, %v2496, %v2024
  %v2677 = vsel %vm2617, %v2497, %v2029
  %v2678 = vsel %vm2618, %v2498, %v2034
  %v2679 = vsel %vm2619, %v2499, %v2039
  %v2680 = vsel %vm2620, %v2500, %v2044
  %v2681 = vsel %vm2621, %v2501, %v2049
  %v2682 = vsel %vm2622, %v2502, %v2054
  %v2683 = vsel %vm2623, %v2503, %v2059
  %v2684 = vsel %vm2624, %v2504, %v2064
  %v2685 = vsel %vm2625, %v2505, %v2069
  %v2686 = vsel %vm2626, %v2506, %v2074
  %vm2687 = vcmask 261120
  %v2688 = vsel %vm2687, %v2627, 0.0
  %2689 = vadd.xlane.f32.xlu0 %v2688
  %v2690 = vpop.xlane.xlu0 %2689
  %v2691 = vsel %vm2687, %v2628, 0.0
  %2692 = vadd.xlane.f32.xlu0 %v2691
  %v2693 = vpop.xlane.xlu0 %2692
  %v2694 = vsel %vm2687, %v2629, 0.0
  %2695 = vadd.xlane.f32.xlu0 %v2694
  %v2696 = vpop.xlane.xlu0 %2695
  %v2697 = vsel %vm2687, %v2630, 0.0
  %2698 = vadd.xlane.f32.xlu0 %v2697
  %v2699 = vpop.xlane.xlu0 %2698
  %v2700 = vsel %vm2687, %v2631, 0.0
  %2701 = vadd.xlane.f32.xlu0 %v2700
  %v2702 = vpop.xlane.xlu0 %2701
  %v2703 = vsel %vm2687, %v2632, 0.0
  %2704 = vadd.xlane.f32.xlu0 %v2703
  %v2705 = vpop.xlane.xlu0 %2704
  %v2706 = vsel %vm2687, %v2633, 0.0
  %2707 = vadd.xlane.f32.xlu0 %v2706
  %v2708 = vpop.xlane.xlu0 %2707
  %v2709 = vsel %vm2687, %v2634, 0.0
  %2710 = vadd.xlane.f32.xlu0 %v2709
  %v2711 = vpop.xlane.xlu0 %2710
  %v2712 = vsel %vm2687, %v2635, 0.0
  %2713 = vadd.xlane.f32.xlu0 %v2712
  %v2714 = vpop.xlane.xlu0 %2713
  %v2715 = vsel %vm2687, %v2636, 0.0
  %2716 = vadd.xlane.f32.xlu0 %v2715
  %v2717 = vpop.xlane.xlu0 %2716
  %v2718 = vsel %vm2687, %v2637, 0.0
  %2719 = vadd.xlane.f32.xlu0 %v2718
  %v2720 = vpop.xlane.xlu0 %2719
  %v2721 = vsel %vm2687, %v2638, 0.0
  %2722 = vadd.xlane.f32.xlu0 %v2721
  %v2723 = vpop.xlane.xlu0 %2722
  %v2724 = vsel %vm2687, %v2639, 0.0
  %2725 = vadd.xlane.f32.xlu0 %v2724
  %v2726 = vpop.xlane.xlu0 %2725
  %v2727 = vsel %vm2687, %v2640, 0.0
  %2728 = vadd.xlane.f32.xlu0 %v2727
  %v2729 = vpop.xlane.xlu0 %2728
  %v2730 = vsel %vm2687, %v2641, 0.0
  %2731 = vadd.xlane.f32.xlu0 %v2730
  %v2732 = vpop.xlane.xlu0 %2731
  %v2733 = vsel %vm2687, %v2642, 0.0
  %2734 = vadd.xlane.f32.xlu0 %v2733
  %v2735 = vpop.xlane.xlu0 %2734
  %v2736 = vsel %vm2687, %v2643, 0.0
  %2737 = vadd.xlane.f32.xlu0 %v2736
  %v2738 = vpop.xlane.xlu0 %2737
  %v2739 = vsel %vm2687, %v2644, 0.0
  %2740 = vadd.xlane.f32.xlu0 %v2739
  %v2741 = vpop.xlane.xlu0 %2740
  %v2742 = vsel %vm2687, %v2645, 0.0
  %2743 = vadd.xlane.f32.xlu0 %v2742
  %v2744 = vpop.xlane.xlu0 %2743
  %v2745 = vsel %vm2687, %v2646, 0.0
  %2746 = vadd.xlane.f32.xlu0 %v2745
  %v2747 = vpop.xlane.xlu0 %2746
  %v2748 = vsel %vm2687, %v2647, 0.0
  %2749 = vadd.xlane.f32.xlu0 %v2748
  %v2750 = vpop.xlane.xlu0 %2749
  %v2751 = vsel %vm2687, %v2648, 0.0
  %2752 = vadd.xlane.f32.xlu0 %v2751
  %v2753 = vpop.xlane.xlu0 %2752
  %v2754 = vsel %vm2687, %v2649, 0.0
  %2755 = vadd.xlane.f32.xlu0 %v2754
  %v2756 = vpop.xlane.xlu0 %2755
  %v2757 = vsel %vm2687, %v2650, 0.0
  %2758 = vadd.xlane.f32.xlu0 %v2757
  %v2759 = vpop.xlane.xlu0 %2758
  %v2760 = vsel %vm2687, %v2651, 0.0
  %2761 = vadd.xlane.f32.xlu0 %v2760
  %v2762 = vpop.xlane.xlu0 %2761
  %v2763 = vsel %vm2687, %v2652, 0.0
  %2764 = vadd.xlane.f32.xlu0 %v2763
  %v2765 = vpop.xlane.xlu0 %2764
  %v2766 = vsel %vm2687, %v2653, 0.0
  %2767 = vadd.xlane.f32.xlu0 %v2766
  %v2768 = vpop.xlane.xlu0 %2767
  %v2769 = vsel %vm2687, %v2654, 0.0
  %2770 = vadd.xlane.f32.xlu0 %v2769
  %v2771 = vpop.xlane.xlu0 %2770
  %v2772 = vsel %vm2687, %v2655, 0.0
  %2773 = vadd.xlane.f32.xlu0 %v2772
  %v2774 = vpop.xlane.xlu0 %2773
  %v2775 = vsel %vm2687, %v2656, 0.0
  %2776 = vadd.xlane.f32.xlu0 %v2775
  %v2777 = vpop.xlane.xlu0 %2776
  %v2778 = vsel %vm2687, %v2657, 0.0
  %2779 = vadd.xlane.f32.xlu0 %v2778
  %v2780 = vpop.xlane.xlu0 %2779
  %v2781 = vsel %vm2687, %v2658, 0.0
  %2782 = vadd.xlane.f32.xlu0 %v2781
  %v2783 = vpop.xlane.xlu0 %2782
  %v2784 = vsel %vm2687, %v2659, 0.0
  %2785 = vadd.xlane.f32.xlu0 %v2784
  %v2786 = vpop.xlane.xlu0 %2785
  %v2787 = vsel %vm2687, %v2660, 0.0
  %2788 = vadd.xlane.f32.xlu0 %v2787
  %v2789 = vpop.xlane.xlu0 %2788
  %v2790 = vsel %vm2687, %v2661, 0.0
  %2791 = vadd.xlane.f32.xlu0 %v2790
  %v2792 = vpop.xlane.xlu0 %2791
  %v2793 = vsel %vm2687, %v2662, 0.0
  %2794 = vadd.xlane.f32.xlu0 %v2793
  %v2795 = vpop.xlane.xlu0 %2794
  %v2796 = vsel %vm2687, %v2663, 0.0
  %2797 = vadd.xlane.f32.xlu0 %v2796
  %v2798 = vpop.xlane.xlu0 %2797
  %v2799 = vsel %vm2687, %v2664, 0.0
  %2800 = vadd.xlane.f32.xlu0 %v2799
  %v2801 = vpop.xlane.xlu0 %2800
  %v2802 = vsel %vm2687, %v2665, 0.0
  %2803 = vadd.xlane.f32.xlu0 %v2802
  %v2804 = vpop.xlane.xlu0 %2803
  %v2805 = vsel %vm2687, %v2666, 0.0
  %2806 = vadd.xlane.f32.xlu0 %v2805
  %v2807 = vpop.xlane.xlu0 %2806
  %v2808 = vsel %vm2687, %v2667, 0.0
  %2809 = vadd.xlane.f32.xlu0 %v2808
  %v2810 = vpop.xlane.xlu0 %2809
  %v2811 = vsel %vm2687, %v2668, 0.0
  %2812 = vadd.xlane.f32.xlu0 %v2811
  %v2813 = vpop.xlane.xlu0 %2812
  %v2814 = vsel %vm2687, %v2669, 0.0
  %2815 = vadd.xlane.f32.xlu0 %v2814
  %v2816 = vpop.xlane.xlu0 %2815
  %v2817 = vsel %vm2687, %v2670, 0.0
  %2818 = vadd.xlane.f32.xlu0 %v2817
  %v2819 = vpop.xlane.xlu0 %2818
  %v2820 = vsel %vm2687, %v2671, 0.0
  %2821 = vadd.xlane.f32.xlu0 %v2820
  %v2822 = vpop.xlane.xlu0 %2821
  %v2823 = vsel %vm2687, %v2672, 0.0
  %2824 = vadd.xlane.f32.xlu0 %v2823
  %v2825 = vpop.xlane.xlu0 %2824
  %v2826 = vsel %vm2687, %v2673, 0.0
  %2827 = vadd.xlane.f32.xlu0 %v2826
  %v2828 = vpop.xlane.xlu0 %2827
  %v2829 = vsel %vm2687, %v2674, 0.0
  %2830 = vadd.xlane.f32.xlu0 %v2829
  %v2831 = vpop.xlane.xlu0 %2830
  %v2832 = vsel %vm2687, %v2675, 0.0
  %2833 = vadd.xlane.f32.xlu0 %v2832
  %v2834 = vpop.xlane.xlu0 %2833
  %v2835 = vsel %vm2687, %v2676, 0.0
  %2836 = vadd.xlane.f32.xlu0 %v2835
  %v2837 = vpop.xlane.xlu0 %2836
  %v2838 = vsel %vm2687, %v2677, 0.0
  %2839 = vadd.xlane.f32.xlu0 %v2838
  %v2840 = vpop.xlane.xlu0 %2839
  %v2841 = vsel %vm2687, %v2678, 0.0
  %2842 = vadd.xlane.f32.xlu0 %v2841
  %v2843 = vpop.xlane.xlu0 %2842
  %v2844 = vsel %vm2687, %v2679, 0.0
  %2845 = vadd.xlane.f32.xlu0 %v2844
  %v2846 = vpop.xlane.xlu0 %2845
  %v2847 = vsel %vm2687, %v2680, 0.0
  %2848 = vadd.xlane.f32.xlu0 %v2847
  %v2849 = vpop.xlane.xlu0 %2848
  %v2850 = vsel %vm2687, %v2681, 0.0
  %2851 = vadd.xlane.f32.xlu0 %v2850
  %v2852 = vpop.xlane.xlu0 %2851
  %v2853 = vsel %vm2687, %v2682, 0.0
  %2854 = vadd.xlane.f32.xlu0 %v2853
  %v2855 = vpop.xlane.xlu0 %2854
  %v2856 = vsel %vm2687, %v2683, 0.0
  %2857 = vadd.xlane.f32.xlu0 %v2856
  %v2858 = vpop.xlane.xlu0 %2857
  %v2859 = vsel %vm2687, %v2684, 0.0
  %2860 = vadd.xlane.f32.xlu0 %v2859
  %v2861 = vpop.xlane.xlu0 %2860
  %v2862 = vsel %vm2687, %v2685, 0.0
  %2863 = vadd.xlane.f32.xlu0 %v2862
  %v2864 = vpop.xlane.xlu0 %2863
  %v2865 = vsel %vm2687, %v2686, 0.0
  %2866 = vadd.xlane.f32.xlu0 %v2865
  %v2867 = vpop.xlane.xlu0 %2866
  %v2868 = vrcp.pop 32.0
  %v2869 = vmul.f32 %v2690, %v2868
  %v2870 = vmul.f32 %v2693, %v2868
  %v2871 = vmul.f32 %v2696, %v2868
  %v2872 = vmul.f32 %v2699, %v2868
  %v2873 = vmul.f32 %v2702, %v2868
  %v2874 = vmul.f32 %v2705, %v2868
  %v2875 = vmul.f32 %v2708, %v2868
  %v2876 = vmul.f32 %v2711, %v2868
  %v2877 = vmul.f32 %v2714, %v2868
  %v2878 = vmul.f32 %v2717, %v2868
  %v2879 = vmul.f32 %v2720, %v2868
  %v2880 = vmul.f32 %v2723, %v2868
  %v2881 = vmul.f32 %v2726, %v2868
  %v2882 = vmul.f32 %v2729, %v2868
  %v2883 = vmul.f32 %v2732, %v2868
  %v2884 = vmul.f32 %v2735, %v2868
  %v2885 = vmul.f32 %v2738, %v2868
  %v2886 = vmul.f32 %v2741, %v2868
  %v2887 = vmul.f32 %v2744, %v2868
  %v2888 = vmul.f32 %v2747, %v2868
  %v2889 = vmul.f32 %v2750, %v2868
  %v2890 = vmul.f32 %v2753, %v2868
  %v2891 = vmul.f32 %v2756, %v2868
  %v2892 = vmul.f32 %v2759, %v2868
  %v2893 = vmul.f32 %v2762, %v2868
  %v2894 = vmul.f32 %v2765, %v2868
  %v2895 = vmul.f32 %v2768, %v2868
  %v2896 = vmul.f32 %v2771, %v2868
  %v2897 = vmul.f32 %v2774, %v2868
  %v2898 = vmul.f32 %v2777, %v2868
  %v2899 = vmul.f32 %v2780, %v2868
  %v2900 = vmul.f32 %v2783, %v2868
  %v2901 = vmul.f32 %v2786, %v2868
  %v2902 = vmul.f32 %v2789, %v2868
  %v2903 = vmul.f32 %v2792, %v2868
  %v2904 = vmul.f32 %v2795, %v2868
  %v2905 = vmul.f32 %v2798, %v2868
  %v2906 = vmul.f32 %v2801, %v2868
  %v2907 = vmul.f32 %v2804, %v2868
  %v2908 = vmul.f32 %v2807, %v2868
  %v2909 = vmul.f32 %v2810, %v2868
  %v2910 = vmul.f32 %v2813, %v2868
  %v2911 = vmul.f32 %v2816, %v2868
  %v2912 = vmul.f32 %v2819, %v2868
  %v2913 = vmul.f32 %v2822, %v2868
  %v2914 = vmul.f32 %v2825, %v2868
  %v2915 = vmul.f32 %v2828, %v2868
  %v2916 = vmul.f32 %v2831, %v2868
  %v2917 = vmul.f32 %v2834, %v2868
  %v2918 = vmul.f32 %v2837, %v2868
  %v2919 = vmul.f32 %v2840, %v2868
  %v2920 = vmul.f32 %v2843, %v2868
  %v2921 = vmul.f32 %v2846, %v2868
  %v2922 = vmul.f32 %v2849, %v2868
  %v2923 = vmul.f32 %v2852, %v2868
  %v2924 = vmul.f32 %v2855, %v2868
  %v2925 = vmul.f32 %v2858, %v2868
  %v2926 = vmul.f32 %v2861, %v2868
  %v2927 = vmul.f32 %v2864, %v2868
  %v2928 = vmul.f32 %v2867, %v2868
  %v2929 = vsub.f32 %v2627, %v2869
  %v2930 = vsub.f32 %v2628, %v2870
  %v2931 = vsub.f32 %v2629, %v2871
  %v2932 = vsub.f32 %v2630, %v2872
  %v2933 = vsub.f32 %v2631, %v2873
  %v2934 = vsub.f32 %v2632, %v2874
  %v2935 = vsub.f32 %v2633, %v2875
  %v2936 = vsub.f32 %v2634, %v2876
  %v2937 = vsub.f32 %v2635, %v2877
  %v2938 = vsub.f32 %v2636, %v2878
  %v2939 = vsub.f32 %v2637, %v2879
  %v2940 = vsub.f32 %v2638, %v2880
  %v2941 = vsub.f32 %v2639, %v2881
  %v2942 = vsub.f32 %v2640, %v2882
  %v2943 = vsub.f32 %v2641, %v2883
  %v2944 = vsub.f32 %v2642, %v2884
  %v2945 = vsub.f32 %v2643, %v2885
  %v2946 = vsub.f32 %v2644, %v2886
  %v2947 = vsub.f32 %v2645, %v2887
  %v2948 = vsub.f32 %v2646, %v2888
  %v2949 = vsub.f32 %v2647, %v2889
  %v2950 = vsub.f32 %v2648, %v2890
  %v2951 = vsub.f32 %v2649, %v2891
  %v2952 = vsub.f32 %v2650, %v2892
  %v2953 = vsub.f32 %v2651, %v2893
  %v2954 = vsub.f32 %v2652, %v2894
  %v2955 = vsub.f32 %v2653, %v2895
  %v2956 = vsub.f32 %v2654, %v2896
  %v2957 = vsub.f32 %v2655, %v2897
  %v2958 = vsub.f32 %v2656, %v2898
  %v2959 = vsub.f32 %v2657, %v2899
  %v2960 = vsub.f32 %v2658, %v2900
  %v2961 = vsub.f32 %v2659, %v2901
  %v2962 = vsub.f32 %v2660, %v2902
  %v2963 = vsub.f32 %v2661, %v2903
  %v2964 = vsub.f32 %v2662, %v2904
  %v2965 = vsub.f32 %v2663, %v2905
  %v2966 = vsub.f32 %v2664, %v2906
  %v2967 = vsub.f32 %v2665, %v2907
  %v2968 = vsub.f32 %v2666, %v2908
  %v2969 = vsub.f32 %v2667, %v2909
  %v2970 = vsub.f32 %v2668, %v2910
  %v2971 = vsub.f32 %v2669, %v2911
  %v2972 = vsub.f32 %v2670, %v2912
  %v2973 = vsub.f32 %v2671, %v2913
  %v2974 = vsub.f32 %v2672, %v2914
  %v2975 = vsub.f32 %v2673, %v2915
  %v2976 = vsub.f32 %v2674, %v2916
  %v2977 = vsub.f32 %v2675, %v2917
  %v2978 = vsub.f32 %v2676, %v2918
  %v2979 = vsub.f32 %v2677, %v2919
  %v2980 = vsub.f32 %v2678, %v2920
  %v2981 = vsub.f32 %v2679, %v2921
  %v2982 = vsub.f32 %v2680, %v2922
  %v2983 = vsub.f32 %v2681, %v2923
  %v2984 = vsub.f32 %v2682, %v2924
  %v2985 = vsub.f32 %v2683, %v2925
  %v2986 = vsub.f32 %v2684, %v2926
  %v2987 = vsub.f32 %v2685, %v2927
  %v2988 = vsub.f32 %v2686, %v2928
  %v2989 = vmul.f32 %v2929, %v2929
  %v2990 = vmul.f32 %v2930, %v2930
  %v2991 = vmul.f32 %v2931, %v2931
  %v2992 = vmul.f32 %v2932, %v2932
  %v2993 = vmul.f32 %v2933, %v2933
  %v2994 = vmul.f32 %v2934, %v2934
  %v2995 = vmul.f32 %v2935, %v2935
  %v2996 = vmul.f32 %v2936, %v2936
  %v2997 = vmul.f32 %v2937, %v2937
  %v2998 = vmul.f32 %v2938, %v2938
  %v2999 = vmul.f32 %v2939, %v2939
  %v3000 = vmul.f32 %v2940, %v2940
  %v3001 = vmul.f32 %v2941, %v2941
  %v3002 = vmul.f32 %v2942, %v2942
  %v3003 = vmul.f32 %v2943, %v2943
  %v3004 = vmul.f32 %v2944, %v2944
  %v3005 = vmul.f32 %v2945, %v2945
  %v3006 = vmul.f32 %v2946, %v2946
  %v3007 = vmul.f32 %v2947, %v2947
  %v3008 = vmul.f32 %v2948, %v2948
  %v3009 = vmul.f32 %v2949, %v2949
  %v3010 = vmul.f32 %v2950, %v2950
  %v3011 = vmul.f32 %v2951, %v2951
  %v3012 = vmul.f32 %v2952, %v2952
  %v3013 = vmul.f32 %v2953, %v2953
  %v3014 = vmul.f32 %v2954, %v2954
  %v3015 = vmul.f32 %v2955, %v2955
  %v3016 = vmul.f32 %v2956, %v2956
  %v3017 = vmul.f32 %v2957, %v2957
  %v3018 = vmul.f32 %v2958, %v2958
  %v3019 = vmul.f32 %v2959, %v2959
  %v3020 = vmul.f32 %v2960, %v2960
  %v3021 = vmul.f32 %v2961, %v2961
  %v3022 = vmul.f32 %v2962, %v2962
  %v3023 = vmul.f32 %v2963, %v2963
  %v3024 = vmul.f32 %v2964, %v2964
  %v3025 = vmul.f32 %v2965, %v2965
  %v3026 = vmul.f32 %v2966, %v2966
  %v3027 = vmul.f32 %v2967, %v2967
  %v3028 = vmul.f32 %v2968, %v2968
  %v3029 = vmul.f32 %v2969, %v2969
  %v3030 = vmul.f32 %v2970, %v2970
  %v3031 = vmul.f32 %v2971, %v2971
  %v3032 = vmul.f32 %v2972, %v2972
  %v3033 = vmul.f32 %v2973, %v2973
  %v3034 = vmul.f32 %v2974, %v2974
  %v3035 = vmul.f32 %v2975, %v2975
  %v3036 = vmul.f32 %v2976, %v2976
  %v3037 = vmul.f32 %v2977, %v2977
  %v3038 = vmul.f32 %v2978, %v2978
  %v3039 = vmul.f32 %v2979, %v2979
  %v3040 = vmul.f32 %v2980, %v2980
  %v3041 = vmul.f32 %v2981, %v2981
  %v3042 = vmul.f32 %v2982, %v2982
  %v3043 = vmul.f32 %v2983, %v2983
  %v3044 = vmul.f32 %v2984, %v2984
  %v3045 = vmul.f32 %v2985, %v2985
  %v3046 = vmul.f32 %v2986, %v2986
  %v3047 = vmul.f32 %v2987, %v2987
  %v3048 = vmul.f32 %v2988, %v2988
  %v3049 = vsel %vm2687, %v2989, 0.0
  %3050 = vadd.xlane.f32.xlu0 %v3049
  %v3051 = vpop.xlane.xlu0 %3050
  %v3052 = vsel %vm2687, %v2990, 0.0
  %3053 = vadd.xlane.f32.xlu0 %v3052
  %v3054 = vpop.xlane.xlu0 %3053
  %v3055 = vsel %vm2687, %v2991, 0.0
  %3056 = vadd.xlane.f32.xlu0 %v3055
  %v3057 = vpop.xlane.xlu0 %3056
  %v3058 = vsel %vm2687, %v2992, 0.0
  %3059 = vadd.xlane.f32.xlu0 %v3058
  %v3060 = vpop.xlane.xlu0 %3059
  %v3061 = vsel %vm2687, %v2993, 0.0
  %3062 = vadd.xlane.f32.xlu0 %v3061
  %v3063 = vpop.xlane.xlu0 %3062
  %v3064 = vsel %vm2687, %v2994, 0.0
  %3065 = vadd.xlane.f32.xlu0 %v3064
  %v3066 = vpop.xlane.xlu0 %3065
  %v3067 = vsel %vm2687, %v2995, 0.0
  %3068 = vadd.xlane.f32.xlu0 %v3067
  %v3069 = vpop.xlane.xlu0 %3068
  %v3070 = vsel %vm2687, %v2996, 0.0
  %3071 = vadd.xlane.f32.xlu0 %v3070
  %v3072 = vpop.xlane.xlu0 %3071
  %v3073 = vsel %vm2687, %v2997, 0.0
  %3074 = vadd.xlane.f32.xlu0 %v3073
  %v3075 = vpop.xlane.xlu0 %3074
  %v3076 = vsel %vm2687, %v2998, 0.0
  %3077 = vadd.xlane.f32.xlu0 %v3076
  %v3078 = vpop.xlane.xlu0 %3077
  %v3079 = vsel %vm2687, %v2999, 0.0
  %3080 = vadd.xlane.f32.xlu0 %v3079
  %v3081 = vpop.xlane.xlu0 %3080
  %v3082 = vsel %vm2687, %v3000, 0.0
  %3083 = vadd.xlane.f32.xlu0 %v3082
  %v3084 = vpop.xlane.xlu0 %3083
  %v3085 = vsel %vm2687, %v3001, 0.0
  %3086 = vadd.xlane.f32.xlu0 %v3085
  %v3087 = vpop.xlane.xlu0 %3086
  %v3088 = vsel %vm2687, %v3002, 0.0
  %3089 = vadd.xlane.f32.xlu0 %v3088
  %v3090 = vpop.xlane.xlu0 %3089
  %v3091 = vsel %vm2687, %v3003, 0.0
  %3092 = vadd.xlane.f32.xlu0 %v3091
  %v3093 = vpop.xlane.xlu0 %3092
  %v3094 = vsel %vm2687, %v3004, 0.0
  %3095 = vadd.xlane.f32.xlu0 %v3094
  %v3096 = vpop.xlane.xlu0 %3095
  %v3097 = vsel %vm2687, %v3005, 0.0
  %3098 = vadd.xlane.f32.xlu0 %v3097
  %v3099 = vpop.xlane.xlu0 %3098
  %v3100 = vsel %vm2687, %v3006, 0.0
  %3101 = vadd.xlane.f32.xlu0 %v3100
  %v3102 = vpop.xlane.xlu0 %3101
  %v3103 = vsel %vm2687, %v3007, 0.0
  %3104 = vadd.xlane.f32.xlu0 %v3103
  %v3105 = vpop.xlane.xlu0 %3104
  %v3106 = vsel %vm2687, %v3008, 0.0
  %3107 = vadd.xlane.f32.xlu0 %v3106
  %v3108 = vpop.xlane.xlu0 %3107
  %v3109 = vsel %vm2687, %v3009, 0.0
  %3110 = vadd.xlane.f32.xlu0 %v3109
  %v3111 = vpop.xlane.xlu0 %3110
  %v3112 = vsel %vm2687, %v3010, 0.0
  %3113 = vadd.xlane.f32.xlu0 %v3112
  %v3114 = vpop.xlane.xlu0 %3113
  %v3115 = vsel %vm2687, %v3011, 0.0
  %3116 = vadd.xlane.f32.xlu0 %v3115
  %v3117 = vpop.xlane.xlu0 %3116
  %v3118 = vsel %vm2687, %v3012, 0.0
  %3119 = vadd.xlane.f32.xlu0 %v3118
  %v3120 = vpop.xlane.xlu0 %3119
  %v3121 = vsel %vm2687, %v3013, 0.0
  %3122 = vadd.xlane.f32.xlu0 %v3121
  %v3123 = vpop.xlane.xlu0 %3122
  %v3124 = vsel %vm2687, %v3014, 0.0
  %3125 = vadd.xlane.f32.xlu0 %v3124
  %v3126 = vpop.xlane.xlu0 %3125
  %v3127 = vsel %vm2687, %v3015, 0.0
  %3128 = vadd.xlane.f32.xlu0 %v3127
  %v3129 = vpop.xlane.xlu0 %3128
  %v3130 = vsel %vm2687, %v3016, 0.0
  %3131 = vadd.xlane.f32.xlu0 %v3130
  %v3132 = vpop.xlane.xlu0 %3131
  %v3133 = vsel %vm2687, %v3017, 0.0
  %3134 = vadd.xlane.f32.xlu0 %v3133
  %v3135 = vpop.xlane.xlu0 %3134
  %v3136 = vsel %vm2687, %v3018, 0.0
  %3137 = vadd.xlane.f32.xlu0 %v3136
  %v3138 = vpop.xlane.xlu0 %3137
  %v3139 = vsel %vm2687, %v3019, 0.0
  %3140 = vadd.xlane.f32.xlu0 %v3139
  %v3141 = vpop.xlane.xlu0 %3140
  %v3142 = vsel %vm2687, %v3020, 0.0
  %3143 = vadd.xlane.f32.xlu0 %v3142
  %v3144 = vpop.xlane.xlu0 %3143
  %v3145 = vsel %vm2687, %v3021, 0.0
  %3146 = vadd.xlane.f32.xlu0 %v3145
  %v3147 = vpop.xlane.xlu0 %3146
  %v3148 = vsel %vm2687, %v3022, 0.0
  %3149 = vadd.xlane.f32.xlu0 %v3148
  %v3150 = vpop.xlane.xlu0 %3149
  %v3151 = vsel %vm2687, %v3023, 0.0
  %3152 = vadd.xlane.f32.xlu0 %v3151
  %v3153 = vpop.xlane.xlu0 %3152
  %v3154 = vsel %vm2687, %v3024, 0.0
  %3155 = vadd.xlane.f32.xlu0 %v3154
  %v3156 = vpop.xlane.xlu0 %3155
  %v3157 = vsel %vm2687, %v3025, 0.0
  %3158 = vadd.xlane.f32.xlu0 %v3157
  %v3159 = vpop.xlane.xlu0 %3158
  %v3160 = vsel %vm2687, %v3026, 0.0
  %3161 = vadd.xlane.f32.xlu0 %v3160
  %v3162 = vpop.xlane.xlu0 %3161
  %v3163 = vsel %vm2687, %v3027, 0.0
  %3164 = vadd.xlane.f32.xlu0 %v3163
  %v3165 = vpop.xlane.xlu0 %3164
  %v3166 = vsel %vm2687, %v3028, 0.0
  %3167 = vadd.xlane.f32.xlu0 %v3166
  %v3168 = vpop.xlane.xlu0 %3167
  %v3169 = vsel %vm2687, %v3029, 0.0
  %3170 = vadd.xlane.f32.xlu0 %v3169
  %v3171 = vpop.xlane.xlu0 %3170
  %v3172 = vsel %vm2687, %v3030, 0.0
  %3173 = vadd.xlane.f32.xlu0 %v3172
  %v3174 = vpop.xlane.xlu0 %3173
  %v3175 = vsel %vm2687, %v3031, 0.0
  %3176 = vadd.xlane.f32.xlu0 %v3175
  %v3177 = vpop.xlane.xlu0 %3176
  %v3178 = vsel %vm2687, %v3032, 0.0
  %3179 = vadd.xlane.f32.xlu0 %v3178
  %v3180 = vpop.xlane.xlu0 %3179
  %v3181 = vsel %vm2687, %v3033, 0.0
  %3182 = vadd.xlane.f32.xlu0 %v3181
  %v3183 = vpop.xlane.xlu0 %3182
  %v3184 = vsel %vm2687, %v3034, 0.0
  %3185 = vadd.xlane.f32.xlu0 %v3184
  %v3186 = vpop.xlane.xlu0 %3185
  %v3187 = vsel %vm2687, %v3035, 0.0
  %3188 = vadd.xlane.f32.xlu0 %v3187
  %v3189 = vpop.xlane.xlu0 %3188
  %v3190 = vsel %vm2687, %v3036, 0.0
  %3191 = vadd.xlane.f32.xlu0 %v3190
  %v3192 = vpop.xlane.xlu0 %3191
  %v3193 = vsel %vm2687, %v3037, 0.0
  %3194 = vadd.xlane.f32.xlu0 %v3193
  %v3195 = vpop.xlane.xlu0 %3194
  %v3196 = vsel %vm2687, %v3038, 0.0
  %3197 = vadd.xlane.f32.xlu0 %v3196
  %v3198 = vpop.xlane.xlu0 %3197
  %v3199 = vsel %vm2687, %v3039, 0.0
  %3200 = vadd.xlane.f32.xlu0 %v3199
  %v3201 = vpop.xlane.xlu0 %3200
  %v3202 = vsel %vm2687, %v3040, 0.0
  %3203 = vadd.xlane.f32.xlu0 %v3202
  %v3204 = vpop.xlane.xlu0 %3203
  %v3205 = vsel %vm2687, %v3041, 0.0
  %3206 = vadd.xlane.f32.xlu0 %v3205
  %v3207 = vpop.xlane.xlu0 %3206
  %v3208 = vsel %vm2687, %v3042, 0.0
  %3209 = vadd.xlane.f32.xlu0 %v3208
  %v3210 = vpop.xlane.xlu0 %3209
  %v3211 = vsel %vm2687, %v3043, 0.0
  %3212 = vadd.xlane.f32.xlu0 %v3211
  %v3213 = vpop.xlane.xlu0 %3212
  %v3214 = vsel %vm2687, %v3044, 0.0
  %3215 = vadd.xlane.f32.xlu0 %v3214
  %v3216 = vpop.xlane.xlu0 %3215
  %v3217 = vsel %vm2687, %v3045, 0.0
  %3218 = vadd.xlane.f32.xlu0 %v3217
  %v3219 = vpop.xlane.xlu0 %3218
  %v3220 = vsel %vm2687, %v3046, 0.0
  %3221 = vadd.xlane.f32.xlu0 %v3220
  %v3222 = vpop.xlane.xlu0 %3221
  %v3223 = vsel %vm2687, %v3047, 0.0
  %3224 = vadd.xlane.f32.xlu0 %v3223
  %v3225 = vpop.xlane.xlu0 %3224
  %v3226 = vsel %vm2687, %v3048, 0.0
  %3227 = vadd.xlane.f32.xlu0 %v3226
  %v3228 = vpop.xlane.xlu0 %3227
  %v3229 = vmul.f32 %v3051, %v2868
  %v3230 = vmul.f32 %v3054, %v2868
  %v3231 = vmul.f32 %v3057, %v2868
  %v3232 = vmul.f32 %v3060, %v2868
  %v3233 = vmul.f32 %v3063, %v2868
  %v3234 = vmul.f32 %v3066, %v2868
  %v3235 = vmul.f32 %v3069, %v2868
  %v3236 = vmul.f32 %v3072, %v2868
  %v3237 = vmul.f32 %v3075, %v2868
  %v3238 = vmul.f32 %v3078, %v2868
  %v3239 = vmul.f32 %v3081, %v2868
  %v3240 = vmul.f32 %v3084, %v2868
  %v3241 = vmul.f32 %v3087, %v2868
  %v3242 = vmul.f32 %v3090, %v2868
  %v3243 = vmul.f32 %v3093, %v2868
  %v3244 = vmul.f32 %v3096, %v2868
  %v3245 = vmul.f32 %v3099, %v2868
  %v3246 = vmul.f32 %v3102, %v2868
  %v3247 = vmul.f32 %v3105, %v2868
  %v3248 = vmul.f32 %v3108, %v2868
  %v3249 = vmul.f32 %v3111, %v2868
  %v3250 = vmul.f32 %v3114, %v2868
  %v3251 = vmul.f32 %v3117, %v2868
  %v3252 = vmul.f32 %v3120, %v2868
  %v3253 = vmul.f32 %v3123, %v2868
  %v3254 = vmul.f32 %v3126, %v2868
  %v3255 = vmul.f32 %v3129, %v2868
  %v3256 = vmul.f32 %v3132, %v2868
  %v3257 = vmul.f32 %v3135, %v2868
  %v3258 = vmul.f32 %v3138, %v2868
  %v3259 = vmul.f32 %v3141, %v2868
  %v3260 = vmul.f32 %v3144, %v2868
  %v3261 = vmul.f32 %v3147, %v2868
  %v3262 = vmul.f32 %v3150, %v2868
  %v3263 = vmul.f32 %v3153, %v2868
  %v3264 = vmul.f32 %v3156, %v2868
  %v3265 = vmul.f32 %v3159, %v2868
  %v3266 = vmul.f32 %v3162, %v2868
  %v3267 = vmul.f32 %v3165, %v2868
  %v3268 = vmul.f32 %v3168, %v2868
  %v3269 = vmul.f32 %v3171, %v2868
  %v3270 = vmul.f32 %v3174, %v2868
  %v3271 = vmul.f32 %v3177, %v2868
  %v3272 = vmul.f32 %v3180, %v2868
  %v3273 = vmul.f32 %v3183, %v2868
  %v3274 = vmul.f32 %v3186, %v2868
  %v3275 = vmul.f32 %v3189, %v2868
  %v3276 = vmul.f32 %v3192, %v2868
  %v3277 = vmul.f32 %v3195, %v2868
  %v3278 = vmul.f32 %v3198, %v2868
  %v3279 = vmul.f32 %v3201, %v2868
  %v3280 = vmul.f32 %v3204, %v2868
  %v3281 = vmul.f32 %v3207, %v2868
  %v3282 = vmul.f32 %v3210, %v2868
  %v3283 = vmul.f32 %v3213, %v2868
  %v3284 = vmul.f32 %v3216, %v2868
  %v3285 = vmul.f32 %v3219, %v2868
  %v3286 = vmul.f32 %v3222, %v2868
  %v3287 = vmul.f32 %v3225, %v2868
  %v3288 = vmul.f32 %v3228, %v2868
  %v3289 = vadd.f32 %v3229, 1e-12
  %v3290 = vadd.f32 %v3230, 1e-12
  %v3291 = vadd.f32 %v3231, 1e-12
  %v3292 = vadd.f32 %v3232, 1e-12
  %v3293 = vadd.f32 %v3233, 1e-12
  %v3294 = vadd.f32 %v3234, 1e-12
  %v3295 = vadd.f32 %v3235, 1e-12
  %v3296 = vadd.f32 %v3236, 1e-12
  %v3297 = vadd.f32 %v3237, 1e-12
  %v3298 = vadd.f32 %v3238, 1e-12
  %v3299 = vadd.f32 %v3239, 1e-12
  %v3300 = vadd.f32 %v3240, 1e-12
  %v3301 = vadd.f32 %v3241, 1e-12
  %v3302 = vadd.f32 %v3242, 1e-12
  %v3303 = vadd.f32 %v3243, 1e-12
  %v3304 = vadd.f32 %v3244, 1e-12
  %v3305 = vadd.f32 %v3245, 1e-12
  %v3306 = vadd.f32 %v3246, 1e-12
  %v3307 = vadd.f32 %v3247, 1e-12
  %v3308 = vadd.f32 %v3248, 1e-12
  %v3309 = vadd.f32 %v3249, 1e-12
  %v3310 = vadd.f32 %v3250, 1e-12
  %v3311 = vadd.f32 %v3251, 1e-12
  %v3312 = vadd.f32 %v3252, 1e-12
  %v3313 = vadd.f32 %v3253, 1e-12
  %v3314 = vadd.f32 %v3254, 1e-12
  %v3315 = vadd.f32 %v3255, 1e-12
  %v3316 = vadd.f32 %v3256, 1e-12
  %v3317 = vadd.f32 %v3257, 1e-12
  %v3318 = vadd.f32 %v3258, 1e-12
  %v3319 = vadd.f32 %v3259, 1e-12
  %v3320 = vadd.f32 %v3260, 1e-12
  %v3321 = vadd.f32 %v3261, 1e-12
  %v3322 = vadd.f32 %v3262, 1e-12
  %v3323 = vadd.f32 %v3263, 1e-12
  %v3324 = vadd.f32 %v3264, 1e-12
  %v3325 = vadd.f32 %v3265, 1e-12
  %v3326 = vadd.f32 %v3266, 1e-12
  %v3327 = vadd.f32 %v3267, 1e-12
  %v3328 = vadd.f32 %v3268, 1e-12
  %v3329 = vadd.f32 %v3269, 1e-12
  %v3330 = vadd.f32 %v3270, 1e-12
  %v3331 = vadd.f32 %v3271, 1e-12
  %v3332 = vadd.f32 %v3272, 1e-12
  %v3333 = vadd.f32 %v3273, 1e-12
  %v3334 = vadd.f32 %v3274, 1e-12
  %v3335 = vadd.f32 %v3275, 1e-12
  %v3336 = vadd.f32 %v3276, 1e-12
  %v3337 = vadd.f32 %v3277, 1e-12
  %v3338 = vadd.f32 %v3278, 1e-12
  %v3339 = vadd.f32 %v3279, 1e-12
  %v3340 = vadd.f32 %v3280, 1e-12
  %v3341 = vadd.f32 %v3281, 1e-12
  %v3342 = vadd.f32 %v3282, 1e-12
  %v3343 = vadd.f32 %v3283, 1e-12
  %v3344 = vadd.f32 %v3284, 1e-12
  %v3345 = vadd.f32 %v3285, 1e-12
  %v3346 = vadd.f32 %v3286, 1e-12
  %v3347 = vadd.f32 %v3287, 1e-12
  %v3348 = vadd.f32 %v3288, 1e-12
  %v3349 = vrsqrt.pop %v3289
  %v3350 = vrsqrt.pop %v3290
  %v3351 = vrsqrt.pop %v3291
  %v3352 = vrsqrt.pop %v3292
  %v3353 = vrsqrt.pop %v3293
  %v3354 = vrsqrt.pop %v3294
  %v3355 = vrsqrt.pop %v3295
  %v3356 = vrsqrt.pop %v3296
  %v3357 = vrsqrt.pop %v3297
  %v3358 = vrsqrt.pop %v3298
  %v3359 = vrsqrt.pop %v3299
  %v3360 = vrsqrt.pop %v3300
  %v3361 = vrsqrt.pop %v3301
  %v3362 = vrsqrt.pop %v3302
  %v3363 = vrsqrt.pop %v3303
  %v3364 = vrsqrt.pop %v3304
  %v3365 = vrsqrt.pop %v3305
  %v3366 = vrsqrt.pop %v3306
  %v3367 = vrsqrt.pop %v3307
  %v3368 = vrsqrt.pop %v3308
  %v3369 = vrsqrt.pop %v3309
  %v3370 = vrsqrt.pop %v3310
  %v3371 = vrsqrt.pop %v3311
  %v3372 = vrsqrt.pop %v3312
  %v3373 = vrsqrt.pop %v3313
  %v3374 = vrsqrt.pop %v3314
  %v3375 = vrsqrt.pop %v3315
  %v3376 = vrsqrt.pop %v3316
  %v3377 = vrsqrt.pop %v3317
  %v3378 = vrsqrt.pop %v3318
  %v3379 = vrsqrt.pop %v3319
  %v3380 = vrsqrt.pop %v3320
  %v3381 = vrsqrt.pop %v3321
  %v3382 = vrsqrt.pop %v3322
  %v3383 = vrsqrt.pop %v3323
  %v3384 = vrsqrt.pop %v3324
  %v3385 = vrsqrt.pop %v3325
  %v3386 = vrsqrt.pop %v3326
  %v3387 = vrsqrt.pop %v3327
  %v3388 = vrsqrt.pop %v3328
  %v3389 = vrsqrt.pop %v3329
  %v3390 = vrsqrt.pop %v3330
  %v3391 = vrsqrt.pop %v3331
  %v3392 = vrsqrt.pop %v3332
  %v3393 = vrsqrt.pop %v3333
  %v3394 = vrsqrt.pop %v3334
  %v3395 = vrsqrt.pop %v3335
  %v3396 = vrsqrt.pop %v3336
  %v3397 = vrsqrt.pop %v3337
  %v3398 = vrsqrt.pop %v3338
  %v3399 = vrsqrt.pop %v3339
  %v3400 = vrsqrt.pop %v3340
  %v3401 = vrsqrt.pop %v3341
  %v3402 = vrsqrt.pop %v3342
  %v3403 = vrsqrt.pop %v3343
  %v3404 = vrsqrt.pop %v3344
  %v3405 = vrsqrt.pop %v3345
  %v3406 = vrsqrt.pop %v3346
  %v3407 = vrsqrt.pop %v3347
  %v3408 = vrsqrt.pop %v3348
  %v3409 = vmul.f32 %v2929, %v3349
  %v3410 = vmul.f32 %v2930, %v3350
  %v3411 = vmul.f32 %v2931, %v3351
  %v3412 = vmul.f32 %v2932, %v3352
  %v3413 = vmul.f32 %v2933, %v3353
  %v3414 = vmul.f32 %v2934, %v3354
  %v3415 = vmul.f32 %v2935, %v3355
  %v3416 = vmul.f32 %v2936, %v3356
  %v3417 = vmul.f32 %v2937, %v3357
  %v3418 = vmul.f32 %v2938, %v3358
  %v3419 = vmul.f32 %v2939, %v3359
  %v3420 = vmul.f32 %v2940, %v3360
  %v3421 = vmul.f32 %v2941, %v3361
  %v3422 = vmul.f32 %v2942, %v3362
  %v3423 = vmul.f32 %v2943, %v3363
  %v3424 = vmul.f32 %v2944, %v3364
  %v3425 = vmul.f32 %v2945, %v3365
  %v3426 = vmul.f32 %v2946, %v3366
  %v3427 = vmul.f32 %v2947, %v3367
  %v3428 = vmul.f32 %v2948, %v3368
  %v3429 = vmul.f32 %v2949, %v3369
  %v3430 = vmul.f32 %v2950, %v3370
  %v3431 = vmul.f32 %v2951, %v3371
  %v3432 = vmul.f32 %v2952, %v3372
  %v3433 = vmul.f32 %v2953, %v3373
  %v3434 = vmul.f32 %v2954, %v3374
  %v3435 = vmul.f32 %v2955, %v3375
  %v3436 = vmul.f32 %v2956, %v3376
  %v3437 = vmul.f32 %v2957, %v3377
  %v3438 = vmul.f32 %v2958, %v3378
  %v3439 = vmul.f32 %v2959, %v3379
  %v3440 = vmul.f32 %v2960, %v3380
  %v3441 = vmul.f32 %v2961, %v3381
  %v3442 = vmul.f32 %v2962, %v3382
  %v3443 = vmul.f32 %v2963, %v3383
  %v3444 = vmul.f32 %v2964, %v3384
  %v3445 = vmul.f32 %v2965, %v3385
  %v3446 = vmul.f32 %v2966, %v3386
  %v3447 = vmul.f32 %v2967, %v3387
  %v3448 = vmul.f32 %v2968, %v3388
  %v3449 = vmul.f32 %v2969, %v3389
  %v3450 = vmul.f32 %v2970, %v3390
  %v3451 = vmul.f32 %v2971, %v3391
  %v3452 = vmul.f32 %v2972, %v3392
  %v3453 = vmul.f32 %v2973, %v3393
  %v3454 = vmul.f32 %v2974, %v3394
  %v3455 = vmul.f32 %v2975, %v3395
  %v3456 = vmul.f32 %v2976, %v3396
  %v3457 = vmul.f32 %v2977, %v3397
  %v3458 = vmul.f32 %v2978, %v3398
  %v3459 = vmul.f32 %v2979, %v3399
  %v3460 = vmul.f32 %v2980, %v3400
  %v3461 = vmul.f32 %v2981, %v3401
  %v3462 = vmul.f32 %v2982, %v3402
  %v3463 = vmul.f32 %v2983, %v3403
  %v3464 = vmul.f32 %v2984, %v3404
  %v3465 = vmul.f32 %v2985, %v3405
  %v3466 = vmul.f32 %v2986, %v3406
  %v3467 = vmul.f32 %v2987, %v3407
  %v3468 = vmul.f32 %v2988, %v3408
  %v3469 = vld [vmem:[%s4] sm:$0x1]
  %v3471 = vlaneseq
  %v3472 = vshrl.u32 %v3471, 7
  %v3473 = vsub.s32 0, %v3472
  %v3474 = vrot.slane %v3469, %v3473
  %v3476 = vmul.f32 %v3409, %v3474
  %v3477 = vmul.f32 %v3410, %v3474
  %v3478 = vmul.f32 %v3411, %v3474
  %v3479 = vmul.f32 %v3412, %v3474
  %v3480 = vmul.f32 %v3413, %v3474
  %v3481 = vmul.f32 %v3414, %v3474
  %v3482 = vmul.f32 %v3415, %v3474
  %v3483 = vmul.f32 %v3416, %v3474
  %v3484 = vmul.f32 %v3417, %v3474
  %v3485 = vmul.f32 %v3418, %v3474
  %v3486 = vmul.f32 %v3419, %v3474
  %v3487 = vmul.f32 %v3420, %v3474
  %v3488 = vmul.f32 %v3421, %v3474
  %v3489 = vmul.f32 %v3422, %v3474
  %v3490 = vmul.f32 %v3423, %v3474
  %v3491 = vmul.f32 %v3424, %v3474
  %v3492 = vmul.f32 %v3425, %v3474
  %v3493 = vmul.f32 %v3426, %v3474
  %v3494 = vmul.f32 %v3427, %v3474
  %v3495 = vmul.f32 %v3428, %v3474
  %v3496 = vmul.f32 %v3429, %v3474
  %v3497 = vmul.f32 %v3430, %v3474
  %v3498 = vmul.f32 %v3431, %v3474
  %v3499 = vmul.f32 %v3432, %v3474
  %v3500 = vmul.f32 %v3433, %v3474
  %v3501 = vmul.f32 %v3434, %v3474
  %v3502 = vmul.f32 %v3435, %v3474
  %v3503 = vmul.f32 %v3436, %v3474
  %v3504 = vmul.f32 %v3437, %v3474
  %v3505 = vmul.f32 %v3438, %v3474
  %v3506 = vmul.f32 %v3439, %v3474
  %v3507 = vmul.f32 %v3440, %v3474
  %v3508 = vmul.f32 %v3441, %v3474
  %v3509 = vmul.f32 %v3442, %v3474
  %v3510 = vmul.f32 %v3443, %v3474
  %v3511 = vmul.f32 %v3444, %v3474
  %v3512 = vmul.f32 %v3445, %v3474
  %v3513 = vmul.f32 %v3446, %v3474
  %v3514 = vmul.f32 %v3447, %v3474
  %v3515 = vmul.f32 %v3448, %v3474
  %v3516 = vmul.f32 %v3449, %v3474
  %v3517 = vmul.f32 %v3450, %v3474
  %v3518 = vmul.f32 %v3451, %v3474
  %v3519 = vmul.f32 %v3452, %v3474
  %v3520 = vmul.f32 %v3453, %v3474
  %v3521 = vmul.f32 %v3454, %v3474
  %v3522 = vmul.f32 %v3455, %v3474
  %v3523 = vmul.f32 %v3456, %v3474
  %v3524 = vmul.f32 %v3457, %v3474
  %v3525 = vmul.f32 %v3458, %v3474
  %v3526 = vmul.f32 %v3459, %v3474
  %v3527 = vmul.f32 %v3460, %v3474
  %v3528 = vmul.f32 %v3461, %v3474
  %v3529 = vmul.f32 %v3462, %v3474
  %v3530 = vmul.f32 %v3463, %v3474
  %v3531 = vmul.f32 %v3464, %v3474
  %v3532 = vmul.f32 %v3465, %v3474
  %v3533 = vmul.f32 %v3466, %v3474
  %v3534 = vmul.f32 %v3467, %v3474
  %v3535 = vmul.f32 %v3468, %v3474
  %v3536 = vld [vmem:[%s5] sm:$0x1]
  %v3538 = vlaneseq
  %v3539 = vshrl.u32 %v3538, 7
  %v3540 = vsub.s32 0, %v3539
  %v3541 = vrot.slane %v3536, %v3540
  %v3543 = vadd.f32 %v3476, %v3541
  %v3544 = vadd.f32 %v3477, %v3541
  %v3545 = vadd.f32 %v3478, %v3541
  %v3546 = vadd.f32 %v3479, %v3541
  %v3547 = vadd.f32 %v3480, %v3541
  %v3548 = vadd.f32 %v3481, %v3541
  %v3549 = vadd.f32 %v3482, %v3541
  %v3550 = vadd.f32 %v3483, %v3541
  %v3551 = vadd.f32 %v3484, %v3541
  %v3552 = vadd.f32 %v3485, %v3541
  %v3553 = vadd.f32 %v3486, %v3541
  %v3554 = vadd.f32 %v3487, %v3541
  %v3555 = vadd.f32 %v3488, %v3541
  %v3556 = vadd.f32 %v3489, %v3541
  %v3557 = vadd.f32 %v3490, %v3541
  %v3558 = vadd.f32 %v3491, %v3541
  %v3559 = vadd.f32 %v3492, %v3541
  %v3560 = vadd.f32 %v3493, %v3541
  %v3561 = vadd.f32 %v3494, %v3541
  %v3562 = vadd.f32 %v3495, %v3541
  %v3563 = vadd.f32 %v3496, %v3541
  %v3564 = vadd.f32 %v3497, %v3541
  %v3565 = vadd.f32 %v3498, %v3541
  %v3566 = vadd.f32 %v3499, %v3541
  %v3567 = vadd.f32 %v3500, %v3541
  %v3568 = vadd.f32 %v3501, %v3541
  %v3569 = vadd.f32 %v3502, %v3541
  %v3570 = vadd.f32 %v3503, %v3541
  %v3571 = vadd.f32 %v3504, %v3541
  %v3572 = vadd.f32 %v3505, %v3541
  %v3573 = vadd.f32 %v3506, %v3541
  %v3574 = vadd.f32 %v3507, %v3541
  %v3575 = vadd.f32 %v3508, %v3541
  %v3576 = vadd.f32 %v3509, %v3541
  %v3577 = vadd.f32 %v3510, %v3541
  %v3578 = vadd.f32 %v3511, %v3541
  %v3579 = vadd.f32 %v3512, %v3541
  %v3580 = vadd.f32 %v3513, %v3541
  %v3581 = vadd.f32 %v3514, %v3541
  %v3582 = vadd.f32 %v3515, %v3541
  %v3583 = vadd.f32 %v3516, %v3541
  %v3584 = vadd.f32 %v3517, %v3541
  %v3585 = vadd.f32 %v3518, %v3541
  %v3586 = vadd.f32 %v3519, %v3541
  %v3587 = vadd.f32 %v3520, %v3541
  %v3588 = vadd.f32 %v3521, %v3541
  %v3589 = vadd.f32 %v3522, %v3541
  %v3590 = vadd.f32 %v3523, %v3541
  %v3591 = vadd.f32 %v3524, %v3541
  %v3592 = vadd.f32 %v3525, %v3541
  %v3593 = vadd.f32 %v3526, %v3541
  %v3594 = vadd.f32 %v3527, %v3541
  %v3595 = vadd.f32 %v3528, %v3541
  %v3596 = vadd.f32 %v3529, %v3541
  %v3597 = vadd.f32 %v3530, %v3541
  %v3598 = vadd.f32 %v3531, %v3541
  %v3599 = vadd.f32 %v3532, %v3541
  %v3600 = vadd.f32 %v3533, %v3541
  %v3601 = vadd.f32 %v3534, %v3541
  %v3602 = vadd.f32 %v3535, %v3541
  %v3603 = vld [vmem:[%s3] sm:$0xff]
  %v3604 = vld [vmem:[%s3 + $0x8] sm:$0xff]
  %v3605 = vld [vmem:[%s3 + $0x10] sm:$0xff]
  %v3606 = vld [vmem:[%s3 + $0x18] sm:$0xff]
  %v3607 = vld [vmem:[%s3 + $0x20] sm:$0xff]
  %v3608 = vld [vmem:[%s3 + $0x28] sm:$0xff]
  %v3609 = vld [vmem:[%s3 + $0x30] sm:$0xff]
  %v3610 = vld [vmem:[%s3 + $0x38] sm:$0xff]
  %v3611 = vld [vmem:[%s3 + $0x40] sm:$0xff]
  %v3612 = vld [vmem:[%s3 + $0x48] sm:$0xff]
  %v3613 = vld [vmem:[%s3 + $0x50] sm:$0xff]
  %v3614 = vld [vmem:[%s3 + $0x58] sm:$0xff]
  %v3615 = vld [vmem:[%s3 + $0x60] sm:$0xff]
  %v3616 = vld [vmem:[%s3 + $0x68] sm:$0xff]
  %v3617 = vld [vmem:[%s3 + $0x70] sm:$0xff]
  %v3618 = vld [vmem:[%s3 + $0x78] sm:$0xff]
  %v3619 = vld [vmem:[%s3 + $0x80] sm:$0xff]
  %v3620 = vld [vmem:[%s3 + $0x88] sm:$0xff]
  %v3621 = vld [vmem:[%s3 + $0x90] sm:$0xff]
  %v3622 = vld [vmem:[%s3 + $0x98] sm:$0xff]
  %v3623 = vld [vmem:[%s3 + $0xa0] sm:$0xff]
  %v3624 = vld [vmem:[%s3 + $0xa8] sm:$0xff]
  %v3625 = vld [vmem:[%s3 + $0xb0] sm:$0xff]
  %v3626 = vld [vmem:[%s3 + $0xb8] sm:$0xff]
  %v3627 = vld [vmem:[%s3 + $0xc0] sm:$0xff]
  %v3628 = vld [vmem:[%s3 + $0xc8] sm:$0xff]
  %v3629 = vld [vmem:[%s3 + $0xd0] sm:$0xff]
  %v3630 = vld [vmem:[%s3 + $0xd8] sm:$0xff]
  %v3631 = vld [vmem:[%s3 + $0xe0] sm:$0xff]
  %v3632 = vld [vmem:[%s3 + $0xe8] sm:$0xff]
  %v3633 = vld [vmem:[%s3 + $0xf0] sm:$0xff]
  %v3634 = vld [vmem:[%s3 + $0xf8] sm:$0xff]
  %v3635 = vld [vmem:[%s3 + $0x100] sm:$0xff]
  %v3636 = vld [vmem:[%s3 + $0x108] sm:$0xff]
  %v3637 = vld [vmem:[%s3 + $0x110] sm:$0xff]
  %v3638 = vld [vmem:[%s3 + $0x118] sm:$0xff]
  %v3639 = vld [vmem:[%s3 + $0x120] sm:$0xff]
  %v3640 = vld [vmem:[%s3 + $0x128] sm:$0xff]
  %v3641 = vld [vmem:[%s3 + $0x130] sm:$0xff]
  %v3642 = vld [vmem:[%s3 + $0x138] sm:$0xff]
  %v3643 = vld [vmem:[%s3 + $0x140] sm:$0xff]
  %v3644 = vld [vmem:[%s3 + $0x148] sm:$0xff]
  %v3645 = vld [vmem:[%s3 + $0x150] sm:$0xff]
  %v3646 = vld [vmem:[%s3 + $0x158] sm:$0xff]
  %v3647 = vld [vmem:[%s3 + $0x160] sm:$0xff]
  %v3648 = vld [vmem:[%s3 + $0x168] sm:$0xff]
  %v3649 = vld [vmem:[%s3 + $0x170] sm:$0xff]
  %v3650 = vld [vmem:[%s3 + $0x178] sm:$0xff]
  %v3651 = vld [vmem:[%s3 + $0x180] sm:$0xff]
  %v3652 = vld [vmem:[%s3 + $0x188] sm:$0xff]
  %v3653 = vld [vmem:[%s3 + $0x190] sm:$0xff]
  %v3654 = vld [vmem:[%s3 + $0x198] sm:$0xff]
  %v3655 = vld [vmem:[%s3 + $0x1a0] sm:$0xff]
  %v3656 = vld [vmem:[%s3 + $0x1a8] sm:$0xff]
  %v3657 = vld [vmem:[%s3 + $0x1b0] sm:$0xff]
  %v3658 = vld [vmem:[%s3 + $0x1b8] sm:$0xff]
  %v3659 = vld [vmem:[%s3 + $0x1c0] sm:$0xff]
  %v3660 = vld [vmem:[%s3 + $0x1c8] sm:$0xff]
  %v3661 = vld [vmem:[%s3 + $0x1d0] sm:$0xff]
  %v3662 = vld [vmem:[%s3 + $0x1d8] sm:$0xff]
  %v3663 = vadd.f32 %v3543, %v3603
  %v3664 = vadd.f32 %v3544, %v3604
  %v3665 = vadd.f32 %v3545, %v3605
  %v3666 = vadd.f32 %v3546, %v3606
  %v3667 = vadd.f32 %v3547, %v3607
  %v3668 = vadd.f32 %v3548, %v3608
  %v3669 = vadd.f32 %v3549, %v3609
  %v3670 = vadd.f32 %v3550, %v3610
  %v3671 = vadd.f32 %v3551, %v3611
  %v3672 = vadd.f32 %v3552, %v3612
  %v3673 = vadd.f32 %v3553, %v3613
  %v3674 = vadd.f32 %v3554, %v3614
  %v3675 = vadd.f32 %v3555, %v3615
  %v3676 = vadd.f32 %v3556, %v3616
  %v3677 = vadd.f32 %v3557, %v3617
  %v3678 = vadd.f32 %v3558, %v3618
  %v3679 = vadd.f32 %v3559, %v3619
  %v3680 = vadd.f32 %v3560, %v3620
  %v3681 = vadd.f32 %v3561, %v3621
  %v3682 = vadd.f32 %v3562, %v3622
  %v3683 = vadd.f32 %v3563, %v3623
  %v3684 = vadd.f32 %v3564, %v3624
  %v3685 = vadd.f32 %v3565, %v3625
  %v3686 = vadd.f32 %v3566, %v3626
  %v3687 = vadd.f32 %v3567, %v3627
  %v3688 = vadd.f32 %v3568, %v3628
  %v3689 = vadd.f32 %v3569, %v3629
  %v3690 = vadd.f32 %v3570, %v3630
  %v3691 = vadd.f32 %v3571, %v3631
  %v3692 = vadd.f32 %v3572, %v3632
  %v3693 = vadd.f32 %v3573, %v3633
  %v3694 = vadd.f32 %v3574, %v3634
  %v3695 = vadd.f32 %v3575, %v3635
  %v3696 = vadd.f32 %v3576, %v3636
  %v3697 = vadd.f32 %v3577, %v3637
  %v3698 = vadd.f32 %v3578, %v3638
  %v3699 = vadd.f32 %v3579, %v3639
  %v3700 = vadd.f32 %v3580, %v3640
  %v3701 = vadd.f32 %v3581, %v3641
  %v3702 = vadd.f32 %v3582, %v3642
  %v3703 = vadd.f32 %v3583, %v3643
  %v3704 = vadd.f32 %v3584, %v3644
  %v3705 = vadd.f32 %v3585, %v3645
  %v3706 = vadd.f32 %v3586, %v3646
  %v3707 = vadd.f32 %v3587, %v3647
  %v3708 = vadd.f32 %v3588, %v3648
  %v3709 = vadd.f32 %v3589, %v3649
  %v3710 = vadd.f32 %v3590, %v3650
  %v3711 = vadd.f32 %v3591, %v3651
  %v3712 = vadd.f32 %v3592, %v3652
  %v3713 = vadd.f32 %v3593, %v3653
  %v3714 = vadd.f32 %v3594, %v3654
  %v3715 = vadd.f32 %v3595, %v3655
  %v3716 = vadd.f32 %v3596, %v3656
  %v3717 = vadd.f32 %v3597, %v3657
  %v3718 = vadd.f32 %v3598, %v3658
  %v3719 = vadd.f32 %v3599, %v3659
  %v3720 = vadd.f32 %v3600, %v3660
  %v3721 = vadd.f32 %v3601, %v3661
  %v3722 = vadd.f32 %v3602, %v3662
  %3723 = vst.msk [vmem:[%s6] sm:$0xff] %vm2687, %v3663
  %3724 = vst.msk [vmem:[%s6 + $0x8] sm:$0xff] %vm2687, %v3664
  %3725 = vst.msk [vmem:[%s6 + $0x10] sm:$0xff] %vm2687, %v3665
  %3726 = vst.msk [vmem:[%s6 + $0x18] sm:$0xff] %vm2687, %v3666
  %3727 = vst.msk [vmem:[%s6 + $0x20] sm:$0xff] %vm2687, %v3667
  %3728 = vst.msk [vmem:[%s6 + $0x28] sm:$0xff] %vm2687, %v3668
  %3729 = vst.msk [vmem:[%s6 + $0x30] sm:$0xff] %vm2687, %v3669
  %3730 = vst.msk [vmem:[%s6 + $0x38] sm:$0xff] %vm2687, %v3670
  %3731 = vst.msk [vmem:[%s6 + $0x40] sm:$0xff] %vm2687, %v3671
  %3732 = vst.msk [vmem:[%s6 + $0x48] sm:$0xff] %vm2687, %v3672
  %3733 = vst.msk [vmem:[%s6 + $0x50] sm:$0xff] %vm2687, %v3673
  %3734 = vst.msk [vmem:[%s6 + $0x58] sm:$0xff] %vm2687, %v3674
  %3735 = vst.msk [vmem:[%s6 + $0x60] sm:$0xff] %vm2687, %v3675
  %3736 = vst.msk [vmem:[%s6 + $0x68] sm:$0xff] %vm2687, %v3676
  %3737 = vst.msk [vmem:[%s6 + $0x70] sm:$0xff] %vm2687, %v3677
  %3738 = vst.msk [vmem:[%s6 + $0x78] sm:$0xff] %vm2687, %v3678
  %3739 = vst.msk [vmem:[%s6 + $0x80] sm:$0xff] %vm2687, %v3679
  %3740 = vst.msk [vmem:[%s6 + $0x88] sm:$0xff] %vm2687, %v3680
  %3741 = vst.msk [vmem:[%s6 + $0x90] sm:$0xff] %vm2687, %v3681
  %3742 = vst.msk [vmem:[%s6 + $0x98] sm:$0xff] %vm2687, %v3682
  %3743 = vst.msk [vmem:[%s6 + $0xa0] sm:$0xff] %vm2687, %v3683
  %3744 = vst.msk [vmem:[%s6 + $0xa8] sm:$0xff] %vm2687, %v3684
  %3745 = vst.msk [vmem:[%s6 + $0xb0] sm:$0xff] %vm2687, %v3685
  %3746 = vst.msk [vmem:[%s6 + $0xb8] sm:$0xff] %vm2687, %v3686
  %3747 = vst.msk [vmem:[%s6 + $0xc0] sm:$0xff] %vm2687, %v3687
  %3748 = vst.msk [vmem:[%s6 + $0xc8] sm:$0xff] %vm2687, %v3688
  %3749 = vst.msk [vmem:[%s6 + $0xd0] sm:$0xff] %vm2687, %v3689
  %3750 = vst.msk [vmem:[%s6 + $0xd8] sm:$0xff] %vm2687, %v3690
  %3751 = vst.msk [vmem:[%s6 + $0xe0] sm:$0xff] %vm2687, %v3691
  %3752 = vst.msk [vmem:[%s6 + $0xe8] sm:$0xff] %vm2687, %v3692
  %3753 = vst.msk [vmem:[%s6 + $0xf0] sm:$0xff] %vm2687, %v3693
  %3754 = vst.msk [vmem:[%s6 + $0xf8] sm:$0xff] %vm2687, %v3694
  %3755 = vst.msk [vmem:[%s6 + $0x100] sm:$0xff] %vm2687, %v3695
  %3756 = vst.msk [vmem:[%s6 + $0x108] sm:$0xff] %vm2687, %v3696
  %3757 = vst.msk [vmem:[%s6 + $0x110] sm:$0xff] %vm2687, %v3697
  %3758 = vst.msk [vmem:[%s6 + $0x118] sm:$0xff] %vm2687, %v3698
  %3759 = vst.msk [vmem:[%s6 + $0x120] sm:$0xff] %vm2687, %v3699
  %3760 = vst.msk [vmem:[%s6 + $0x128] sm:$0xff] %vm2687, %v3700
  %3761 = vst.msk [vmem:[%s6 + $0x130] sm:$0xff] %vm2687, %v3701
  %3762 = vst.msk [vmem:[%s6 + $0x138] sm:$0xff] %vm2687, %v3702
  %3763 = vst.msk [vmem:[%s6 + $0x140] sm:$0xff] %vm2687, %v3703
  %3764 = vst.msk [vmem:[%s6 + $0x148] sm:$0xff] %vm2687, %v3704
  %3765 = vst.msk [vmem:[%s6 + $0x150] sm:$0xff] %vm2687, %v3705
  %3766 = vst.msk [vmem:[%s6 + $0x158] sm:$0xff] %vm2687, %v3706
  %3767 = vst.msk [vmem:[%s6 + $0x160] sm:$0xff] %vm2687, %v3707
  %3768 = vst.msk [vmem:[%s6 + $0x168] sm:$0xff] %vm2687, %v3708
  %3769 = vst.msk [vmem:[%s6 + $0x170] sm:$0xff] %vm2687, %v3709
  %3770 = vst.msk [vmem:[%s6 + $0x178] sm:$0xff] %vm2687, %v3710
  %3771 = vst.msk [vmem:[%s6 + $0x180] sm:$0xff] %vm2687, %v3711
  %3772 = vst.msk [vmem:[%s6 + $0x188] sm:$0xff] %vm2687, %v3712
  %3773 = vst.msk [vmem:[%s6 + $0x190] sm:$0xff] %vm2687, %v3713
  %3774 = vst.msk [vmem:[%s6 + $0x198] sm:$0xff] %vm2687, %v3714
  %3775 = vst.msk [vmem:[%s6 + $0x1a0] sm:$0xff] %vm2687, %v3715
  %3776 = vst.msk [vmem:[%s6 + $0x1a8] sm:$0xff] %vm2687, %v3716
  %3777 = vst.msk [vmem:[%s6 + $0x1b0] sm:$0xff] %vm2687, %v3717
  %3778 = vst.msk [vmem:[%s6 + $0x1b8] sm:$0xff] %vm2687, %v3718
  %3779 = vst.msk [vmem:[%s6 + $0x1c0] sm:$0xff] %vm2687, %v3719
  %3780 = vst.msk [vmem:[%s6 + $0x1c8] sm:$0xff] %vm2687, %v3720
  %3781 = vst.msk [vmem:[%s6 + $0x1d0] sm:$0xff] %vm2687, %v3721
  %3782 = vst.msk [vmem:[%s6 + $0x1d8] sm:$0xff] %vm2687, %v3722
  // Predicated region
  $region26: #{_lambda_.1} parent=0 // pred_check
    _
  $region27: #{_lambda_.1} parent=0 // pred_check_branch
    %3784 = sbr.rel (0) target = $region29
  $region28: #{_lambda_.1} parent=0 // pred_region
    _
  $region29: #{_lambda_.1} parent=0 // pred_fallthru
    _
  // Predicated region
  $region30: #{_lambda_.1} parent=0 // pred_check
    _
  $region31: #{_lambda_.1} parent=0 // pred_check_branch
    %3786 = sbr.rel (0) target = $region33
  $region32: #{_lambda_.1} parent=0 // pred_region
    _
  $region33: #{_lambda_.1} parent=0 // pred_fallthru
    _

</llo_original>
